<compile_context>
chip_gen: v7x
topology: tpu7x:2x2x1
jax: 0.10.0
libtpu: 0.0.40
codegen_flags: <defaults>
</compile_context>

<pallas_src>
import functools

import jax
import jax.numpy as jnp
from jax.experimental import pallas as pl
from jax.experimental.pallas import tpu as pltpu


# ----------------------------------------------------------------------------
# Packed-parameter layout (BN folded into conv weights, inference mode)
# ----------------------------------------------------------------------------
def _param_offsets(cin, groups, out_c):
    sizes = (("w1", cin * groups),   # w1f[c, g]  -> off + c*G + g
             ("b1", groups),         # BN1 shift
             ("a1", groups),         # PReLU1 alpha
             ("wdw", groups * 9),    # wdwf[g, kh*3+kw] -> off + g*9 + tap
             ("b2", groups),         # BN2 shift
             ("a2", groups),         # PReLU2 alpha
             ("w3", groups * out_c),  # w3f[g, o] -> off + g*Cout + o
             ("b3", out_c))          # BN3 shift
    off, cur = {}, 0
    for name, sz in sizes:
        off[name] = cur
        cur += sz
    return off, cur


# ----------------------------------------------------------------------------
# Fused Pallas kernel: one grid step = one sample (whole image)
# ----------------------------------------------------------------------------
def _depth_wise_kernel(x_ref, p_ref, o_ref, *, cin, groups, out_c, ho, wo, off):
    """x_ref : (4, cin, ho+1, wo+1)  VMEM  parity planes of the zero-padded
                                          input: plane[pr*2+pc][c,a,b] =
                                          xpad[c, 2a+pr, 2b+pc].
       p_ref : (L,)                  SMEM  packed BN-folded parameters.
       o_ref : (out_c, ho, wo)       VMEM  final NCHW output for this sample.
    """
    hp, wp = ho + 1, wo + 1

    # ---- in-kernel padding-validity masks (replaces the old mask input) ----
    # xpad has a 1-pixel zero border; per parity plane the pad positions are a
    # single (statically known) first/last row and first/last column.
    row = jax.lax.broadcasted_iota(jnp.int32, (hp, wp), 0)
    col = jax.lax.broadcasted_iota(jnp.int32, (hp, wp), 1)
    masks = []
    for pr in (0, 1):
        for pc in (0, 1):
            v = (row >= 1) if pr == 0 else (row <= hp - 2)
            v = v & ((col >= 1) if pc == 0 else (col <= wp - 2))
            masks.append(v)

    out_acc = [None] * out_c
    # TODO(synk): for real channel counts (Cin/G >= 64) replace these scalar
    # broadcast-FMA loops for stages 1/3 with jnp.dot on flattened (H*W, C)
    # tiles (128-wide on v5e, 256-wide on v6e/v7x).
    for g in range(groups):
        b1 = p_ref[off["b1"] + g]
        a1 = p_ref[off["a1"] + g]
        b2 = p_ref[off["b2"] + g]
        a2 = p_ref[off["a2"] + g]

        # ---- stage 1: 1x1 conv (+BN folded) + PReLU, per parity plane ------
        yp = []
        for p in range(4):
            acc = x_ref[p, 0] * p_ref[off["w1"] + 0 * groups + g]
            for c in range(1, cin):
                acc = acc + x_ref[p, c] * p_ref[off["w1"] + c * groups + g]
            y = acc + b1
            y = jnp.where(y >= 0.0, y, a1 * y)
            # zero the conv-padding positions (PReLU(b1) there is non-zero)
            yp.append(jnp.where(masks[p], y, 0.0))

        # ---- stage 2: 3x3 / stride-2 depthwise conv (+BN folded) + PReLU ---
        # Parity decomposition: tap (kh,kw) lives in plane (kh%2, kw%2) at row
        # offset kh//2, col offset kw//2 -> every tap is a contiguous slice.
        z = None
        for kh in range(3):
            for kw in range(3):
                p = (kh % 2) * 2 + (kw % 2)
                dh, dw = kh // 2, kw // 2
                tap = yp[p][dh:dh + ho, dw:dw + wo]
                t = tap * p_ref[off["wdw"] + g * 9 + kh * 3 + kw]
                z = t if z is None else z + t
        z = z + b2
        z = jnp.where(z >= 0.0, z, a2 * z)

        # ---- stage 3: 1x1 projection (+BN folded), accumulate over groups --
        for o in range(out_c):
            t = z * p_ref[off["w3"] + g * out_c + o]
            out_acc[o] = t if out_acc[o] is None else out_acc[o] + t

    for o in range(out_c):
        o_ref[o] = (out_acc[o] + p_ref[off["b3"] + o]).astype(o_ref.dtype)


# ----------------------------------------------------------------------------
# Wrapper (layout glue only: zero-pad + parity split, both done once)
# ----------------------------------------------------------------------------
def depth_wise_forward(x_nchw, packed_params, *, groups, out_c,
                       stride=2, residual=False):
    """Fused Depth_Wise forward.  NCHW in / NCHW out, like the PyTorch module.

    Implements the module-default geometry kernel=(3,3), stride=(2,2),
    padding=(1,1); the parity-plane trick assumes stride 2 and even H/W.
    """
    if stride != 2:
        # TODO(synk): stride=1 (residual bottleneck) variant not implemented.
        raise NotImplementedError("only kernel=3, stride=2, padding=1 is supported")
    if residual:
        raise ValueError("residual=True requires stride==1 and in_c==out_c; "
                         "not valid for the stride-2 path")

    n, cin, h, w = x_nchw.shape
    assert h % 2 == 0 and w % 2 == 0, "even spatial dims expected for stride 2"
    ho, wo = h // 2, w // 2
    hp, wp = ho + 1, wo + 1

    off, plen = _param_offsets(cin, groups, out_c)
    assert packed_params.shape == (plen,), packed_params.shape

    # ---- layout glue (single pass; NCHW throughout, W stays on lanes) ------
    x = x_nchw.astype(jnp.float32)
    xpad = jnp.pad(x, ((0, 0), (0, 0), (1, 1), (1, 1)))           # zero pad
    # Parity planes: xplanes[n, pr*2+pc, c, a, b] = xpad[n, c, 2a+pr, 2b+pc]
    xplanes = jnp.stack([xpad[:, :, pr::2, pc::2]
                         for pr in (0, 1) for pc in (0, 1)], axis=1)

    kernel = functools.partial(_depth_wise_kernel, cin=cin, groups=groups,
                               out_c=out_c, ho=ho, wo=wo, off=off)

    flops = n * (2 * 4 * hp * wp * cin * groups      # 1x1 conv (+BN)
                 + 2 * ho * wo * groups * 9          # depthwise 3x3
                 + 2 * ho * wo * groups * out_c)     # 1x1 projection
    bytes_accessed = 4 * (xplanes.size + n * out_c * ho * wo + packed_params.size)

    out = pl.pallas_call(
        kernel,
        out_shape=jax.ShapeDtypeStruct((n, out_c, ho, wo), jnp.float32),
        grid=(n,),
        in_specs=[
            # whole parity-plane image for one sample per step
            pl.BlockSpec((None, 4, cin, hp, wp), lambda i: (i, 0, 0, 0, 0)),
            # all BN-folded params as one packed slab in SMEM (scalar loads)
            pl.BlockSpec(memory_space=pltpu.MemorySpace.SMEM),
        ],
        out_specs=pl.BlockSpec((None, out_c, ho, wo), lambda i: (i, 0, 0, 0)),
        compiler_params=pltpu.CompilerParams(
            dimension_semantics=("parallel",),        # batch split on v7x cores
            vmem_limit_bytes=48 * 1024 * 1024),       # safe under v7x 64 MiB
        cost_estimate=pl.CostEstimate(flops=flops, transcendentals=0,
                                      bytes_accessed=bytes_accessed),
    )(xplanes, packed_params)
    return out                                        # already NCHW


# ----------------------------------------------------------------------------
# Pure-JAX reference (independent, uses lax.conv) for verification
# ----------------------------------------------------------------------------
def depth_wise_reference(x_nchw, params, *, stride=2):
    g = params["w1"].shape[1]
    x = jnp.transpose(x_nchw, (0, 2, 3, 1)).astype(jnp.float32)
    y = jnp.einsum("nhwc,cg->nhwg", x, params["w1"])
    y = y * params["scale1"] + params["shift1"]
    y = jnp.where(y >= 0, y, params["alpha1"] * y)
    kern = jnp.transpose(params["wdw"], (1, 2, 0))[:, :, None, :]  # (3,3,1,G)
    y = jax.lax.conv_general_dilated(
        y, kern, window_strides=(stride, stride), padding=((1, 1), (1, 1)),
        dimension_numbers=("NHWC", "HWIO", "NHWC"), feature_group_count=g)
    y = y * params["scale2"] + params["shift2"]
    y = jnp.where(y >= 0, y, params["alpha2"] * y)
    y = jnp.einsum("nhwg,go->nhwo", y, params["w3"])
    y = y * params["scale3"] + params["shift3"]
    return jnp.transpose(y, (0, 3, 1, 2))


# ----------------------------------------------------------------------------
# Deterministic parameter construction (raw + packed BN-folded layout)
# ----------------------------------------------------------------------------
def make_params(key, in_c, groups, out_c, eps=1e-5):
    ks = jax.random.split(key, 6)

    def bn(k, c):
        kg, kb, km, kv = jax.random.split(k, 4)
        gamma = 0.5 + jax.random.uniform(kg, (c,))
        beta = 0.1 * jax.random.normal(kb, (c,))
        mean = 0.1 * jax.random.normal(km, (c,))
        var = 0.5 + jax.random.uniform(kv, (c,))
        scale = gamma / jnp.sqrt(var + eps)
        shift = beta - mean * scale
        return scale.astype(jnp.float32), shift.astype(jnp.float32)

    w1 = (0.2 * jax.random.normal(ks[0], (in_c, groups))).astype(jnp.float32)
    wdw = (0.2 * jax.random.normal(ks[1], (groups, 3, 3))).astype(jnp.float32)
    w3 = (0.2 * jax.random.normal(ks[2], (groups, out_c))).astype(jnp.float32)
    scale1, shift1 = bn(ks[3], groups)
    scale2, shift2 = bn(ks[4], groups)
    scale3, shift3 = bn(ks[5], out_c)
    alpha1 = jnp.full((groups,), 0.25, jnp.float32)
    alpha2 = jnp.full((groups,), 0.25, jnp.float32)

    p = dict(w1=w1, wdw=wdw, w3=w3,
             scale1=scale1, shift1=shift1, alpha1=alpha1,
             scale2=scale2, shift2=shift2, alpha2=alpha2,
             scale3=scale3, shift3=shift3)

    # Inference-mode BN folded into conv weights, packed into one SMEM slab.
    w1f = w1 * scale1[None, :]                              # (Cin, G)
    wdwf = wdw.reshape(groups, 9) * scale2[:, None]         # (G, 9)
    w3f = w3 * scale3[None, :]                              # (G, Cout)
    pieces = dict(w1=w1f.reshape(-1), b1=shift1, a1=alpha1,
                  wdw=wdwf.reshape(-1), b2=shift2, a2=alpha2,
                  w3=w3f.reshape(-1), b3=shift3)
    off, plen = _param_offsets(in_c, groups, out_c)
    packed = jnp.concatenate(
        [pieces[name] for name in ("w1", "b1", "a1", "wdw", "b2", "a2", "w3", "b3")]
    ).astype(jnp.float32)
    assert packed.shape == (plen,)
    p["packed"] = packed
    return p


if __name__ == "__main__":
    # Depth_Wise(in_c=4, out_c=8, residual=False, kernel=(3,3), stride=(2,2),
    #            padding=(1,1), groups=8)  -- residual=False since stride=2.
    N, Cin, H, W = 2, 4, 16, 16
    G, Cout = 8, 8

    key = jax.random.PRNGKey(0)
    kx, kp = jax.random.split(key)
    x = jax.random.normal(kx, (N, Cin, H, W), jnp.float32)
    params = make_params(kp, Cin, G, Cout)

    fwd = jax.jit(functools.partial(depth_wise_forward, groups=G, out_c=Cout))
    out = jax.block_until_ready(fwd(x, params["packed"]))

    ref = depth_wise_reference(x, params, stride=2)
    assert out.shape == (N, Cout, H // 2, W // 2), out.shape
    max_err = float(jnp.max(jnp.abs(out - ref)))
    assert jnp.allclose(out, ref, atol=1e-4, rtol=1e-4), max_err

    print("KERNEL_OK")
</pallas_src>

<mosaic_0001>
module attributes {stable_mosaic.version = 11 : i64} {
  func.func @_depth_wise_kernel(%arg0: i32, %arg1: memref<1x4x4x9x9xf32, #tpu.memory_space<vmem>>, %arg2: memref<208xf32, #tpu.memory_space<smem>>, %arg3: memref<1x8x8x8xf32, #tpu.memory_space<vmem>>) attributes {dimension_semantics = [#tpu.dimension_semantics<parallel>], iteration_bounds = array<i64: 2>, scalar_prefetch = 0 : i64, scratch_operands = 0 : i64, tpu.core_type = #tpu.core_type<tc>, window_params = [{transform_indices = @transform_0, window_bounds = array<i64: 1, 4, 4, 9, 9>}, {transform_indices = @transform_1, window_bounds = array<i64: 208>}, {transform_indices = @transform_2, window_bounds = array<i64: 1, 8, 8, 8>}]} {
    %0 = tpu.iota {dimensions = array<i32: 0>} : vector<9x9xi32>
    %1 = tpu.iota {dimensions = array<i32: 1>} : vector<9x9xi32>
    %c1_i32 = arith.constant 1 : i32
    %2 = vector.broadcast %c1_i32 : i32 to vector<9x9xi32>
    %3 = arith.cmpi sge, %0, %2 : vector<9x9xi32>
    %c1_i32_0 = arith.constant 1 : i32
    %4 = vector.broadcast %c1_i32_0 : i32 to vector<9x9xi32>
    %5 = arith.cmpi sge, %1, %4 : vector<9x9xi32>
    %6 = arith.andi %3, %5 : vector<9x9xi1>
    %c1_i32_1 = arith.constant 1 : i32
    %7 = vector.broadcast %c1_i32_1 : i32 to vector<9x9xi32>
    %8 = arith.cmpi sge, %0, %7 : vector<9x9xi32>
    %c7_i32 = arith.constant 7 : i32
    %9 = vector.broadcast %c7_i32 : i32 to vector<9x9xi32>
    %10 = arith.cmpi sle, %1, %9 : vector<9x9xi32>
    %11 = arith.andi %8, %10 : vector<9x9xi1>
    %c7_i32_2 = arith.constant 7 : i32
    %12 = vector.broadcast %c7_i32_2 : i32 to vector<9x9xi32>
    %13 = arith.cmpi sle, %0, %12 : vector<9x9xi32>
    %c1_i32_3 = arith.constant 1 : i32
    %14 = vector.broadcast %c1_i32_3 : i32 to vector<9x9xi32>
    %15 = arith.cmpi sge, %1, %14 : vector<9x9xi32>
    %16 = arith.andi %13, %15 : vector<9x9xi1>
    %c7_i32_4 = arith.constant 7 : i32
    %17 = vector.broadcast %c7_i32_4 : i32 to vector<9x9xi32>
    %18 = arith.cmpi sle, %0, %17 : vector<9x9xi32>
    %c7_i32_5 = arith.constant 7 : i32
    %19 = vector.broadcast %c7_i32_5 : i32 to vector<9x9xi32>
    %20 = arith.cmpi sle, %1, %19 : vector<9x9xi32>
    %21 = arith.andi %18, %20 : vector<9x9xi1>
    %c32 = arith.constant 32 : index
    %22 = memref.load %arg2[%c32] : memref<208xf32, #tpu.memory_space<smem>>
    %c40 = arith.constant 40 : index
    %23 = memref.load %arg2[%c40] : memref<208xf32, #tpu.memory_space<smem>>
    %c120 = arith.constant 120 : index
    %24 = memref.load %arg2[%c120] : memref<208xf32, #tpu.memory_space<smem>>
    %c128 = arith.constant 128 : index
    %25 = memref.load %arg2[%c128] : memref<208xf32, #tpu.memory_space<smem>>
    %c0 = arith.constant 0 : index
    %c0_6 = arith.constant 0 : index
    %c0_7 = arith.constant 0 : index
    %c0_8 = arith.constant 0 : index
    %c0_9 = arith.constant 0 : index
    %26 = vector.load %arg1[%c0, %c0_6, %c0_7, %c0_8, %c0_9] : memref<1x4x4x9x9xf32, #tpu.memory_space<vmem>>, vector<1x1x1x9x9xf32>
    %27 = vector.shape_cast %26 : vector<1x1x1x9x9xf32> to vector<9x9xf32>
    %c0_10 = arith.constant 0 : index
    %28 = memref.load %arg2[%c0_10] : memref<208xf32, #tpu.memory_space<smem>>
    %29 = vector.broadcast %28 : f32 to vector<9x9xf32>
    %30 = arith.mulf %27, %29 : vector<9x9xf32>
    %c0_11 = arith.constant 0 : index
    %c0_12 = arith.constant 0 : index
    %c1 = arith.constant 1 : index
    %c0_13 = arith.constant 0 : index
    %c0_14 = arith.constant 0 : index
    %31 = vector.load %arg1[%c0_11, %c0_12, %c1, %c0_13, %c0_14] : memref<1x4x4x9x9xf32, #tpu.memory_space<vmem>>, vector<1x1x1x9x9xf32>
    %32 = vector.shape_cast %31 : vector<1x1x1x9x9xf32> to vector<9x9xf32>
    %c8 = arith.constant 8 : index
    %33 = memref.load %arg2[%c8] : memref<208xf32, #tpu.memory_space<smem>>
    %34 = vector.broadcast %33 : f32 to vector<9x9xf32>
    %35 = arith.mulf %32, %34 : vector<9x9xf32>
    %36 = arith.addf %30, %35 : vector<9x9xf32>
    %c0_15 = arith.constant 0 : index
    %c0_16 = arith.constant 0 : index
    %c2 = arith.constant 2 : index
    %c0_17 = arith.constant 0 : index
    %c0_18 = arith.constant 0 : index
    %37 = vector.load %arg1[%c0_15, %c0_16, %c2, %c0_17, %c0_18] : memref<1x4x4x9x9xf32, #tpu.memory_space<vmem>>, vector<1x1x1x9x9xf32>
    %38 = vector.shape_cast %37 : vector<1x1x1x9x9xf32> to vector<9x9xf32>
    %c16 = arith.constant 16 : index
    %39 = memref.load %arg2[%c16] : memref<208xf32, #tpu.memory_space<smem>>
    %40 = vector.broadcast %39 : f32 to vector<9x9xf32>
    %41 = arith.mulf %38, %40 : vector<9x9xf32>
    %42 = arith.addf %36, %41 : vector<9x9xf32>
    %c0_19 = arith.constant 0 : index
    %c0_20 = arith.constant 0 : index
    %c3 = arith.constant 3 : index
    %c0_21 = arith.constant 0 : index
    %c0_22 = arith.constant 0 : index
    %43 = vector.load %arg1[%c0_19, %c0_20, %c3, %c0_21, %c0_22] : memref<1x4x4x9x9xf32, #tpu.memory_space<vmem>>, vector<1x1x1x9x9xf32>
    %44 = vector.shape_cast %43 : vector<1x1x1x9x9xf32> to vector<9x9xf32>
    %c24 = arith.constant 24 : index
    %45 = memref.load %arg2[%c24] : memref<208xf32, #tpu.memory_space<smem>>
    %46 = vector.broadcast %45 : f32 to vector<9x9xf32>
    %47 = arith.mulf %44, %46 : vector<9x9xf32>
    %48 = arith.addf %42, %47 : vector<9x9xf32>
    %49 = vector.broadcast %22 : f32 to vector<9x9xf32>
    %50 = arith.addf %48, %49 : vector<9x9xf32>
    %cst = arith.constant 0.000000e+00 : f32
    %51 = vector.broadcast %cst : f32 to vector<9x9xf32>
    %52 = arith.cmpf oge, %50, %51 : vector<9x9xf32>
    %53 = vector.broadcast %23 : f32 to vector<9x9xf32>
    %54 = arith.mulf %53, %50 : vector<9x9xf32>
    %55 = arith.select %52, %50, %54 : vector<9x9xi1>, vector<9x9xf32>
    %cst_23 = arith.constant 0.000000e+00 : f32
    %56 = vector.broadcast %cst_23 : f32 to vector<9x9xf32>
    %57 = arith.select %6, %55, %56 : vector<9x9xi1>, vector<9x9xf32>
    %c0_24 = arith.constant 0 : index
    %c1_25 = arith.constant 1 : index
    %c0_26 = arith.constant 0 : index
    %c0_27 = arith.constant 0 : index
    %c0_28 = arith.constant 0 : index
    %58 = vector.load %arg1[%c0_24, %c1_25, %c0_26, %c0_27, %c0_28] : memref<1x4x4x9x9xf32, #tpu.memory_space<vmem>>, vector<1x1x1x9x9xf32>
    %59 = vector.shape_cast %58 : vector<1x1x1x9x9xf32> to vector<9x9xf32>
    %c0_29 = arith.constant 0 : index
    %60 = memref.load %arg2[%c0_29] : memref<208xf32, #tpu.memory_space<smem>>
    %61 = vector.broadcast %60 : f32 to vector<9x9xf32>
    %62 = arith.mulf %59, %61 : vector<9x9xf32>
    %c0_30 = arith.constant 0 : index
    %c1_31 = arith.constant 1 : index
    %c1_32 = arith.constant 1 : index
    %c0_33 = arith.constant 0 : index
    %c0_34 = arith.constant 0 : index
    %63 = vector.load %arg1[%c0_30, %c1_31, %c1_32, %c0_33, %c0_34] : memref<1x4x4x9x9xf32, #tpu.memory_space<vmem>>, vector<1x1x1x9x9xf32>
    %64 = vector.shape_cast %63 : vector<1x1x1x9x9xf32> to vector<9x9xf32>
    %c8_35 = arith.constant 8 : index
    %65 = memref.load %arg2[%c8_35] : memref<208xf32, #tpu.memory_space<smem>>
    %66 = vector.broadcast %65 : f32 to vector<9x9xf32>
    %67 = arith.mulf %64, %66 : vector<9x9xf32>
    %68 = arith.addf %62, %67 : vector<9x9xf32>
    %c0_36 = arith.constant 0 : index
    %c1_37 = arith.constant 1 : index
    %c2_38 = arith.constant 2 : index
    %c0_39 = arith.constant 0 : index
    %c0_40 = arith.constant 0 : index
    %69 = vector.load %arg1[%c0_36, %c1_37, %c2_38, %c0_39, %c0_40] : memref<1x4x4x9x9xf32, #tpu.memory_space<vmem>>, vector<1x1x1x9x9xf32>
    %70 = vector.shape_cast %69 : vector<1x1x1x9x9xf32> to vector<9x9xf32>
    %c16_41 = arith.constant 16 : index
    %71 = memref.load %arg2[%c16_41] : memref<208xf32, #tpu.memory_space<smem>>
    %72 = vector.broadcast %71 : f32 to vector<9x9xf32>
    %73 = arith.mulf %70, %72 : vector<9x9xf32>
    %74 = arith.addf %68, %73 : vector<9x9xf32>
    %c0_42 = arith.constant 0 : index
    %c1_43 = arith.constant 1 : index
    %c3_44 = arith.constant 3 : index
    %c0_45 = arith.constant 0 : index
    %c0_46 = arith.constant 0 : index
    %75 = vector.load %arg1[%c0_42, %c1_43, %c3_44, %c0_45, %c0_46] : memref<1x4x4x9x9xf32, #tpu.memory_space<vmem>>, vector<1x1x1x9x9xf32>
    %76 = vector.shape_cast %75 : vector<1x1x1x9x9xf32> to vector<9x9xf32>
    %c24_47 = arith.constant 24 : index
    %77 = memref.load %arg2[%c24_47] : memref<208xf32, #tpu.memory_space<smem>>
    %78 = vector.broadcast %77 : f32 to vector<9x9xf32>
    %79 = arith.mulf %76, %78 : vector<9x9xf32>
    %80 = arith.addf %74, %79 : vector<9x9xf32>
    %81 = vector.broadcast %22 : f32 to vector<9x9xf32>
    %82 = arith.addf %80, %81 : vector<9x9xf32>
    %cst_48 = arith.constant 0.000000e+00 : f32
    %83 = vector.broadcast %cst_48 : f32 to vector<9x9xf32>
    %84 = arith.cmpf oge, %82, %83 : vector<9x9xf32>
    %85 = vector.broadcast %23 : f32 to vector<9x9xf32>
    %86 = arith.mulf %85, %82 : vector<9x9xf32>
    %87 = arith.select %84, %82, %86 : vector<9x9xi1>, vector<9x9xf32>
    %cst_49 = arith.constant 0.000000e+00 : f32
    %88 = vector.broadcast %cst_49 : f32 to vector<9x9xf32>
    %89 = arith.select %11, %87, %88 : vector<9x9xi1>, vector<9x9xf32>
    %c0_50 = arith.constant 0 : index
    %c2_51 = arith.constant 2 : index
    %c0_52 = arith.constant 0 : index
    %c0_53 = arith.constant 0 : index
    %c0_54 = arith.constant 0 : index
    %90 = vector.load %arg1[%c0_50, %c2_51, %c0_52, %c0_53, %c0_54] : memref<1x4x4x9x9xf32, #tpu.memory_space<vmem>>, vector<1x1x1x9x9xf32>
    %91 = vector.shape_cast %90 : vector<1x1x1x9x9xf32> to vector<9x9xf32>
    %c0_55 = arith.constant 0 : index
    %92 = memref.load %arg2[%c0_55] : memref<208xf32, #tpu.memory_space<smem>>
    %93 = vector.broadcast %92 : f32 to vector<9x9xf32>
    %94 = arith.mulf %91, %93 : vector<9x9xf32>
    %c0_56 = arith.constant 0 : index
    %c2_57 = arith.constant 2 : index
    %c1_58 = arith.constant 1 : index
    %c0_59 = arith.constant 0 : index
    %c0_60 = arith.constant 0 : index
    %95 = vector.load %arg1[%c0_56, %c2_57, %c1_58, %c0_59, %c0_60] : memref<1x4x4x9x9xf32, #tpu.memory_space<vmem>>, vector<1x1x1x9x9xf32>
    %96 = vector.shape_cast %95 : vector<1x1x1x9x9xf32> to vector<9x9xf32>
    %c8_61 = arith.constant 8 : index
    %97 = memref.load %arg2[%c8_61] : memref<208xf32, #tpu.memory_space<smem>>
    %98 = vector.broadcast %97 : f32 to vector<9x9xf32>
    %99 = arith.mulf %96, %98 : vector<9x9xf32>
    %100 = arith.addf %94, %99 : vector<9x9xf32>
    %c0_62 = arith.constant 0 : index
    %c2_63 = arith.constant 2 : index
    %c2_64 = arith.constant 2 : index
    %c0_65 = arith.constant 0 : index
    %c0_66 = arith.constant 0 : index
    %101 = vector.load %arg1[%c0_62, %c2_63, %c2_64, %c0_65, %c0_66] : memref<1x4x4x9x9xf32, #tpu.memory_space<vmem>>, vector<1x1x1x9x9xf32>
    %102 = vector.shape_cast %101 : vector<1x1x1x9x9xf32> to vector<9x9xf32>
    %c16_67 = arith.constant 16 : index
    %103 = memref.load %arg2[%c16_67] : memref<208xf32, #tpu.memory_space<smem>>
    %104 = vector.broadcast %103 : f32 to vector<9x9xf32>
    %105 = arith.mulf %102, %104 : vector<9x9xf32>
    %106 = arith.addf %100, %105 : vector<9x9xf32>
    %c0_68 = arith.constant 0 : index
    %c2_69 = arith.constant 2 : index
    %c3_70 = arith.constant 3 : index
    %c0_71 = arith.constant 0 : index
    %c0_72 = arith.constant 0 : index
    %107 = vector.load %arg1[%c0_68, %c2_69, %c3_70, %c0_71, %c0_72] : memref<1x4x4x9x9xf32, #tpu.memory_space<vmem>>, vector<1x1x1x9x9xf32>
    %108 = vector.shape_cast %107 : vector<1x1x1x9x9xf32> to vector<9x9xf32>
    %c24_73 = arith.constant 24 : index
    %109 = memref.load %arg2[%c24_73] : memref<208xf32, #tpu.memory_space<smem>>
    %110 = vector.broadcast %109 : f32 to vector<9x9xf32>
    %111 = arith.mulf %108, %110 : vector<9x9xf32>
    %112 = arith.addf %106, %111 : vector<9x9xf32>
    %113 = vector.broadcast %22 : f32 to vector<9x9xf32>
    %114 = arith.addf %112, %113 : vector<9x9xf32>
    %cst_74 = arith.constant 0.000000e+00 : f32
    %115 = vector.broadcast %cst_74 : f32 to vector<9x9xf32>
    %116 = arith.cmpf oge, %114, %115 : vector<9x9xf32>
    %117 = vector.broadcast %23 : f32 to vector<9x9xf32>
    %118 = arith.mulf %117, %114 : vector<9x9xf32>
    %119 = arith.select %116, %114, %118 : vector<9x9xi1>, vector<9x9xf32>
    %cst_75 = arith.constant 0.000000e+00 : f32
    %120 = vector.broadcast %cst_75 : f32 to vector<9x9xf32>
    %121 = arith.select %16, %119, %120 : vector<9x9xi1>, vector<9x9xf32>
    %c0_76 = arith.constant 0 : index
    %c3_77 = arith.constant 3 : index
    %c0_78 = arith.constant 0 : index
    %c0_79 = arith.constant 0 : index
    %c0_80 = arith.constant 0 : index
    %122 = vector.load %arg1[%c0_76, %c3_77, %c0_78, %c0_79, %c0_80] : memref<1x4x4x9x9xf32, #tpu.memory_space<vmem>>, vector<1x1x1x9x9xf32>
    %123 = vector.shape_cast %122 : vector<1x1x1x9x9xf32> to vector<9x9xf32>
    %c0_81 = arith.constant 0 : index
    %124 = memref.load %arg2[%c0_81] : memref<208xf32, #tpu.memory_space<smem>>
    %125 = vector.broadcast %124 : f32 to vector<9x9xf32>
    %126 = arith.mulf %123, %125 : vector<9x9xf32>
    %c0_82 = arith.constant 0 : index
    %c3_83 = arith.constant 3 : index
    %c1_84 = arith.constant 1 : index
    %c0_85 = arith.constant 0 : index
    %c0_86 = arith.constant 0 : index
    %127 = vector.load %arg1[%c0_82, %c3_83, %c1_84, %c0_85, %c0_86] : memref<1x4x4x9x9xf32, #tpu.memory_space<vmem>>, vector<1x1x1x9x9xf32>
    %128 = vector.shape_cast %127 : vector<1x1x1x9x9xf32> to vector<9x9xf32>
    %c8_87 = arith.constant 8 : index
    %129 = memref.load %arg2[%c8_87] : memref<208xf32, #tpu.memory_space<smem>>
    %130 = vector.broadcast %129 : f32 to vector<9x9xf32>
    %131 = arith.mulf %128, %130 : vector<9x9xf32>
    %132 = arith.addf %126, %131 : vector<9x9xf32>
    %c0_88 = arith.constant 0 : index
    %c3_89 = arith.constant 3 : index
    %c2_90 = arith.constant 2 : index
    %c0_91 = arith.constant 0 : index
    %c0_92 = arith.constant 0 : index
    %133 = vector.load %arg1[%c0_88, %c3_89, %c2_90, %c0_91, %c0_92] : memref<1x4x4x9x9xf32, #tpu.memory_space<vmem>>, vector<1x1x1x9x9xf32>
    %134 = vector.shape_cast %133 : vector<1x1x1x9x9xf32> to vector<9x9xf32>
    %c16_93 = arith.constant 16 : index
    %135 = memref.load %arg2[%c16_93] : memref<208xf32, #tpu.memory_space<smem>>
    %136 = vector.broadcast %135 : f32 to vector<9x9xf32>
    %137 = arith.mulf %134, %136 : vector<9x9xf32>
    %138 = arith.addf %132, %137 : vector<9x9xf32>
    %c0_94 = arith.constant 0 : index
    %c3_95 = arith.constant 3 : index
    %c3_96 = arith.constant 3 : index
    %c0_97 = arith.constant 0 : index
    %c0_98 = arith.constant 0 : index
    %139 = vector.load %arg1[%c0_94, %c3_95, %c3_96, %c0_97, %c0_98] : memref<1x4x4x9x9xf32, #tpu.memory_space<vmem>>, vector<1x1x1x9x9xf32>
    %140 = vector.shape_cast %139 : vector<1x1x1x9x9xf32> to vector<9x9xf32>
    %c24_99 = arith.constant 24 : index
    %141 = memref.load %arg2[%c24_99] : memref<208xf32, #tpu.memory_space<smem>>
    %142 = vector.broadcast %141 : f32 to vector<9x9xf32>
    %143 = arith.mulf %140, %142 : vector<9x9xf32>
    %144 = arith.addf %138, %143 : vector<9x9xf32>
    %145 = vector.broadcast %22 : f32 to vector<9x9xf32>
    %146 = arith.addf %144, %145 : vector<9x9xf32>
    %cst_100 = arith.constant 0.000000e+00 : f32
    %147 = vector.broadcast %cst_100 : f32 to vector<9x9xf32>
    %148 = arith.cmpf oge, %146, %147 : vector<9x9xf32>
    %149 = vector.broadcast %23 : f32 to vector<9x9xf32>
    %150 = arith.mulf %149, %146 : vector<9x9xf32>
    %151 = arith.select %148, %146, %150 : vector<9x9xi1>, vector<9x9xf32>
    %cst_101 = arith.constant 0.000000e+00 : f32
    %152 = vector.broadcast %cst_101 : f32 to vector<9x9xf32>
    %153 = arith.select %21, %151, %152 : vector<9x9xi1>, vector<9x9xf32>
    %154 = vector.extract_strided_slice %57 {offsets = [0, 0], sizes = [8, 8], strides = [1, 1]} : vector<9x9xf32> to vector<8x8xf32>
    %c48 = arith.constant 48 : index
    %155 = memref.load %arg2[%c48] : memref<208xf32, #tpu.memory_space<smem>>
    %156 = vector.broadcast %155 : f32 to vector<8x8xf32>
    %157 = arith.mulf %154, %156 : vector<8x8xf32>
    %158 = vector.extract_strided_slice %89 {offsets = [0, 0], sizes = [8, 8], strides = [1, 1]} : vector<9x9xf32> to vector<8x8xf32>
    %c49 = arith.constant 49 : index
    %159 = memref.load %arg2[%c49] : memref<208xf32, #tpu.memory_space<smem>>
    %160 = vector.broadcast %159 : f32 to vector<8x8xf32>
    %161 = arith.mulf %158, %160 : vector<8x8xf32>
    %162 = arith.addf %157, %161 : vector<8x8xf32>
    %163 = vector.extract_strided_slice %57 {offsets = [0, 1], sizes = [8, 8], strides = [1, 1]} : vector<9x9xf32> to vector<8x8xf32>
    %c50 = arith.constant 50 : index
    %164 = memref.load %arg2[%c50] : memref<208xf32, #tpu.memory_space<smem>>
    %165 = vector.broadcast %164 : f32 to vector<8x8xf32>
    %166 = arith.mulf %163, %165 : vector<8x8xf32>
    %167 = arith.addf %162, %166 : vector<8x8xf32>
    %168 = vector.extract_strided_slice %121 {offsets = [0, 0], sizes = [8, 8], strides = [1, 1]} : vector<9x9xf32> to vector<8x8xf32>
    %c51 = arith.constant 51 : index
    %169 = memref.load %arg2[%c51] : memref<208xf32, #tpu.memory_space<smem>>
    %170 = vector.broadcast %169 : f32 to vector<8x8xf32>
    %171 = arith.mulf %168, %170 : vector<8x8xf32>
    %172 = arith.addf %167, %171 : vector<8x8xf32>
    %173 = vector.extract_strided_slice %153 {offsets = [0, 0], sizes = [8, 8], strides = [1, 1]} : vector<9x9xf32> to vector<8x8xf32>
    %c52 = arith.constant 52 : index
    %174 = memref.load %arg2[%c52] : memref<208xf32, #tpu.memory_space<smem>>
    %175 = vector.broadcast %174 : f32 to vector<8x8xf32>
    %176 = arith.mulf %173, %175 : vector<8x8xf32>
    %177 = arith.addf %172, %176 : vector<8x8xf32>
    %178 = vector.extract_strided_slice %121 {offsets = [0, 1], sizes = [8, 8], strides = [1, 1]} : vector<9x9xf32> to vector<8x8xf32>
    %c53 = arith.constant 53 : index
    %179 = memref.load %arg2[%c53] : memref<208xf32, #tpu.memory_space<smem>>
    %180 = vector.broadcast %179 : f32 to vector<8x8xf32>
    %181 = arith.mulf %178, %180 : vector<8x8xf32>
    %182 = arith.addf %177, %181 : vector<8x8xf32>
    %183 = vector.extract_strided_slice %57 {offsets = [1, 0], sizes = [8, 8], strides = [1, 1]} : vector<9x9xf32> to vector<8x8xf32>
    %c54 = arith.constant 54 : index
    %184 = memref.load %arg2[%c54] : memref<208xf32, #tpu.memory_space<smem>>
    %185 = vector.broadcast %184 : f32 to vector<8x8xf32>
    %186 = arith.mulf %183, %185 : vector<8x8xf32>
    %187 = arith.addf %182, %186 : vector<8x8xf32>
    %188 = vector.extract_strided_slice %89 {offsets = [1, 0], sizes = [8, 8], strides = [1, 1]} : vector<9x9xf32> to vector<8x8xf32>
    %c55 = arith.constant 55 : index
    %189 = memref.load %arg2[%c55] : memref<208xf32, #tpu.memory_space<smem>>
    %190 = vector.broadcast %189 : f32 to vector<8x8xf32>
    %191 = arith.mulf %188, %190 : vector<8x8xf32>
    %192 = arith.addf %187, %191 : vector<8x8xf32>
    %193 = vector.extract_strided_slice %57 {offsets = [1, 1], sizes = [8, 8], strides = [1, 1]} : vector<9x9xf32> to vector<8x8xf32>
    %c56 = arith.constant 56 : index
    %194 = memref.load %arg2[%c56] : memref<208xf32, #tpu.memory_space<smem>>
    %195 = vector.broadcast %194 : f32 to vector<8x8xf32>
    %196 = arith.mulf %193, %195 : vector<8x8xf32>
    %197 = arith.addf %192, %196 : vector<8x8xf32>
    %198 = vector.broadcast %24 : f32 to vector<8x8xf32>
    %199 = arith.addf %197, %198 : vector<8x8xf32>
    %cst_102 = arith.constant 0.000000e+00 : f32
    %200 = vector.broadcast %cst_102 : f32 to vector<8x8xf32>
    %201 = arith.cmpf oge, %199, %200 : vector<8x8xf32>
    %202 = vector.broadcast %25 : f32 to vector<8x8xf32>
    %203 = arith.mulf %202, %199 : vector<8x8xf32>
    %204 = arith.select %201, %199, %203 : vector<8x8xi1>, vector<8x8xf32>
    %c136 = arith.constant 136 : index
    %205 = memref.load %arg2[%c136] : memref<208xf32, #tpu.memory_space<smem>>
    %206 = vector.broadcast %205 : f32 to vector<8x8xf32>
    %207 = arith.mulf %204, %206 : vector<8x8xf32>
    %c137 = arith.constant 137 : index
    %208 = memref.load %arg2[%c137] : memref<208xf32, #tpu.memory_space<smem>>
    %209 = vector.broadcast %208 : f32 to vector<8x8xf32>
    %210 = arith.mulf %204, %209 : vector<8x8xf32>
    %c138 = arith.constant 138 : index
    %211 = memref.load %arg2[%c138] : memref<208xf32, #tpu.memory_space<smem>>
    %212 = vector.broadcast %211 : f32 to vector<8x8xf32>
    %213 = arith.mulf %204, %212 : vector<8x8xf32>
    %c139 = arith.constant 139 : index
    %214 = memref.load %arg2[%c139] : memref<208xf32, #tpu.memory_space<smem>>
    %215 = vector.broadcast %214 : f32 to vector<8x8xf32>
    %216 = arith.mulf %204, %215 : vector<8x8xf32>
    %c140 = arith.constant 140 : index
    %217 = memref.load %arg2[%c140] : memref<208xf32, #tpu.memory_space<smem>>
    %218 = vector.broadcast %217 : f32 to vector<8x8xf32>
    %219 = arith.mulf %204, %218 : vector<8x8xf32>
    %c141 = arith.constant 141 : index
    %220 = memref.load %arg2[%c141] : memref<208xf32, #tpu.memory_space<smem>>
    %221 = vector.broadcast %220 : f32 to vector<8x8xf32>
    %222 = arith.mulf %204, %221 : vector<8x8xf32>
    %c142 = arith.constant 142 : index
    %223 = memref.load %arg2[%c142] : memref<208xf32, #tpu.memory_space<smem>>
    %224 = vector.broadcast %223 : f32 to vector<8x8xf32>
    %225 = arith.mulf %204, %224 : vector<8x8xf32>
    %c143 = arith.constant 143 : index
    %226 = memref.load %arg2[%c143] : memref<208xf32, #tpu.memory_space<smem>>
    %227 = vector.broadcast %226 : f32 to vector<8x8xf32>
    %228 = arith.mulf %204, %227 : vector<8x8xf32>
    %c33 = arith.constant 33 : index
    %229 = memref.load %arg2[%c33] : memref<208xf32, #tpu.memory_space<smem>>
    %c41 = arith.constant 41 : index
    %230 = memref.load %arg2[%c41] : memref<208xf32, #tpu.memory_space<smem>>
    %c121 = arith.constant 121 : index
    %231 = memref.load %arg2[%c121] : memref<208xf32, #tpu.memory_space<smem>>
    %c129 = arith.constant 129 : index
    %232 = memref.load %arg2[%c129] : memref<208xf32, #tpu.memory_space<smem>>
    %c0_103 = arith.constant 0 : index
    %c0_104 = arith.constant 0 : index
    %c0_105 = arith.constant 0 : index
    %c0_106 = arith.constant 0 : index
    %c0_107 = arith.constant 0 : index
    %233 = vector.load %arg1[%c0_103, %c0_104, %c0_105, %c0_106, %c0_107] : memref<1x4x4x9x9xf32, #tpu.memory_space<vmem>>, vector<1x1x1x9x9xf32>
    %234 = vector.shape_cast %233 : vector<1x1x1x9x9xf32> to vector<9x9xf32>
    %c1_108 = arith.constant 1 : index
    %235 = memref.load %arg2[%c1_108] : memref<208xf32, #tpu.memory_space<smem>>
    %236 = vector.broadcast %235 : f32 to vector<9x9xf32>
    %237 = arith.mulf %234, %236 : vector<9x9xf32>
    %c0_109 = arith.constant 0 : index
    %c0_110 = arith.constant 0 : index
    %c1_111 = arith.constant 1 : index
    %c0_112 = arith.constant 0 : index
    %c0_113 = arith.constant 0 : index
    %238 = vector.load %arg1[%c0_109, %c0_110, %c1_111, %c0_112, %c0_113] : memref<1x4x4x9x9xf32, #tpu.memory_space<vmem>>, vector<1x1x1x9x9xf32>
    %239 = vector.shape_cast %238 : vector<1x1x1x9x9xf32> to vector<9x9xf32>
    %c9 = arith.constant 9 : index
    %240 = memref.load %arg2[%c9] : memref<208xf32, #tpu.memory_space<smem>>
    %241 = vector.broadcast %240 : f32 to vector<9x9xf32>
    %242 = arith.mulf %239, %241 : vector<9x9xf32>
    %243 = arith.addf %237, %242 : vector<9x9xf32>
    %c0_114 = arith.constant 0 : index
    %c0_115 = arith.constant 0 : index
    %c2_116 = arith.constant 2 : index
    %c0_117 = arith.constant 0 : index
    %c0_118 = arith.constant 0 : index
    %244 = vector.load %arg1[%c0_114, %c0_115, %c2_116, %c0_117, %c0_118] : memref<1x4x4x9x9xf32, #tpu.memory_space<vmem>>, vector<1x1x1x9x9xf32>
    %245 = vector.shape_cast %244 : vector<1x1x1x9x9xf32> to vector<9x9xf32>
    %c17 = arith.constant 17 : index
    %246 = memref.load %arg2[%c17] : memref<208xf32, #tpu.memory_space<smem>>
    %247 = vector.broadcast %246 : f32 to vector<9x9xf32>
    %248 = arith.mulf %245, %247 : vector<9x9xf32>
    %249 = arith.addf %243, %248 : vector<9x9xf32>
    %c0_119 = arith.constant 0 : index
    %c0_120 = arith.constant 0 : index
    %c3_121 = arith.constant 3 : index
    %c0_122 = arith.constant 0 : index
    %c0_123 = arith.constant 0 : index
    %250 = vector.load %arg1[%c0_119, %c0_120, %c3_121, %c0_122, %c0_123] : memref<1x4x4x9x9xf32, #tpu.memory_space<vmem>>, vector<1x1x1x9x9xf32>
    %251 = vector.shape_cast %250 : vector<1x1x1x9x9xf32> to vector<9x9xf32>
    %c25 = arith.constant 25 : index
    %252 = memref.load %arg2[%c25] : memref<208xf32, #tpu.memory_space<smem>>
    %253 = vector.broadcast %252 : f32 to vector<9x9xf32>
    %254 = arith.mulf %251, %253 : vector<9x9xf32>
    %255 = arith.addf %249, %254 : vector<9x9xf32>
    %256 = vector.broadcast %229 : f32 to vector<9x9xf32>
    %257 = arith.addf %255, %256 : vector<9x9xf32>
    %cst_124 = arith.constant 0.000000e+00 : f32
    %258 = vector.broadcast %cst_124 : f32 to vector<9x9xf32>
    %259 = arith.cmpf oge, %257, %258 : vector<9x9xf32>
    %260 = vector.broadcast %230 : f32 to vector<9x9xf32>
    %261 = arith.mulf %260, %257 : vector<9x9xf32>
    %262 = arith.select %259, %257, %261 : vector<9x9xi1>, vector<9x9xf32>
    %cst_125 = arith.constant 0.000000e+00 : f32
    %263 = vector.broadcast %cst_125 : f32 to vector<9x9xf32>
    %264 = arith.select %6, %262, %263 : vector<9x9xi1>, vector<9x9xf32>
    %c0_126 = arith.constant 0 : index
    %c1_127 = arith.constant 1 : index
    %c0_128 = arith.constant 0 : index
    %c0_129 = arith.constant 0 : index
    %c0_130 = arith.constant 0 : index
    %265 = vector.load %arg1[%c0_126, %c1_127, %c0_128, %c0_129, %c0_130] : memref<1x4x4x9x9xf32, #tpu.memory_space<vmem>>, vector<1x1x1x9x9xf32>
    %266 = vector.shape_cast %265 : vector<1x1x1x9x9xf32> to vector<9x9xf32>
    %c1_131 = arith.constant 1 : index
    %267 = memref.load %arg2[%c1_131] : memref<208xf32, #tpu.memory_space<smem>>
    %268 = vector.broadcast %267 : f32 to vector<9x9xf32>
    %269 = arith.mulf %266, %268 : vector<9x9xf32>
    %c0_132 = arith.constant 0 : index
    %c1_133 = arith.constant 1 : index
    %c1_134 = arith.constant 1 : index
    %c0_135 = arith.constant 0 : index
    %c0_136 = arith.constant 0 : index
    %270 = vector.load %arg1[%c0_132, %c1_133, %c1_134, %c0_135, %c0_136] : memref<1x4x4x9x9xf32, #tpu.memory_space<vmem>>, vector<1x1x1x9x9xf32>
    %271 = vector.shape_cast %270 : vector<1x1x1x9x9xf32> to vector<9x9xf32>
    %c9_137 = arith.constant 9 : index
    %272 = memref.load %arg2[%c9_137] : memref<208xf32, #tpu.memory_space<smem>>
    %273 = vector.broadcast %272 : f32 to vector<9x9xf32>
    %274 = arith.mulf %271, %273 : vector<9x9xf32>
    %275 = arith.addf %269, %274 : vector<9x9xf32>
    %c0_138 = arith.constant 0 : index
    %c1_139 = arith.constant 1 : index
    %c2_140 = arith.constant 2 : index
    %c0_141 = arith.constant 0 : index
    %c0_142 = arith.constant 0 : index
    %276 = vector.load %arg1[%c0_138, %c1_139, %c2_140, %c0_141, %c0_142] : memref<1x4x4x9x9xf32, #tpu.memory_space<vmem>>, vector<1x1x1x9x9xf32>
    %277 = vector.shape_cast %276 : vector<1x1x1x9x9xf32> to vector<9x9xf32>
    %c17_143 = arith.constant 17 : index
    %278 = memref.load %arg2[%c17_143] : memref<208xf32, #tpu.memory_space<smem>>
    %279 = vector.broadcast %278 : f32 to vector<9x9xf32>
    %280 = arith.mulf %277, %279 : vector<9x9xf32>
    %281 = arith.addf %275, %280 : vector<9x9xf32>
    %c0_144 = arith.constant 0 : index
    %c1_145 = arith.constant 1 : index
    %c3_146 = arith.constant 3 : index
    %c0_147 = arith.constant 0 : index
    %c0_148 = arith.constant 0 : index
    %282 = vector.load %arg1[%c0_144, %c1_145, %c3_146, %c0_147, %c0_148] : memref<1x4x4x9x9xf32, #tpu.memory_space<vmem>>, vector<1x1x1x9x9xf32>
    %283 = vector.shape_cast %282 : vector<1x1x1x9x9xf32> to vector<9x9xf32>
    %c25_149 = arith.constant 25 : index
    %284 = memref.load %arg2[%c25_149] : memref<208xf32, #tpu.memory_space<smem>>
    %285 = vector.broadcast %284 : f32 to vector<9x9xf32>
    %286 = arith.mulf %283, %285 : vector<9x9xf32>
    %287 = arith.addf %281, %286 : vector<9x9xf32>
    %288 = vector.broadcast %229 : f32 to vector<9x9xf32>
    %289 = arith.addf %287, %288 : vector<9x9xf32>
    %cst_150 = arith.constant 0.000000e+00 : f32
    %290 = vector.broadcast %cst_150 : f32 to vector<9x9xf32>
    %291 = arith.cmpf oge, %289, %290 : vector<9x9xf32>
    %292 = vector.broadcast %230 : f32 to vector<9x9xf32>
    %293 = arith.mulf %292, %289 : vector<9x9xf32>
    %294 = arith.select %291, %289, %293 : vector<9x9xi1>, vector<9x9xf32>
    %cst_151 = arith.constant 0.000000e+00 : f32
    %295 = vector.broadcast %cst_151 : f32 to vector<9x9xf32>
    %296 = arith.select %11, %294, %295 : vector<9x9xi1>, vector<9x9xf32>
    %c0_152 = arith.constant 0 : index
    %c2_153 = arith.constant 2 : index
    %c0_154 = arith.constant 0 : index
    %c0_155 = arith.constant 0 : index
    %c0_156 = arith.constant 0 : index
    %297 = vector.load %arg1[%c0_152, %c2_153, %c0_154, %c0_155, %c0_156] : memref<1x4x4x9x9xf32, #tpu.memory_space<vmem>>, vector<1x1x1x9x9xf32>
    %298 = vector.shape_cast %297 : vector<1x1x1x9x9xf32> to vector<9x9xf32>
    %c1_157 = arith.constant 1 : index
    %299 = memref.load %arg2[%c1_157] : memref<208xf32, #tpu.memory_space<smem>>
    %300 = vector.broadcast %299 : f32 to vector<9x9xf32>
    %301 = arith.mulf %298, %300 : vector<9x9xf32>
    %c0_158 = arith.constant 0 : index
    %c2_159 = arith.constant 2 : index
    %c1_160 = arith.constant 1 : index
    %c0_161 = arith.constant 0 : index
    %c0_162 = arith.constant 0 : index
    %302 = vector.load %arg1[%c0_158, %c2_159, %c1_160, %c0_161, %c0_162] : memref<1x4x4x9x9xf32, #tpu.memory_space<vmem>>, vector<1x1x1x9x9xf32>
    %303 = vector.shape_cast %302 : vector<1x1x1x9x9xf32> to vector<9x9xf32>
    %c9_163 = arith.constant 9 : index
    %304 = memref.load %arg2[%c9_163] : memref<208xf32, #tpu.memory_space<smem>>
    %305 = vector.broadcast %304 : f32 to vector<9x9xf32>
    %306 = arith.mulf %303, %305 : vector<9x9xf32>
    %307 = arith.addf %301, %306 : vector<9x9xf32>
    %c0_164 = arith.constant 0 : index
    %c2_165 = arith.constant 2 : index
    %c2_166 = arith.constant 2 : index
    %c0_167 = arith.constant 0 : index
    %c0_168 = arith.constant 0 : index
    %308 = vector.load %arg1[%c0_164, %c2_165, %c2_166, %c0_167, %c0_168] : memref<1x4x4x9x9xf32, #tpu.memory_space<vmem>>, vector<1x1x1x9x9xf32>
    %309 = vector.shape_cast %308 : vector<1x1x1x9x9xf32> to vector<9x9xf32>
    %c17_169 = arith.constant 17 : index
    %310 = memref.load %arg2[%c17_169] : memref<208xf32, #tpu.memory_space<smem>>
    %311 = vector.broadcast %310 : f32 to vector<9x9xf32>
    %312 = arith.mulf %309, %311 : vector<9x9xf32>
    %313 = arith.addf %307, %312 : vector<9x9xf32>
    %c0_170 = arith.constant 0 : index
    %c2_171 = arith.constant 2 : index
    %c3_172 = arith.constant 3 : index
    %c0_173 = arith.constant 0 : index
    %c0_174 = arith.constant 0 : index
    %314 = vector.load %arg1[%c0_170, %c2_171, %c3_172, %c0_173, %c0_174] : memref<1x4x4x9x9xf32, #tpu.memory_space<vmem>>, vector<1x1x1x9x9xf32>
    %315 = vector.shape_cast %314 : vector<1x1x1x9x9xf32> to vector<9x9xf32>
    %c25_175 = arith.constant 25 : index
    %316 = memref.load %arg2[%c25_175] : memref<208xf32, #tpu.memory_space<smem>>
    %317 = vector.broadcast %316 : f32 to vector<9x9xf32>
    %318 = arith.mulf %315, %317 : vector<9x9xf32>
    %319 = arith.addf %313, %318 : vector<9x9xf32>
    %320 = vector.broadcast %229 : f32 to vector<9x9xf32>
    %321 = arith.addf %319, %320 : vector<9x9xf32>
    %cst_176 = arith.constant 0.000000e+00 : f32
    %322 = vector.broadcast %cst_176 : f32 to vector<9x9xf32>
    %323 = arith.cmpf oge, %321, %322 : vector<9x9xf32>
    %324 = vector.broadcast %230 : f32 to vector<9x9xf32>
    %325 = arith.mulf %324, %321 : vector<9x9xf32>
    %326 = arith.select %323, %321, %325 : vector<9x9xi1>, vector<9x9xf32>
    %cst_177 = arith.constant 0.000000e+00 : f32
    %327 = vector.broadcast %cst_177 : f32 to vector<9x9xf32>
    %328 = arith.select %16, %326, %327 : vector<9x9xi1>, vector<9x9xf32>
    %c0_178 = arith.constant 0 : index
    %c3_179 = arith.constant 3 : index
    %c0_180 = arith.constant 0 : index
    %c0_181 = arith.constant 0 : index
    %c0_182 = arith.constant 0 : index
    %329 = vector.load %arg1[%c0_178, %c3_179, %c0_180, %c0_181, %c0_182] : memref<1x4x4x9x9xf32, #tpu.memory_space<vmem>>, vector<1x1x1x9x9xf32>
    %330 = vector.shape_cast %329 : vector<1x1x1x9x9xf32> to vector<9x9xf32>
    %c1_183 = arith.constant 1 : index
    %331 = memref.load %arg2[%c1_183] : memref<208xf32, #tpu.memory_space<smem>>
    %332 = vector.broadcast %331 : f32 to vector<9x9xf32>
    %333 = arith.mulf %330, %332 : vector<9x9xf32>
    %c0_184 = arith.constant 0 : index
    %c3_185 = arith.constant 3 : index
    %c1_186 = arith.constant 1 : index
    %c0_187 = arith.constant 0 : index
    %c0_188 = arith.constant 0 : index
    %334 = vector.load %arg1[%c0_184, %c3_185, %c1_186, %c0_187, %c0_188] : memref<1x4x4x9x9xf32, #tpu.memory_space<vmem>>, vector<1x1x1x9x9xf32>
    %335 = vector.shape_cast %334 : vector<1x1x1x9x9xf32> to vector<9x9xf32>
    %c9_189 = arith.constant 9 : index
    %336 = memref.load %arg2[%c9_189] : memref<208xf32, #tpu.memory_space<smem>>
    %337 = vector.broadcast %336 : f32 to vector<9x9xf32>
    %338 = arith.mulf %335, %337 : vector<9x9xf32>
    %339 = arith.addf %333, %338 : vector<9x9xf32>
    %c0_190 = arith.constant 0 : index
    %c3_191 = arith.constant 3 : index
    %c2_192 = arith.constant 2 : index
    %c0_193 = arith.constant 0 : index
    %c0_194 = arith.constant 0 : index
    %340 = vector.load %arg1[%c0_190, %c3_191, %c2_192, %c0_193, %c0_194] : memref<1x4x4x9x9xf32, #tpu.memory_space<vmem>>, vector<1x1x1x9x9xf32>
    %341 = vector.shape_cast %340 : vector<1x1x1x9x9xf32> to vector<9x9xf32>
    %c17_195 = arith.constant 17 : index
    %342 = memref.load %arg2[%c17_195] : memref<208xf32, #tpu.memory_space<smem>>
    %343 = vector.broadcast %342 : f32 to vector<9x9xf32>
    %344 = arith.mulf %341, %343 : vector<9x9xf32>
    %345 = arith.addf %339, %344 : vector<9x9xf32>
    %c0_196 = arith.constant 0 : index
    %c3_197 = arith.constant 3 : index
    %c3_198 = arith.constant 3 : index
    %c0_199 = arith.constant 0 : index
    %c0_200 = arith.constant 0 : index
    %346 = vector.load %arg1[%c0_196, %c3_197, %c3_198, %c0_199, %c0_200] : memref<1x4x4x9x9xf32, #tpu.memory_space<vmem>>, vector<1x1x1x9x9xf32>
    %347 = vector.shape_cast %346 : vector<1x1x1x9x9xf32> to vector<9x9xf32>
    %c25_201 = arith.constant 25 : index
    %348 = memref.load %arg2[%c25_201] : memref<208xf32, #tpu.memory_space<smem>>
    %349 = vector.broadcast %348 : f32 to vector<9x9xf32>
    %350 = arith.mulf %347, %349 : vector<9x9xf32>
    %351 = arith.addf %345, %350 : vector<9x9xf32>
    %352 = vector.broadcast %229 : f32 to vector<9x9xf32>
    %353 = arith.addf %351, %352 : vector<9x9xf32>
    %cst_202 = arith.constant 0.000000e+00 : f32
    %354 = vector.broadcast %cst_202 : f32 to vector<9x9xf32>
    %355 = arith.cmpf oge, %353, %354 : vector<9x9xf32>
    %356 = vector.broadcast %230 : f32 to vector<9x9xf32>
    %357 = arith.mulf %356, %353 : vector<9x9xf32>
    %358 = arith.select %355, %353, %357 : vector<9x9xi1>, vector<9x9xf32>
    %cst_203 = arith.constant 0.000000e+00 : f32
    %359 = vector.broadcast %cst_203 : f32 to vector<9x9xf32>
    %360 = arith.select %21, %358, %359 : vector<9x9xi1>, vector<9x9xf32>
    %361 = vector.extract_strided_slice %264 {offsets = [0, 0], sizes = [8, 8], strides = [1, 1]} : vector<9x9xf32> to vector<8x8xf32>
    %c57 = arith.constant 57 : index
    %362 = memref.load %arg2[%c57] : memref<208xf32, #tpu.memory_space<smem>>
    %363 = vector.broadcast %362 : f32 to vector<8x8xf32>
    %364 = arith.mulf %361, %363 : vector<8x8xf32>
    %365 = vector.extract_strided_slice %296 {offsets = [0, 0], sizes = [8, 8], strides = [1, 1]} : vector<9x9xf32> to vector<8x8xf32>
    %c58 = arith.constant 58 : index
    %366 = memref.load %arg2[%c58] : memref<208xf32, #tpu.memory_space<smem>>
    %367 = vector.broadcast %366 : f32 to vector<8x8xf32>
    %368 = arith.mulf %365, %367 : vector<8x8xf32>
    %369 = arith.addf %364, %368 : vector<8x8xf32>
    %370 = vector.extract_strided_slice %264 {offsets = [0, 1], sizes = [8, 8], strides = [1, 1]} : vector<9x9xf32> to vector<8x8xf32>
    %c59 = arith.constant 59 : index
    %371 = memref.load %arg2[%c59] : memref<208xf32, #tpu.memory_space<smem>>
    %372 = vector.broadcast %371 : f32 to vector<8x8xf32>
    %373 = arith.mulf %370, %372 : vector<8x8xf32>
    %374 = arith.addf %369, %373 : vector<8x8xf32>
    %375 = vector.extract_strided_slice %328 {offsets = [0, 0], sizes = [8, 8], strides = [1, 1]} : vector<9x9xf32> to vector<8x8xf32>
    %c60 = arith.constant 60 : index
    %376 = memref.load %arg2[%c60] : memref<208xf32, #tpu.memory_space<smem>>
    %377 = vector.broadcast %376 : f32 to vector<8x8xf32>
    %378 = arith.mulf %375, %377 : vector<8x8xf32>
    %379 = arith.addf %374, %378 : vector<8x8xf32>
    %380 = vector.extract_strided_slice %360 {offsets = [0, 0], sizes = [8, 8], strides = [1, 1]} : vector<9x9xf32> to vector<8x8xf32>
    %c61 = arith.constant 61 : index
    %381 = memref.load %arg2[%c61] : memref<208xf32, #tpu.memory_space<smem>>
    %382 = vector.broadcast %381 : f32 to vector<8x8xf32>
    %383 = arith.mulf %380, %382 : vector<8x8xf32>
    %384 = arith.addf %379, %383 : vector<8x8xf32>
    %385 = vector.extract_strided_slice %328 {offsets = [0, 1], sizes = [8, 8], strides = [1, 1]} : vector<9x9xf32> to vector<8x8xf32>
    %c62 = arith.constant 62 : index
    %386 = memref.load %arg2[%c62] : memref<208xf32, #tpu.memory_space<smem>>
    %387 = vector.broadcast %386 : f32 to vector<8x8xf32>
    %388 = arith.mulf %385, %387 : vector<8x8xf32>
    %389 = arith.addf %384, %388 : vector<8x8xf32>
    %390 = vector.extract_strided_slice %264 {offsets = [1, 0], sizes = [8, 8], strides = [1, 1]} : vector<9x9xf32> to vector<8x8xf32>
    %c63 = arith.constant 63 : index
    %391 = memref.load %arg2[%c63] : memref<208xf32, #tpu.memory_space<smem>>
    %392 = vector.broadcast %391 : f32 to vector<8x8xf32>
    %393 = arith.mulf %390, %392 : vector<8x8xf32>
    %394 = arith.addf %389, %393 : vector<8x8xf32>
    %395 = vector.extract_strided_slice %296 {offsets = [1, 0], sizes = [8, 8], strides = [1, 1]} : vector<9x9xf32> to vector<8x8xf32>
    %c64 = arith.constant 64 : index
    %396 = memref.load %arg2[%c64] : memref<208xf32, #tpu.memory_space<smem>>
    %397 = vector.broadcast %396 : f32 to vector<8x8xf32>
    %398 = arith.mulf %395, %397 : vector<8x8xf32>
    %399 = arith.addf %394, %398 : vector<8x8xf32>
    %400 = vector.extract_strided_slice %264 {offsets = [1, 1], sizes = [8, 8], strides = [1, 1]} : vector<9x9xf32> to vector<8x8xf32>
    %c65 = arith.constant 65 : index
    %401 = memref.load %arg2[%c65] : memref<208xf32, #tpu.memory_space<smem>>
    %402 = vector.broadcast %401 : f32 to vector<8x8xf32>
    %403 = arith.mulf %400, %402 : vector<8x8xf32>
    %404 = arith.addf %399, %403 : vector<8x8xf32>
    %405 = vector.broadcast %231 : f32 to vector<8x8xf32>
    %406 = arith.addf %404, %405 : vector<8x8xf32>
    %cst_204 = arith.constant 0.000000e+00 : f32
    %407 = vector.broadcast %cst_204 : f32 to vector<8x8xf32>
    %408 = arith.cmpf oge, %406, %407 : vector<8x8xf32>
    %409 = vector.broadcast %232 : f32 to vector<8x8xf32>
    %410 = arith.mulf %409, %406 : vector<8x8xf32>
    %411 = arith.select %408, %406, %410 : vector<8x8xi1>, vector<8x8xf32>
    %c144 = arith.constant 144 : index
    %412 = memref.load %arg2[%c144] : memref<208xf32, #tpu.memory_space<smem>>
    %413 = vector.broadcast %412 : f32 to vector<8x8xf32>
    %414 = arith.mulf %411, %413 : vector<8x8xf32>
    %415 = arith.addf %207, %414 : vector<8x8xf32>
    %c145 = arith.constant 145 : index
    %416 = memref.load %arg2[%c145] : memref<208xf32, #tpu.memory_space<smem>>
    %417 = vector.broadcast %416 : f32 to vector<8x8xf32>
    %418 = arith.mulf %411, %417 : vector<8x8xf32>
    %419 = arith.addf %210, %418 : vector<8x8xf32>
    %c146 = arith.constant 146 : index
    %420 = memref.load %arg2[%c146] : memref<208xf32, #tpu.memory_space<smem>>
    %421 = vector.broadcast %420 : f32 to vector<8x8xf32>
    %422 = arith.mulf %411, %421 : vector<8x8xf32>
    %423 = arith.addf %213, %422 : vector<8x8xf32>
    %c147 = arith.constant 147 : index
    %424 = memref.load %arg2[%c147] : memref<208xf32, #tpu.memory_space<smem>>
    %425 = vector.broadcast %424 : f32 to vector<8x8xf32>
    %426 = arith.mulf %411, %425 : vector<8x8xf32>
    %427 = arith.addf %216, %426 : vector<8x8xf32>
    %c148 = arith.constant 148 : index
    %428 = memref.load %arg2[%c148] : memref<208xf32, #tpu.memory_space<smem>>
    %429 = vector.broadcast %428 : f32 to vector<8x8xf32>
    %430 = arith.mulf %411, %429 : vector<8x8xf32>
    %431 = arith.addf %219, %430 : vector<8x8xf32>
    %c149 = arith.constant 149 : index
    %432 = memref.load %arg2[%c149] : memref<208xf32, #tpu.memory_space<smem>>
    %433 = vector.broadcast %432 : f32 to vector<8x8xf32>
    %434 = arith.mulf %411, %433 : vector<8x8xf32>
    %435 = arith.addf %222, %434 : vector<8x8xf32>
    %c150 = arith.constant 150 : index
    %436 = memref.load %arg2[%c150] : memref<208xf32, #tpu.memory_space<smem>>
    %437 = vector.broadcast %436 : f32 to vector<8x8xf32>
    %438 = arith.mulf %411, %437 : vector<8x8xf32>
    %439 = arith.addf %225, %438 : vector<8x8xf32>
    %c151 = arith.constant 151 : index
    %440 = memref.load %arg2[%c151] : memref<208xf32, #tpu.memory_space<smem>>
    %441 = vector.broadcast %440 : f32 to vector<8x8xf32>
    %442 = arith.mulf %411, %441 : vector<8x8xf32>
    %443 = arith.addf %228, %442 : vector<8x8xf32>
    %c34 = arith.constant 34 : index
    %444 = memref.load %arg2[%c34] : memref<208xf32, #tpu.memory_space<smem>>
    %c42 = arith.constant 42 : index
    %445 = memref.load %arg2[%c42] : memref<208xf32, #tpu.memory_space<smem>>
    %c122 = arith.constant 122 : index
    %446 = memref.load %arg2[%c122] : memref<208xf32, #tpu.memory_space<smem>>
    %c130 = arith.constant 130 : index
    %447 = memref.load %arg2[%c130] : memref<208xf32, #tpu.memory_space<smem>>
    %c0_205 = arith.constant 0 : index
    %c0_206 = arith.constant 0 : index
    %c0_207 = arith.constant 0 : index
    %c0_208 = arith.constant 0 : index
    %c0_209 = arith.constant 0 : index
    %448 = vector.load %arg1[%c0_205, %c0_206, %c0_207, %c0_208, %c0_209] : memref<1x4x4x9x9xf32, #tpu.memory_space<vmem>>, vector<1x1x1x9x9xf32>
    %449 = vector.shape_cast %448 : vector<1x1x1x9x9xf32> to vector<9x9xf32>
    %c2_210 = arith.constant 2 : index
    %450 = memref.load %arg2[%c2_210] : memref<208xf32, #tpu.memory_space<smem>>
    %451 = vector.broadcast %450 : f32 to vector<9x9xf32>
    %452 = arith.mulf %449, %451 : vector<9x9xf32>
    %c0_211 = arith.constant 0 : index
    %c0_212 = arith.constant 0 : index
    %c1_213 = arith.constant 1 : index
    %c0_214 = arith.constant 0 : index
    %c0_215 = arith.constant 0 : index
    %453 = vector.load %arg1[%c0_211, %c0_212, %c1_213, %c0_214, %c0_215] : memref<1x4x4x9x9xf32, #tpu.memory_space<vmem>>, vector<1x1x1x9x9xf32>
    %454 = vector.shape_cast %453 : vector<1x1x1x9x9xf32> to vector<9x9xf32>
    %c10 = arith.constant 10 : index
    %455 = memref.load %arg2[%c10] : memref<208xf32, #tpu.memory_space<smem>>
    %456 = vector.broadcast %455 : f32 to vector<9x9xf32>
    %457 = arith.mulf %454, %456 : vector<9x9xf32>
    %458 = arith.addf %452, %457 : vector<9x9xf32>
    %c0_216 = arith.constant 0 : index
    %c0_217 = arith.constant 0 : index
    %c2_218 = arith.constant 2 : index
    %c0_219 = arith.constant 0 : index
    %c0_220 = arith.constant 0 : index
    %459 = vector.load %arg1[%c0_216, %c0_217, %c2_218, %c0_219, %c0_220] : memref<1x4x4x9x9xf32, #tpu.memory_space<vmem>>, vector<1x1x1x9x9xf32>
    %460 = vector.shape_cast %459 : vector<1x1x1x9x9xf32> to vector<9x9xf32>
    %c18 = arith.constant 18 : index
    %461 = memref.load %arg2[%c18] : memref<208xf32, #tpu.memory_space<smem>>
    %462 = vector.broadcast %461 : f32 to vector<9x9xf32>
    %463 = arith.mulf %460, %462 : vector<9x9xf32>
    %464 = arith.addf %458, %463 : vector<9x9xf32>
    %c0_221 = arith.constant 0 : index
    %c0_222 = arith.constant 0 : index
    %c3_223 = arith.constant 3 : index
    %c0_224 = arith.constant 0 : index
    %c0_225 = arith.constant 0 : index
    %465 = vector.load %arg1[%c0_221, %c0_222, %c3_223, %c0_224, %c0_225] : memref<1x4x4x9x9xf32, #tpu.memory_space<vmem>>, vector<1x1x1x9x9xf32>
    %466 = vector.shape_cast %465 : vector<1x1x1x9x9xf32> to vector<9x9xf32>
    %c26 = arith.constant 26 : index
    %467 = memref.load %arg2[%c26] : memref<208xf32, #tpu.memory_space<smem>>
    %468 = vector.broadcast %467 : f32 to vector<9x9xf32>
    %469 = arith.mulf %466, %468 : vector<9x9xf32>
    %470 = arith.addf %464, %469 : vector<9x9xf32>
    %471 = vector.broadcast %444 : f32 to vector<9x9xf32>
    %472 = arith.addf %470, %471 : vector<9x9xf32>
    %cst_226 = arith.constant 0.000000e+00 : f32
    %473 = vector.broadcast %cst_226 : f32 to vector<9x9xf32>
    %474 = arith.cmpf oge, %472, %473 : vector<9x9xf32>
    %475 = vector.broadcast %445 : f32 to vector<9x9xf32>
    %476 = arith.mulf %475, %472 : vector<9x9xf32>
    %477 = arith.select %474, %472, %476 : vector<9x9xi1>, vector<9x9xf32>
    %cst_227 = arith.constant 0.000000e+00 : f32
    %478 = vector.broadcast %cst_227 : f32 to vector<9x9xf32>
    %479 = arith.select %6, %477, %478 : vector<9x9xi1>, vector<9x9xf32>
    %c0_228 = arith.constant 0 : index
    %c1_229 = arith.constant 1 : index
    %c0_230 = arith.constant 0 : index
    %c0_231 = arith.constant 0 : index
    %c0_232 = arith.constant 0 : index
    %480 = vector.load %arg1[%c0_228, %c1_229, %c0_230, %c0_231, %c0_232] : memref<1x4x4x9x9xf32, #tpu.memory_space<vmem>>, vector<1x1x1x9x9xf32>
    %481 = vector.shape_cast %480 : vector<1x1x1x9x9xf32> to vector<9x9xf32>
    %c2_233 = arith.constant 2 : index
    %482 = memref.load %arg2[%c2_233] : memref<208xf32, #tpu.memory_space<smem>>
    %483 = vector.broadcast %482 : f32 to vector<9x9xf32>
    %484 = arith.mulf %481, %483 : vector<9x9xf32>
    %c0_234 = arith.constant 0 : index
    %c1_235 = arith.constant 1 : index
    %c1_236 = arith.constant 1 : index
    %c0_237 = arith.constant 0 : index
    %c0_238 = arith.constant 0 : index
    %485 = vector.load %arg1[%c0_234, %c1_235, %c1_236, %c0_237, %c0_238] : memref<1x4x4x9x9xf32, #tpu.memory_space<vmem>>, vector<1x1x1x9x9xf32>
    %486 = vector.shape_cast %485 : vector<1x1x1x9x9xf32> to vector<9x9xf32>
    %c10_239 = arith.constant 10 : index
    %487 = memref.load %arg2[%c10_239] : memref<208xf32, #tpu.memory_space<smem>>
    %488 = vector.broadcast %487 : f32 to vector<9x9xf32>
    %489 = arith.mulf %486, %488 : vector<9x9xf32>
    %490 = arith.addf %484, %489 : vector<9x9xf32>
    %c0_240 = arith.constant 0 : index
    %c1_241 = arith.constant 1 : index
    %c2_242 = arith.constant 2 : index
    %c0_243 = arith.constant 0 : index
    %c0_244 = arith.constant 0 : index
    %491 = vector.load %arg1[%c0_240, %c1_241, %c2_242, %c0_243, %c0_244] : memref<1x4x4x9x9xf32, #tpu.memory_space<vmem>>, vector<1x1x1x9x9xf32>
    %492 = vector.shape_cast %491 : vector<1x1x1x9x9xf32> to vector<9x9xf32>
    %c18_245 = arith.constant 18 : index
    %493 = memref.load %arg2[%c18_245] : memref<208xf32, #tpu.memory_space<smem>>
    %494 = vector.broadcast %493 : f32 to vector<9x9xf32>
    %495 = arith.mulf %492, %494 : vector<9x9xf32>
    %496 = arith.addf %490, %495 : vector<9x9xf32>
    %c0_246 = arith.constant 0 : index
    %c1_247 = arith.constant 1 : index
    %c3_248 = arith.constant 3 : index
    %c0_249 = arith.constant 0 : index
    %c0_250 = arith.constant 0 : index
    %497 = vector.load %arg1[%c0_246, %c1_247, %c3_248, %c0_249, %c0_250] : memref<1x4x4x9x9xf32, #tpu.memory_space<vmem>>, vector<1x1x1x9x9xf32>
    %498 = vector.shape_cast %497 : vector<1x1x1x9x9xf32> to vector<9x9xf32>
    %c26_251 = arith.constant 26 : index
    %499 = memref.load %arg2[%c26_251] : memref<208xf32, #tpu.memory_space<smem>>
    %500 = vector.broadcast %499 : f32 to vector<9x9xf32>
    %501 = arith.mulf %498, %500 : vector<9x9xf32>
    %502 = arith.addf %496, %501 : vector<9x9xf32>
    %503 = vector.broadcast %444 : f32 to vector<9x9xf32>
    %504 = arith.addf %502, %503 : vector<9x9xf32>
    %cst_252 = arith.constant 0.000000e+00 : f32
    %505 = vector.broadcast %cst_252 : f32 to vector<9x9xf32>
    %506 = arith.cmpf oge, %504, %505 : vector<9x9xf32>
    %507 = vector.broadcast %445 : f32 to vector<9x9xf32>
    %508 = arith.mulf %507, %504 : vector<9x9xf32>
    %509 = arith.select %506, %504, %508 : vector<9x9xi1>, vector<9x9xf32>
    %cst_253 = arith.constant 0.000000e+00 : f32
    %510 = vector.broadcast %cst_253 : f32 to vector<9x9xf32>
    %511 = arith.select %11, %509, %510 : vector<9x9xi1>, vector<9x9xf32>
    %c0_254 = arith.constant 0 : index
    %c2_255 = arith.constant 2 : index
    %c0_256 = arith.constant 0 : index
    %c0_257 = arith.constant 0 : index
    %c0_258 = arith.constant 0 : index
    %512 = vector.load %arg1[%c0_254, %c2_255, %c0_256, %c0_257, %c0_258] : memref<1x4x4x9x9xf32, #tpu.memory_space<vmem>>, vector<1x1x1x9x9xf32>
    %513 = vector.shape_cast %512 : vector<1x1x1x9x9xf32> to vector<9x9xf32>
    %c2_259 = arith.constant 2 : index
    %514 = memref.load %arg2[%c2_259] : memref<208xf32, #tpu.memory_space<smem>>
    %515 = vector.broadcast %514 : f32 to vector<9x9xf32>
    %516 = arith.mulf %513, %515 : vector<9x9xf32>
    %c0_260 = arith.constant 0 : index
    %c2_261 = arith.constant 2 : index
    %c1_262 = arith.constant 1 : index
    %c0_263 = arith.constant 0 : index
    %c0_264 = arith.constant 0 : index
    %517 = vector.load %arg1[%c0_260, %c2_261, %c1_262, %c0_263, %c0_264] : memref<1x4x4x9x9xf32, #tpu.memory_space<vmem>>, vector<1x1x1x9x9xf32>
    %518 = vector.shape_cast %517 : vector<1x1x1x9x9xf32> to vector<9x9xf32>
    %c10_265 = arith.constant 10 : index
    %519 = memref.load %arg2[%c10_265] : memref<208xf32, #tpu.memory_space<smem>>
    %520 = vector.broadcast %519 : f32 to vector<9x9xf32>
    %521 = arith.mulf %518, %520 : vector<9x9xf32>
    %522 = arith.addf %516, %521 : vector<9x9xf32>
    %c0_266 = arith.constant 0 : index
    %c2_267 = arith.constant 2 : index
    %c2_268 = arith.constant 2 : index
    %c0_269 = arith.constant 0 : index
    %c0_270 = arith.constant 0 : index
    %523 = vector.load %arg1[%c0_266, %c2_267, %c2_268, %c0_269, %c0_270] : memref<1x4x4x9x9xf32, #tpu.memory_space<vmem>>, vector<1x1x1x9x9xf32>
    %524 = vector.shape_cast %523 : vector<1x1x1x9x9xf32> to vector<9x9xf32>
    %c18_271 = arith.constant 18 : index
    %525 = memref.load %arg2[%c18_271] : memref<208xf32, #tpu.memory_space<smem>>
    %526 = vector.broadcast %525 : f32 to vector<9x9xf32>
    %527 = arith.mulf %524, %526 : vector<9x9xf32>
    %528 = arith.addf %522, %527 : vector<9x9xf32>
    %c0_272 = arith.constant 0 : index
    %c2_273 = arith.constant 2 : index
    %c3_274 = arith.constant 3 : index
    %c0_275 = arith.constant 0 : index
    %c0_276 = arith.constant 0 : index
    %529 = vector.load %arg1[%c0_272, %c2_273, %c3_274, %c0_275, %c0_276] : memref<1x4x4x9x9xf32, #tpu.memory_space<vmem>>, vector<1x1x1x9x9xf32>
    %530 = vector.shape_cast %529 : vector<1x1x1x9x9xf32> to vector<9x9xf32>
    %c26_277 = arith.constant 26 : index
    %531 = memref.load %arg2[%c26_277] : memref<208xf32, #tpu.memory_space<smem>>
    %532 = vector.broadcast %531 : f32 to vector<9x9xf32>
    %533 = arith.mulf %530, %532 : vector<9x9xf32>
    %534 = arith.addf %528, %533 : vector<9x9xf32>
    %535 = vector.broadcast %444 : f32 to vector<9x9xf32>
    %536 = arith.addf %534, %535 : vector<9x9xf32>
    %cst_278 = arith.constant 0.000000e+00 : f32
    %537 = vector.broadcast %cst_278 : f32 to vector<9x9xf32>
    %538 = arith.cmpf oge, %536, %537 : vector<9x9xf32>
    %539 = vector.broadcast %445 : f32 to vector<9x9xf32>
    %540 = arith.mulf %539, %536 : vector<9x9xf32>
    %541 = arith.select %538, %536, %540 : vector<9x9xi1>, vector<9x9xf32>
    %cst_279 = arith.constant 0.000000e+00 : f32
    %542 = vector.broadcast %cst_279 : f32 to vector<9x9xf32>
    %543 = arith.select %16, %541, %542 : vector<9x9xi1>, vector<9x9xf32>
    %c0_280 = arith.constant 0 : index
    %c3_281 = arith.constant 3 : index
    %c0_282 = arith.constant 0 : index
    %c0_283 = arith.constant 0 : index
    %c0_284 = arith.constant 0 : index
    %544 = vector.load %arg1[%c0_280, %c3_281, %c0_282, %c0_283, %c0_284] : memref<1x4x4x9x9xf32, #tpu.memory_space<vmem>>, vector<1x1x1x9x9xf32>
    %545 = vector.shape_cast %544 : vector<1x1x1x9x9xf32> to vector<9x9xf32>
    %c2_285 = arith.constant 2 : index
    %546 = memref.load %arg2[%c2_285] : memref<208xf32, #tpu.memory_space<smem>>
    %547 = vector.broadcast %546 : f32 to vector<9x9xf32>
    %548 = arith.mulf %545, %547 : vector<9x9xf32>
    %c0_286 = arith.constant 0 : index
    %c3_287 = arith.constant 3 : index
    %c1_288 = arith.constant 1 : index
    %c0_289 = arith.constant 0 : index
    %c0_290 = arith.constant 0 : index
    %549 = vector.load %arg1[%c0_286, %c3_287, %c1_288, %c0_289, %c0_290] : memref<1x4x4x9x9xf32, #tpu.memory_space<vmem>>, vector<1x1x1x9x9xf32>
    %550 = vector.shape_cast %549 : vector<1x1x1x9x9xf32> to vector<9x9xf32>
    %c10_291 = arith.constant 10 : index
    %551 = memref.load %arg2[%c10_291] : memref<208xf32, #tpu.memory_space<smem>>
    %552 = vector.broadcast %551 : f32 to vector<9x9xf32>
    %553 = arith.mulf %550, %552 : vector<9x9xf32>
    %554 = arith.addf %548, %553 : vector<9x9xf32>
    %c0_292 = arith.constant 0 : index
    %c3_293 = arith.constant 3 : index
    %c2_294 = arith.constant 2 : index
    %c0_295 = arith.constant 0 : index
    %c0_296 = arith.constant 0 : index
    %555 = vector.load %arg1[%c0_292, %c3_293, %c2_294, %c0_295, %c0_296] : memref<1x4x4x9x9xf32, #tpu.memory_space<vmem>>, vector<1x1x1x9x9xf32>
    %556 = vector.shape_cast %555 : vector<1x1x1x9x9xf32> to vector<9x9xf32>
    %c18_297 = arith.constant 18 : index
    %557 = memref.load %arg2[%c18_297] : memref<208xf32, #tpu.memory_space<smem>>
    %558 = vector.broadcast %557 : f32 to vector<9x9xf32>
    %559 = arith.mulf %556, %558 : vector<9x9xf32>
    %560 = arith.addf %554, %559 : vector<9x9xf32>
    %c0_298 = arith.constant 0 : index
    %c3_299 = arith.constant 3 : index
    %c3_300 = arith.constant 3 : index
    %c0_301 = arith.constant 0 : index
    %c0_302 = arith.constant 0 : index
    %561 = vector.load %arg1[%c0_298, %c3_299, %c3_300, %c0_301, %c0_302] : memref<1x4x4x9x9xf32, #tpu.memory_space<vmem>>, vector<1x1x1x9x9xf32>
    %562 = vector.shape_cast %561 : vector<1x1x1x9x9xf32> to vector<9x9xf32>
    %c26_303 = arith.constant 26 : index
    %563 = memref.load %arg2[%c26_303] : memref<208xf32, #tpu.memory_space<smem>>
    %564 = vector.broadcast %563 : f32 to vector<9x9xf32>
    %565 = arith.mulf %562, %564 : vector<9x9xf32>
    %566 = arith.addf %560, %565 : vector<9x9xf32>
    %567 = vector.broadcast %444 : f32 to vector<9x9xf32>
    %568 = arith.addf %566, %567 : vector<9x9xf32>
    %cst_304 = arith.constant 0.000000e+00 : f32
    %569 = vector.broadcast %cst_304 : f32 to vector<9x9xf32>
    %570 = arith.cmpf oge, %568, %569 : vector<9x9xf32>
    %571 = vector.broadcast %445 : f32 to vector<9x9xf32>
    %572 = arith.mulf %571, %568 : vector<9x9xf32>
    %573 = arith.select %570, %568, %572 : vector<9x9xi1>, vector<9x9xf32>
    %cst_305 = arith.constant 0.000000e+00 : f32
    %574 = vector.broadcast %cst_305 : f32 to vector<9x9xf32>
    %575 = arith.select %21, %573, %574 : vector<9x9xi1>, vector<9x9xf32>
    %576 = vector.extract_strided_slice %479 {offsets = [0, 0], sizes = [8, 8], strides = [1, 1]} : vector<9x9xf32> to vector<8x8xf32>
    %c66 = arith.constant 66 : index
    %577 = memref.load %arg2[%c66] : memref<208xf32, #tpu.memory_space<smem>>
    %578 = vector.broadcast %577 : f32 to vector<8x8xf32>
    %579 = arith.mulf %576, %578 : vector<8x8xf32>
    %580 = vector.extract_strided_slice %511 {offsets = [0, 0], sizes = [8, 8], strides = [1, 1]} : vector<9x9xf32> to vector<8x8xf32>
    %c67 = arith.constant 67 : index
    %581 = memref.load %arg2[%c67] : memref<208xf32, #tpu.memory_space<smem>>
    %582 = vector.broadcast %581 : f32 to vector<8x8xf32>
    %583 = arith.mulf %580, %582 : vector<8x8xf32>
    %584 = arith.addf %579, %583 : vector<8x8xf32>
    %585 = vector.extract_strided_slice %479 {offsets = [0, 1], sizes = [8, 8], strides = [1, 1]} : vector<9x9xf32> to vector<8x8xf32>
    %c68 = arith.constant 68 : index
    %586 = memref.load %arg2[%c68] : memref<208xf32, #tpu.memory_space<smem>>
    %587 = vector.broadcast %586 : f32 to vector<8x8xf32>
    %588 = arith.mulf %585, %587 : vector<8x8xf32>
    %589 = arith.addf %584, %588 : vector<8x8xf32>
    %590 = vector.extract_strided_slice %543 {offsets = [0, 0], sizes = [8, 8], strides = [1, 1]} : vector<9x9xf32> to vector<8x8xf32>
    %c69 = arith.constant 69 : index
    %591 = memref.load %arg2[%c69] : memref<208xf32, #tpu.memory_space<smem>>
    %592 = vector.broadcast %591 : f32 to vector<8x8xf32>
    %593 = arith.mulf %590, %592 : vector<8x8xf32>
    %594 = arith.addf %589, %593 : vector<8x8xf32>
    %595 = vector.extract_strided_slice %575 {offsets = [0, 0], sizes = [8, 8], strides = [1, 1]} : vector<9x9xf32> to vector<8x8xf32>
    %c70 = arith.constant 70 : index
    %596 = memref.load %arg2[%c70] : memref<208xf32, #tpu.memory_space<smem>>
    %597 = vector.broadcast %596 : f32 to vector<8x8xf32>
    %598 = arith.mulf %595, %597 : vector<8x8xf32>
    %599 = arith.addf %594, %598 : vector<8x8xf32>
    %600 = vector.extract_strided_slice %543 {offsets = [0, 1], sizes = [8, 8], strides = [1, 1]} : vector<9x9xf32> to vector<8x8xf32>
    %c71 = arith.constant 71 : index
    %601 = memref.load %arg2[%c71] : memref<208xf32, #tpu.memory_space<smem>>
    %602 = vector.broadcast %601 : f32 to vector<8x8xf32>
    %603 = arith.mulf %600, %602 : vector<8x8xf32>
    %604 = arith.addf %599, %603 : vector<8x8xf32>
    %605 = vector.extract_strided_slice %479 {offsets = [1, 0], sizes = [8, 8], strides = [1, 1]} : vector<9x9xf32> to vector<8x8xf32>
    %c72 = arith.constant 72 : index
    %606 = memref.load %arg2[%c72] : memref<208xf32, #tpu.memory_space<smem>>
    %607 = vector.broadcast %606 : f32 to vector<8x8xf32>
    %608 = arith.mulf %605, %607 : vector<8x8xf32>
    %609 = arith.addf %604, %608 : vector<8x8xf32>
    %610 = vector.extract_strided_slice %511 {offsets = [1, 0], sizes = [8, 8], strides = [1, 1]} : vector<9x9xf32> to vector<8x8xf32>
    %c73 = arith.constant 73 : index
    %611 = memref.load %arg2[%c73] : memref<208xf32, #tpu.memory_space<smem>>
    %612 = vector.broadcast %611 : f32 to vector<8x8xf32>
    %613 = arith.mulf %610, %612 : vector<8x8xf32>
    %614 = arith.addf %609, %613 : vector<8x8xf32>
    %615 = vector.extract_strided_slice %479 {offsets = [1, 1], sizes = [8, 8], strides = [1, 1]} : vector<9x9xf32> to vector<8x8xf32>
    %c74 = arith.constant 74 : index
    %616 = memref.load %arg2[%c74] : memref<208xf32, #tpu.memory_space<smem>>
    %617 = vector.broadcast %616 : f32 to vector<8x8xf32>
    %618 = arith.mulf %615, %617 : vector<8x8xf32>
    %619 = arith.addf %614, %618 : vector<8x8xf32>
    %620 = vector.broadcast %446 : f32 to vector<8x8xf32>
    %621 = arith.addf %619, %620 : vector<8x8xf32>
    %cst_306 = arith.constant 0.000000e+00 : f32
    %622 = vector.broadcast %cst_306 : f32 to vector<8x8xf32>
    %623 = arith.cmpf oge, %621, %622 : vector<8x8xf32>
    %624 = vector.broadcast %447 : f32 to vector<8x8xf32>
    %625 = arith.mulf %624, %621 : vector<8x8xf32>
    %626 = arith.select %623, %621, %625 : vector<8x8xi1>, vector<8x8xf32>
    %c152 = arith.constant 152 : index
    %627 = memref.load %arg2[%c152] : memref<208xf32, #tpu.memory_space<smem>>
    %628 = vector.broadcast %627 : f32 to vector<8x8xf32>
    %629 = arith.mulf %626, %628 : vector<8x8xf32>
    %630 = arith.addf %415, %629 : vector<8x8xf32>
    %c153 = arith.constant 153 : index
    %631 = memref.load %arg2[%c153] : memref<208xf32, #tpu.memory_space<smem>>
    %632 = vector.broadcast %631 : f32 to vector<8x8xf32>
    %633 = arith.mulf %626, %632 : vector<8x8xf32>
    %634 = arith.addf %419, %633 : vector<8x8xf32>
    %c154 = arith.constant 154 : index
    %635 = memref.load %arg2[%c154] : memref<208xf32, #tpu.memory_space<smem>>
    %636 = vector.broadcast %635 : f32 to vector<8x8xf32>
    %637 = arith.mulf %626, %636 : vector<8x8xf32>
    %638 = arith.addf %423, %637 : vector<8x8xf32>
    %c155 = arith.constant 155 : index
    %639 = memref.load %arg2[%c155] : memref<208xf32, #tpu.memory_space<smem>>
    %640 = vector.broadcast %639 : f32 to vector<8x8xf32>
    %641 = arith.mulf %626, %640 : vector<8x8xf32>
    %642 = arith.addf %427, %641 : vector<8x8xf32>
    %c156 = arith.constant 156 : index
    %643 = memref.load %arg2[%c156] : memref<208xf32, #tpu.memory_space<smem>>
    %644 = vector.broadcast %643 : f32 to vector<8x8xf32>
    %645 = arith.mulf %626, %644 : vector<8x8xf32>
    %646 = arith.addf %431, %645 : vector<8x8xf32>
    %c157 = arith.constant 157 : index
    %647 = memref.load %arg2[%c157] : memref<208xf32, #tpu.memory_space<smem>>
    %648 = vector.broadcast %647 : f32 to vector<8x8xf32>
    %649 = arith.mulf %626, %648 : vector<8x8xf32>
    %650 = arith.addf %435, %649 : vector<8x8xf32>
    %c158 = arith.constant 158 : index
    %651 = memref.load %arg2[%c158] : memref<208xf32, #tpu.memory_space<smem>>
    %652 = vector.broadcast %651 : f32 to vector<8x8xf32>
    %653 = arith.mulf %626, %652 : vector<8x8xf32>
    %654 = arith.addf %439, %653 : vector<8x8xf32>
    %c159 = arith.constant 159 : index
    %655 = memref.load %arg2[%c159] : memref<208xf32, #tpu.memory_space<smem>>
    %656 = vector.broadcast %655 : f32 to vector<8x8xf32>
    %657 = arith.mulf %626, %656 : vector<8x8xf32>
    %658 = arith.addf %443, %657 : vector<8x8xf32>
    %c35 = arith.constant 35 : index
    %659 = memref.load %arg2[%c35] : memref<208xf32, #tpu.memory_space<smem>>
    %c43 = arith.constant 43 : index
    %660 = memref.load %arg2[%c43] : memref<208xf32, #tpu.memory_space<smem>>
    %c123 = arith.constant 123 : index
    %661 = memref.load %arg2[%c123] : memref<208xf32, #tpu.memory_space<smem>>
    %c131 = arith.constant 131 : index
    %662 = memref.load %arg2[%c131] : memref<208xf32, #tpu.memory_space<smem>>
    %c0_307 = arith.constant 0 : index
    %c0_308 = arith.constant 0 : index
    %c0_309 = arith.constant 0 : index
    %c0_310 = arith.constant 0 : index
    %c0_311 = arith.constant 0 : index
    %663 = vector.load %arg1[%c0_307, %c0_308, %c0_309, %c0_310, %c0_311] : memref<1x4x4x9x9xf32, #tpu.memory_space<vmem>>, vector<1x1x1x9x9xf32>
    %664 = vector.shape_cast %663 : vector<1x1x1x9x9xf32> to vector<9x9xf32>
    %c3_312 = arith.constant 3 : index
    %665 = memref.load %arg2[%c3_312] : memref<208xf32, #tpu.memory_space<smem>>
    %666 = vector.broadcast %665 : f32 to vector<9x9xf32>
    %667 = arith.mulf %664, %666 : vector<9x9xf32>
    %c0_313 = arith.constant 0 : index
    %c0_314 = arith.constant 0 : index
    %c1_315 = arith.constant 1 : index
    %c0_316 = arith.constant 0 : index
    %c0_317 = arith.constant 0 : index
    %668 = vector.load %arg1[%c0_313, %c0_314, %c1_315, %c0_316, %c0_317] : memref<1x4x4x9x9xf32, #tpu.memory_space<vmem>>, vector<1x1x1x9x9xf32>
    %669 = vector.shape_cast %668 : vector<1x1x1x9x9xf32> to vector<9x9xf32>
    %c11 = arith.constant 11 : index
    %670 = memref.load %arg2[%c11] : memref<208xf32, #tpu.memory_space<smem>>
    %671 = vector.broadcast %670 : f32 to vector<9x9xf32>
    %672 = arith.mulf %669, %671 : vector<9x9xf32>
    %673 = arith.addf %667, %672 : vector<9x9xf32>
    %c0_318 = arith.constant 0 : index
    %c0_319 = arith.constant 0 : index
    %c2_320 = arith.constant 2 : index
    %c0_321 = arith.constant 0 : index
    %c0_322 = arith.constant 0 : index
    %674 = vector.load %arg1[%c0_318, %c0_319, %c2_320, %c0_321, %c0_322] : memref<1x4x4x9x9xf32, #tpu.memory_space<vmem>>, vector<1x1x1x9x9xf32>
    %675 = vector.shape_cast %674 : vector<1x1x1x9x9xf32> to vector<9x9xf32>
    %c19 = arith.constant 19 : index
    %676 = memref.load %arg2[%c19] : memref<208xf32, #tpu.memory_space<smem>>
    %677 = vector.broadcast %676 : f32 to vector<9x9xf32>
    %678 = arith.mulf %675, %677 : vector<9x9xf32>
    %679 = arith.addf %673, %678 : vector<9x9xf32>
    %c0_323 = arith.constant 0 : index
    %c0_324 = arith.constant 0 : index
    %c3_325 = arith.constant 3 : index
    %c0_326 = arith.constant 0 : index
    %c0_327 = arith.constant 0 : index
    %680 = vector.load %arg1[%c0_323, %c0_324, %c3_325, %c0_326, %c0_327] : memref<1x4x4x9x9xf32, #tpu.memory_space<vmem>>, vector<1x1x1x9x9xf32>
    %681 = vector.shape_cast %680 : vector<1x1x1x9x9xf32> to vector<9x9xf32>
    %c27 = arith.constant 27 : index
    %682 = memref.load %arg2[%c27] : memref<208xf32, #tpu.memory_space<smem>>
    %683 = vector.broadcast %682 : f32 to vector<9x9xf32>
    %684 = arith.mulf %681, %683 : vector<9x9xf32>
    %685 = arith.addf %679, %684 : vector<9x9xf32>
    %686 = vector.broadcast %659 : f32 to vector<9x9xf32>
    %687 = arith.addf %685, %686 : vector<9x9xf32>
    %cst_328 = arith.constant 0.000000e+00 : f32
    %688 = vector.broadcast %cst_328 : f32 to vector<9x9xf32>
    %689 = arith.cmpf oge, %687, %688 : vector<9x9xf32>
    %690 = vector.broadcast %660 : f32 to vector<9x9xf32>
    %691 = arith.mulf %690, %687 : vector<9x9xf32>
    %692 = arith.select %689, %687, %691 : vector<9x9xi1>, vector<9x9xf32>
    %cst_329 = arith.constant 0.000000e+00 : f32
    %693 = vector.broadcast %cst_329 : f32 to vector<9x9xf32>
    %694 = arith.select %6, %692, %693 : vector<9x9xi1>, vector<9x9xf32>
    %c0_330 = arith.constant 0 : index
    %c1_331 = arith.constant 1 : index
    %c0_332 = arith.constant 0 : index
    %c0_333 = arith.constant 0 : index
    %c0_334 = arith.constant 0 : index
    %695 = vector.load %arg1[%c0_330, %c1_331, %c0_332, %c0_333, %c0_334] : memref<1x4x4x9x9xf32, #tpu.memory_space<vmem>>, vector<1x1x1x9x9xf32>
    %696 = vector.shape_cast %695 : vector<1x1x1x9x9xf32> to vector<9x9xf32>
    %c3_335 = arith.constant 3 : index
    %697 = memref.load %arg2[%c3_335] : memref<208xf32, #tpu.memory_space<smem>>
    %698 = vector.broadcast %697 : f32 to vector<9x9xf32>
    %699 = arith.mulf %696, %698 : vector<9x9xf32>
    %c0_336 = arith.constant 0 : index
    %c1_337 = arith.constant 1 : index
    %c1_338 = arith.constant 1 : index
    %c0_339 = arith.constant 0 : index
    %c0_340 = arith.constant 0 : index
    %700 = vector.load %arg1[%c0_336, %c1_337, %c1_338, %c0_339, %c0_340] : memref<1x4x4x9x9xf32, #tpu.memory_space<vmem>>, vector<1x1x1x9x9xf32>
    %701 = vector.shape_cast %700 : vector<1x1x1x9x9xf32> to vector<9x9xf32>
    %c11_341 = arith.constant 11 : index
    %702 = memref.load %arg2[%c11_341] : memref<208xf32, #tpu.memory_space<smem>>
    %703 = vector.broadcast %702 : f32 to vector<9x9xf32>
    %704 = arith.mulf %701, %703 : vector<9x9xf32>
    %705 = arith.addf %699, %704 : vector<9x9xf32>
    %c0_342 = arith.constant 0 : index
    %c1_343 = arith.constant 1 : index
    %c2_344 = arith.constant 2 : index
    %c0_345 = arith.constant 0 : index
    %c0_346 = arith.constant 0 : index
    %706 = vector.load %arg1[%c0_342, %c1_343, %c2_344, %c0_345, %c0_346] : memref<1x4x4x9x9xf32, #tpu.memory_space<vmem>>, vector<1x1x1x9x9xf32>
    %707 = vector.shape_cast %706 : vector<1x1x1x9x9xf32> to vector<9x9xf32>
    %c19_347 = arith.constant 19 : index
    %708 = memref.load %arg2[%c19_347] : memref<208xf32, #tpu.memory_space<smem>>
    %709 = vector.broadcast %708 : f32 to vector<9x9xf32>
    %710 = arith.mulf %707, %709 : vector<9x9xf32>
    %711 = arith.addf %705, %710 : vector<9x9xf32>
    %c0_348 = arith.constant 0 : index
    %c1_349 = arith.constant 1 : index
    %c3_350 = arith.constant 3 : index
    %c0_351 = arith.constant 0 : index
    %c0_352 = arith.constant 0 : index
    %712 = vector.load %arg1[%c0_348, %c1_349, %c3_350, %c0_351, %c0_352] : memref<1x4x4x9x9xf32, #tpu.memory_space<vmem>>, vector<1x1x1x9x9xf32>
    %713 = vector.shape_cast %712 : vector<1x1x1x9x9xf32> to vector<9x9xf32>
    %c27_353 = arith.constant 27 : index
    %714 = memref.load %arg2[%c27_353] : memref<208xf32, #tpu.memory_space<smem>>
    %715 = vector.broadcast %714 : f32 to vector<9x9xf32>
    %716 = arith.mulf %713, %715 : vector<9x9xf32>
    %717 = arith.addf %711, %716 : vector<9x9xf32>
    %718 = vector.broadcast %659 : f32 to vector<9x9xf32>
    %719 = arith.addf %717, %718 : vector<9x9xf32>
    %cst_354 = arith.constant 0.000000e+00 : f32
    %720 = vector.broadcast %cst_354 : f32 to vector<9x9xf32>
    %721 = arith.cmpf oge, %719, %720 : vector<9x9xf32>
    %722 = vector.broadcast %660 : f32 to vector<9x9xf32>
    %723 = arith.mulf %722, %719 : vector<9x9xf32>
    %724 = arith.select %721, %719, %723 : vector<9x9xi1>, vector<9x9xf32>
    %cst_355 = arith.constant 0.000000e+00 : f32
    %725 = vector.broadcast %cst_355 : f32 to vector<9x9xf32>
    %726 = arith.select %11, %724, %725 : vector<9x9xi1>, vector<9x9xf32>
    %c0_356 = arith.constant 0 : index
    %c2_357 = arith.constant 2 : index
    %c0_358 = arith.constant 0 : index
    %c0_359 = arith.constant 0 : index
    %c0_360 = arith.constant 0 : index
    %727 = vector.load %arg1[%c0_356, %c2_357, %c0_358, %c0_359, %c0_360] : memref<1x4x4x9x9xf32, #tpu.memory_space<vmem>>, vector<1x1x1x9x9xf32>
    %728 = vector.shape_cast %727 : vector<1x1x1x9x9xf32> to vector<9x9xf32>
    %c3_361 = arith.constant 3 : index
    %729 = memref.load %arg2[%c3_361] : memref<208xf32, #tpu.memory_space<smem>>
    %730 = vector.broadcast %729 : f32 to vector<9x9xf32>
    %731 = arith.mulf %728, %730 : vector<9x9xf32>
    %c0_362 = arith.constant 0 : index
    %c2_363 = arith.constant 2 : index
    %c1_364 = arith.constant 1 : index
    %c0_365 = arith.constant 0 : index
    %c0_366 = arith.constant 0 : index
    %732 = vector.load %arg1[%c0_362, %c2_363, %c1_364, %c0_365, %c0_366] : memref<1x4x4x9x9xf32, #tpu.memory_space<vmem>>, vector<1x1x1x9x9xf32>
    %733 = vector.shape_cast %732 : vector<1x1x1x9x9xf32> to vector<9x9xf32>
    %c11_367 = arith.constant 11 : index
    %734 = memref.load %arg2[%c11_367] : memref<208xf32, #tpu.memory_space<smem>>
    %735 = vector.broadcast %734 : f32 to vector<9x9xf32>
    %736 = arith.mulf %733, %735 : vector<9x9xf32>
    %737 = arith.addf %731, %736 : vector<9x9xf32>
    %c0_368 = arith.constant 0 : index
    %c2_369 = arith.constant 2 : index
    %c2_370 = arith.constant 2 : index
    %c0_371 = arith.constant 0 : index
    %c0_372 = arith.constant 0 : index
    %738 = vector.load %arg1[%c0_368, %c2_369, %c2_370, %c0_371, %c0_372] : memref<1x4x4x9x9xf32, #tpu.memory_space<vmem>>, vector<1x1x1x9x9xf32>
    %739 = vector.shape_cast %738 : vector<1x1x1x9x9xf32> to vector<9x9xf32>
    %c19_373 = arith.constant 19 : index
    %740 = memref.load %arg2[%c19_373] : memref<208xf32, #tpu.memory_space<smem>>
    %741 = vector.broadcast %740 : f32 to vector<9x9xf32>
    %742 = arith.mulf %739, %741 : vector<9x9xf32>
    %743 = arith.addf %737, %742 : vector<9x9xf32>
    %c0_374 = arith.constant 0 : index
    %c2_375 = arith.constant 2 : index
    %c3_376 = arith.constant 3 : index
    %c0_377 = arith.constant 0 : index
    %c0_378 = arith.constant 0 : index
    %744 = vector.load %arg1[%c0_374, %c2_375, %c3_376, %c0_377, %c0_378] : memref<1x4x4x9x9xf32, #tpu.memory_space<vmem>>, vector<1x1x1x9x9xf32>
    %745 = vector.shape_cast %744 : vector<1x1x1x9x9xf32> to vector<9x9xf32>
    %c27_379 = arith.constant 27 : index
    %746 = memref.load %arg2[%c27_379] : memref<208xf32, #tpu.memory_space<smem>>
    %747 = vector.broadcast %746 : f32 to vector<9x9xf32>
    %748 = arith.mulf %745, %747 : vector<9x9xf32>
    %749 = arith.addf %743, %748 : vector<9x9xf32>
    %750 = vector.broadcast %659 : f32 to vector<9x9xf32>
    %751 = arith.addf %749, %750 : vector<9x9xf32>
    %cst_380 = arith.constant 0.000000e+00 : f32
    %752 = vector.broadcast %cst_380 : f32 to vector<9x9xf32>
    %753 = arith.cmpf oge, %751, %752 : vector<9x9xf32>
    %754 = vector.broadcast %660 : f32 to vector<9x9xf32>
    %755 = arith.mulf %754, %751 : vector<9x9xf32>
    %756 = arith.select %753, %751, %755 : vector<9x9xi1>, vector<9x9xf32>
    %cst_381 = arith.constant 0.000000e+00 : f32
    %757 = vector.broadcast %cst_381 : f32 to vector<9x9xf32>
    %758 = arith.select %16, %756, %757 : vector<9x9xi1>, vector<9x9xf32>
    %c0_382 = arith.constant 0 : index
    %c3_383 = arith.constant 3 : index
    %c0_384 = arith.constant 0 : index
    %c0_385 = arith.constant 0 : index
    %c0_386 = arith.constant 0 : index
    %759 = vector.load %arg1[%c0_382, %c3_383, %c0_384, %c0_385, %c0_386] : memref<1x4x4x9x9xf32, #tpu.memory_space<vmem>>, vector<1x1x1x9x9xf32>
    %760 = vector.shape_cast %759 : vector<1x1x1x9x9xf32> to vector<9x9xf32>
    %c3_387 = arith.constant 3 : index
    %761 = memref.load %arg2[%c3_387] : memref<208xf32, #tpu.memory_space<smem>>
    %762 = vector.broadcast %761 : f32 to vector<9x9xf32>
    %763 = arith.mulf %760, %762 : vector<9x9xf32>
    %c0_388 = arith.constant 0 : index
    %c3_389 = arith.constant 3 : index
    %c1_390 = arith.constant 1 : index
    %c0_391 = arith.constant 0 : index
    %c0_392 = arith.constant 0 : index
    %764 = vector.load %arg1[%c0_388, %c3_389, %c1_390, %c0_391, %c0_392] : memref<1x4x4x9x9xf32, #tpu.memory_space<vmem>>, vector<1x1x1x9x9xf32>
    %765 = vector.shape_cast %764 : vector<1x1x1x9x9xf32> to vector<9x9xf32>
    %c11_393 = arith.constant 11 : index
    %766 = memref.load %arg2[%c11_393] : memref<208xf32, #tpu.memory_space<smem>>
    %767 = vector.broadcast %766 : f32 to vector<9x9xf32>
    %768 = arith.mulf %765, %767 : vector<9x9xf32>
    %769 = arith.addf %763, %768 : vector<9x9xf32>
    %c0_394 = arith.constant 0 : index
    %c3_395 = arith.constant 3 : index
    %c2_396 = arith.constant 2 : index
    %c0_397 = arith.constant 0 : index
    %c0_398 = arith.constant 0 : index
    %770 = vector.load %arg1[%c0_394, %c3_395, %c2_396, %c0_397, %c0_398] : memref<1x4x4x9x9xf32, #tpu.memory_space<vmem>>, vector<1x1x1x9x9xf32>
    %771 = vector.shape_cast %770 : vector<1x1x1x9x9xf32> to vector<9x9xf32>
    %c19_399 = arith.constant 19 : index
    %772 = memref.load %arg2[%c19_399] : memref<208xf32, #tpu.memory_space<smem>>
    %773 = vector.broadcast %772 : f32 to vector<9x9xf32>
    %774 = arith.mulf %771, %773 : vector<9x9xf32>
    %775 = arith.addf %769, %774 : vector<9x9xf32>
    %c0_400 = arith.constant 0 : index
    %c3_401 = arith.constant 3 : index
    %c3_402 = arith.constant 3 : index
    %c0_403 = arith.constant 0 : index
    %c0_404 = arith.constant 0 : index
    %776 = vector.load %arg1[%c0_400, %c3_401, %c3_402, %c0_403, %c0_404] : memref<1x4x4x9x9xf32, #tpu.memory_space<vmem>>, vector<1x1x1x9x9xf32>
    %777 = vector.shape_cast %776 : vector<1x1x1x9x9xf32> to vector<9x9xf32>
    %c27_405 = arith.constant 27 : index
    %778 = memref.load %arg2[%c27_405] : memref<208xf32, #tpu.memory_space<smem>>
    %779 = vector.broadcast %778 : f32 to vector<9x9xf32>
    %780 = arith.mulf %777, %779 : vector<9x9xf32>
    %781 = arith.addf %775, %780 : vector<9x9xf32>
    %782 = vector.broadcast %659 : f32 to vector<9x9xf32>
    %783 = arith.addf %781, %782 : vector<9x9xf32>
    %cst_406 = arith.constant 0.000000e+00 : f32
    %784 = vector.broadcast %cst_406 : f32 to vector<9x9xf32>
    %785 = arith.cmpf oge, %783, %784 : vector<9x9xf32>
    %786 = vector.broadcast %660 : f32 to vector<9x9xf32>
    %787 = arith.mulf %786, %783 : vector<9x9xf32>
    %788 = arith.select %785, %783, %787 : vector<9x9xi1>, vector<9x9xf32>
    %cst_407 = arith.constant 0.000000e+00 : f32
    %789 = vector.broadcast %cst_407 : f32 to vector<9x9xf32>
    %790 = arith.select %21, %788, %789 : vector<9x9xi1>, vector<9x9xf32>
    %791 = vector.extract_strided_slice %694 {offsets = [0, 0], sizes = [8, 8], strides = [1, 1]} : vector<9x9xf32> to vector<8x8xf32>
    %c75 = arith.constant 75 : index
    %792 = memref.load %arg2[%c75] : memref<208xf32, #tpu.memory_space<smem>>
    %793 = vector.broadcast %792 : f32 to vector<8x8xf32>
    %794 = arith.mulf %791, %793 : vector<8x8xf32>
    %795 = vector.extract_strided_slice %726 {offsets = [0, 0], sizes = [8, 8], strides = [1, 1]} : vector<9x9xf32> to vector<8x8xf32>
    %c76 = arith.constant 76 : index
    %796 = memref.load %arg2[%c76] : memref<208xf32, #tpu.memory_space<smem>>
    %797 = vector.broadcast %796 : f32 to vector<8x8xf32>
    %798 = arith.mulf %795, %797 : vector<8x8xf32>
    %799 = arith.addf %794, %798 : vector<8x8xf32>
    %800 = vector.extract_strided_slice %694 {offsets = [0, 1], sizes = [8, 8], strides = [1, 1]} : vector<9x9xf32> to vector<8x8xf32>
    %c77 = arith.constant 77 : index
    %801 = memref.load %arg2[%c77] : memref<208xf32, #tpu.memory_space<smem>>
    %802 = vector.broadcast %801 : f32 to vector<8x8xf32>
    %803 = arith.mulf %800, %802 : vector<8x8xf32>
    %804 = arith.addf %799, %803 : vector<8x8xf32>
    %805 = vector.extract_strided_slice %758 {offsets = [0, 0], sizes = [8, 8], strides = [1, 1]} : vector<9x9xf32> to vector<8x8xf32>
    %c78 = arith.constant 78 : index
    %806 = memref.load %arg2[%c78] : memref<208xf32, #tpu.memory_space<smem>>
    %807 = vector.broadcast %806 : f32 to vector<8x8xf32>
    %808 = arith.mulf %805, %807 : vector<8x8xf32>
    %809 = arith.addf %804, %808 : vector<8x8xf32>
    %810 = vector.extract_strided_slice %790 {offsets = [0, 0], sizes = [8, 8], strides = [1, 1]} : vector<9x9xf32> to vector<8x8xf32>
    %c79 = arith.constant 79 : index
    %811 = memref.load %arg2[%c79] : memref<208xf32, #tpu.memory_space<smem>>
    %812 = vector.broadcast %811 : f32 to vector<8x8xf32>
    %813 = arith.mulf %810, %812 : vector<8x8xf32>
    %814 = arith.addf %809, %813 : vector<8x8xf32>
    %815 = vector.extract_strided_slice %758 {offsets = [0, 1], sizes = [8, 8], strides = [1, 1]} : vector<9x9xf32> to vector<8x8xf32>
    %c80 = arith.constant 80 : index
    %816 = memref.load %arg2[%c80] : memref<208xf32, #tpu.memory_space<smem>>
    %817 = vector.broadcast %816 : f32 to vector<8x8xf32>
    %818 = arith.mulf %815, %817 : vector<8x8xf32>
    %819 = arith.addf %814, %818 : vector<8x8xf32>
    %820 = vector.extract_strided_slice %694 {offsets = [1, 0], sizes = [8, 8], strides = [1, 1]} : vector<9x9xf32> to vector<8x8xf32>
    %c81 = arith.constant 81 : index
    %821 = memref.load %arg2[%c81] : memref<208xf32, #tpu.memory_space<smem>>
    %822 = vector.broadcast %821 : f32 to vector<8x8xf32>
    %823 = arith.mulf %820, %822 : vector<8x8xf32>
    %824 = arith.addf %819, %823 : vector<8x8xf32>
    %825 = vector.extract_strided_slice %726 {offsets = [1, 0], sizes = [8, 8], strides = [1, 1]} : vector<9x9xf32> to vector<8x8xf32>
    %c82 = arith.constant 82 : index
    %826 = memref.load %arg2[%c82] : memref<208xf32, #tpu.memory_space<smem>>
    %827 = vector.broadcast %826 : f32 to vector<8x8xf32>
    %828 = arith.mulf %825, %827 : vector<8x8xf32>
    %829 = arith.addf %824, %828 : vector<8x8xf32>
    %830 = vector.extract_strided_slice %694 {offsets = [1, 1], sizes = [8, 8], strides = [1, 1]} : vector<9x9xf32> to vector<8x8xf32>
    %c83 = arith.constant 83 : index
    %831 = memref.load %arg2[%c83] : memref<208xf32, #tpu.memory_space<smem>>
    %832 = vector.broadcast %831 : f32 to vector<8x8xf32>
    %833 = arith.mulf %830, %832 : vector<8x8xf32>
    %834 = arith.addf %829, %833 : vector<8x8xf32>
    %835 = vector.broadcast %661 : f32 to vector<8x8xf32>
    %836 = arith.addf %834, %835 : vector<8x8xf32>
    %cst_408 = arith.constant 0.000000e+00 : f32
    %837 = vector.broadcast %cst_408 : f32 to vector<8x8xf32>
    %838 = arith.cmpf oge, %836, %837 : vector<8x8xf32>
    %839 = vector.broadcast %662 : f32 to vector<8x8xf32>
    %840 = arith.mulf %839, %836 : vector<8x8xf32>
    %841 = arith.select %838, %836, %840 : vector<8x8xi1>, vector<8x8xf32>
    %c160 = arith.constant 160 : index
    %842 = memref.load %arg2[%c160] : memref<208xf32, #tpu.memory_space<smem>>
    %843 = vector.broadcast %842 : f32 to vector<8x8xf32>
    %844 = arith.mulf %841, %843 : vector<8x8xf32>
    %845 = arith.addf %630, %844 : vector<8x8xf32>
    %c161 = arith.constant 161 : index
    %846 = memref.load %arg2[%c161] : memref<208xf32, #tpu.memory_space<smem>>
    %847 = vector.broadcast %846 : f32 to vector<8x8xf32>
    %848 = arith.mulf %841, %847 : vector<8x8xf32>
    %849 = arith.addf %634, %848 : vector<8x8xf32>
    %c162 = arith.constant 162 : index
    %850 = memref.load %arg2[%c162] : memref<208xf32, #tpu.memory_space<smem>>
    %851 = vector.broadcast %850 : f32 to vector<8x8xf32>
    %852 = arith.mulf %841, %851 : vector<8x8xf32>
    %853 = arith.addf %638, %852 : vector<8x8xf32>
    %c163 = arith.constant 163 : index
    %854 = memref.load %arg2[%c163] : memref<208xf32, #tpu.memory_space<smem>>
    %855 = vector.broadcast %854 : f32 to vector<8x8xf32>
    %856 = arith.mulf %841, %855 : vector<8x8xf32>
    %857 = arith.addf %642, %856 : vector<8x8xf32>
    %c164 = arith.constant 164 : index
    %858 = memref.load %arg2[%c164] : memref<208xf32, #tpu.memory_space<smem>>
    %859 = vector.broadcast %858 : f32 to vector<8x8xf32>
    %860 = arith.mulf %841, %859 : vector<8x8xf32>
    %861 = arith.addf %646, %860 : vector<8x8xf32>
    %c165 = arith.constant 165 : index
    %862 = memref.load %arg2[%c165] : memref<208xf32, #tpu.memory_space<smem>>
    %863 = vector.broadcast %862 : f32 to vector<8x8xf32>
    %864 = arith.mulf %841, %863 : vector<8x8xf32>
    %865 = arith.addf %650, %864 : vector<8x8xf32>
    %c166 = arith.constant 166 : index
    %866 = memref.load %arg2[%c166] : memref<208xf32, #tpu.memory_space<smem>>
    %867 = vector.broadcast %866 : f32 to vector<8x8xf32>
    %868 = arith.mulf %841, %867 : vector<8x8xf32>
    %869 = arith.addf %654, %868 : vector<8x8xf32>
    %c167 = arith.constant 167 : index
    %870 = memref.load %arg2[%c167] : memref<208xf32, #tpu.memory_space<smem>>
    %871 = vector.broadcast %870 : f32 to vector<8x8xf32>
    %872 = arith.mulf %841, %871 : vector<8x8xf32>
    %873 = arith.addf %658, %872 : vector<8x8xf32>
    %c36 = arith.constant 36 : index
    %874 = memref.load %arg2[%c36] : memref<208xf32, #tpu.memory_space<smem>>
    %c44 = arith.constant 44 : index
    %875 = memref.load %arg2[%c44] : memref<208xf32, #tpu.memory_space<smem>>
    %c124 = arith.constant 124 : index
    %876 = memref.load %arg2[%c124] : memref<208xf32, #tpu.memory_space<smem>>
    %c132 = arith.constant 132 : index
    %877 = memref.load %arg2[%c132] : memref<208xf32, #tpu.memory_space<smem>>
    %c0_409 = arith.constant 0 : index
    %c0_410 = arith.constant 0 : index
    %c0_411 = arith.constant 0 : index
    %c0_412 = arith.constant 0 : index
    %c0_413 = arith.constant 0 : index
    %878 = vector.load %arg1[%c0_409, %c0_410, %c0_411, %c0_412, %c0_413] : memref<1x4x4x9x9xf32, #tpu.memory_space<vmem>>, vector<1x1x1x9x9xf32>
    %879 = vector.shape_cast %878 : vector<1x1x1x9x9xf32> to vector<9x9xf32>
    %c4 = arith.constant 4 : index
    %880 = memref.load %arg2[%c4] : memref<208xf32, #tpu.memory_space<smem>>
    %881 = vector.broadcast %880 : f32 to vector<9x9xf32>
    %882 = arith.mulf %879, %881 : vector<9x9xf32>
    %c0_414 = arith.constant 0 : index
    %c0_415 = arith.constant 0 : index
    %c1_416 = arith.constant 1 : index
    %c0_417 = arith.constant 0 : index
    %c0_418 = arith.constant 0 : index
    %883 = vector.load %arg1[%c0_414, %c0_415, %c1_416, %c0_417, %c0_418] : memref<1x4x4x9x9xf32, #tpu.memory_space<vmem>>, vector<1x1x1x9x9xf32>
    %884 = vector.shape_cast %883 : vector<1x1x1x9x9xf32> to vector<9x9xf32>
    %c12 = arith.constant 12 : index
    %885 = memref.load %arg2[%c12] : memref<208xf32, #tpu.memory_space<smem>>
    %886 = vector.broadcast %885 : f32 to vector<9x9xf32>
    %887 = arith.mulf %884, %886 : vector<9x9xf32>
    %888 = arith.addf %882, %887 : vector<9x9xf32>
    %c0_419 = arith.constant 0 : index
    %c0_420 = arith.constant 0 : index
    %c2_421 = arith.constant 2 : index
    %c0_422 = arith.constant 0 : index
    %c0_423 = arith.constant 0 : index
    %889 = vector.load %arg1[%c0_419, %c0_420, %c2_421, %c0_422, %c0_423] : memref<1x4x4x9x9xf32, #tpu.memory_space<vmem>>, vector<1x1x1x9x9xf32>
    %890 = vector.shape_cast %889 : vector<1x1x1x9x9xf32> to vector<9x9xf32>
    %c20 = arith.constant 20 : index
    %891 = memref.load %arg2[%c20] : memref<208xf32, #tpu.memory_space<smem>>
    %892 = vector.broadcast %891 : f32 to vector<9x9xf32>
    %893 = arith.mulf %890, %892 : vector<9x9xf32>
    %894 = arith.addf %888, %893 : vector<9x9xf32>
    %c0_424 = arith.constant 0 : index
    %c0_425 = arith.constant 0 : index
    %c3_426 = arith.constant 3 : index
    %c0_427 = arith.constant 0 : index
    %c0_428 = arith.constant 0 : index
    %895 = vector.load %arg1[%c0_424, %c0_425, %c3_426, %c0_427, %c0_428] : memref<1x4x4x9x9xf32, #tpu.memory_space<vmem>>, vector<1x1x1x9x9xf32>
    %896 = vector.shape_cast %895 : vector<1x1x1x9x9xf32> to vector<9x9xf32>
    %c28 = arith.constant 28 : index
    %897 = memref.load %arg2[%c28] : memref<208xf32, #tpu.memory_space<smem>>
    %898 = vector.broadcast %897 : f32 to vector<9x9xf32>
    %899 = arith.mulf %896, %898 : vector<9x9xf32>
    %900 = arith.addf %894, %899 : vector<9x9xf32>
    %901 = vector.broadcast %874 : f32 to vector<9x9xf32>
    %902 = arith.addf %900, %901 : vector<9x9xf32>
    %cst_429 = arith.constant 0.000000e+00 : f32
    %903 = vector.broadcast %cst_429 : f32 to vector<9x9xf32>
    %904 = arith.cmpf oge, %902, %903 : vector<9x9xf32>
    %905 = vector.broadcast %875 : f32 to vector<9x9xf32>
    %906 = arith.mulf %905, %902 : vector<9x9xf32>
    %907 = arith.select %904, %902, %906 : vector<9x9xi1>, vector<9x9xf32>
    %cst_430 = arith.constant 0.000000e+00 : f32
    %908 = vector.broadcast %cst_430 : f32 to vector<9x9xf32>
    %909 = arith.select %6, %907, %908 : vector<9x9xi1>, vector<9x9xf32>
    %c0_431 = arith.constant 0 : index
    %c1_432 = arith.constant 1 : index
    %c0_433 = arith.constant 0 : index
    %c0_434 = arith.constant 0 : index
    %c0_435 = arith.constant 0 : index
    %910 = vector.load %arg1[%c0_431, %c1_432, %c0_433, %c0_434, %c0_435] : memref<1x4x4x9x9xf32, #tpu.memory_space<vmem>>, vector<1x1x1x9x9xf32>
    %911 = vector.shape_cast %910 : vector<1x1x1x9x9xf32> to vector<9x9xf32>
    %c4_436 = arith.constant 4 : index
    %912 = memref.load %arg2[%c4_436] : memref<208xf32, #tpu.memory_space<smem>>
    %913 = vector.broadcast %912 : f32 to vector<9x9xf32>
    %914 = arith.mulf %911, %913 : vector<9x9xf32>
    %c0_437 = arith.constant 0 : index
    %c1_438 = arith.constant 1 : index
    %c1_439 = arith.constant 1 : index
    %c0_440 = arith.constant 0 : index
    %c0_441 = arith.constant 0 : index
    %915 = vector.load %arg1[%c0_437, %c1_438, %c1_439, %c0_440, %c0_441] : memref<1x4x4x9x9xf32, #tpu.memory_space<vmem>>, vector<1x1x1x9x9xf32>
    %916 = vector.shape_cast %915 : vector<1x1x1x9x9xf32> to vector<9x9xf32>
    %c12_442 = arith.constant 12 : index
    %917 = memref.load %arg2[%c12_442] : memref<208xf32, #tpu.memory_space<smem>>
    %918 = vector.broadcast %917 : f32 to vector<9x9xf32>
    %919 = arith.mulf %916, %918 : vector<9x9xf32>
    %920 = arith.addf %914, %919 : vector<9x9xf32>
    %c0_443 = arith.constant 0 : index
    %c1_444 = arith.constant 1 : index
    %c2_445 = arith.constant 2 : index
    %c0_446 = arith.constant 0 : index
    %c0_447 = arith.constant 0 : index
    %921 = vector.load %arg1[%c0_443, %c1_444, %c2_445, %c0_446, %c0_447] : memref<1x4x4x9x9xf32, #tpu.memory_space<vmem>>, vector<1x1x1x9x9xf32>
    %922 = vector.shape_cast %921 : vector<1x1x1x9x9xf32> to vector<9x9xf32>
    %c20_448 = arith.constant 20 : index
    %923 = memref.load %arg2[%c20_448] : memref<208xf32, #tpu.memory_space<smem>>
    %924 = vector.broadcast %923 : f32 to vector<9x9xf32>
    %925 = arith.mulf %922, %924 : vector<9x9xf32>
    %926 = arith.addf %920, %925 : vector<9x9xf32>
    %c0_449 = arith.constant 0 : index
    %c1_450 = arith.constant 1 : index
    %c3_451 = arith.constant 3 : index
    %c0_452 = arith.constant 0 : index
    %c0_453 = arith.constant 0 : index
    %927 = vector.load %arg1[%c0_449, %c1_450, %c3_451, %c0_452, %c0_453] : memref<1x4x4x9x9xf32, #tpu.memory_space<vmem>>, vector<1x1x1x9x9xf32>
    %928 = vector.shape_cast %927 : vector<1x1x1x9x9xf32> to vector<9x9xf32>
    %c28_454 = arith.constant 28 : index
    %929 = memref.load %arg2[%c28_454] : memref<208xf32, #tpu.memory_space<smem>>
    %930 = vector.broadcast %929 : f32 to vector<9x9xf32>
    %931 = arith.mulf %928, %930 : vector<9x9xf32>
    %932 = arith.addf %926, %931 : vector<9x9xf32>
    %933 = vector.broadcast %874 : f32 to vector<9x9xf32>
    %934 = arith.addf %932, %933 : vector<9x9xf32>
    %cst_455 = arith.constant 0.000000e+00 : f32
    %935 = vector.broadcast %cst_455 : f32 to vector<9x9xf32>
    %936 = arith.cmpf oge, %934, %935 : vector<9x9xf32>
    %937 = vector.broadcast %875 : f32 to vector<9x9xf32>
    %938 = arith.mulf %937, %934 : vector<9x9xf32>
    %939 = arith.select %936, %934, %938 : vector<9x9xi1>, vector<9x9xf32>
    %cst_456 = arith.constant 0.000000e+00 : f32
    %940 = vector.broadcast %cst_456 : f32 to vector<9x9xf32>
    %941 = arith.select %11, %939, %940 : vector<9x9xi1>, vector<9x9xf32>
    %c0_457 = arith.constant 0 : index
    %c2_458 = arith.constant 2 : index
    %c0_459 = arith.constant 0 : index
    %c0_460 = arith.constant 0 : index
    %c0_461 = arith.constant 0 : index
    %942 = vector.load %arg1[%c0_457, %c2_458, %c0_459, %c0_460, %c0_461] : memref<1x4x4x9x9xf32, #tpu.memory_space<vmem>>, vector<1x1x1x9x9xf32>
    %943 = vector.shape_cast %942 : vector<1x1x1x9x9xf32> to vector<9x9xf32>
    %c4_462 = arith.constant 4 : index
    %944 = memref.load %arg2[%c4_462] : memref<208xf32, #tpu.memory_space<smem>>
    %945 = vector.broadcast %944 : f32 to vector<9x9xf32>
    %946 = arith.mulf %943, %945 : vector<9x9xf32>
    %c0_463 = arith.constant 0 : index
    %c2_464 = arith.constant 2 : index
    %c1_465 = arith.constant 1 : index
    %c0_466 = arith.constant 0 : index
    %c0_467 = arith.constant 0 : index
    %947 = vector.load %arg1[%c0_463, %c2_464, %c1_465, %c0_466, %c0_467] : memref<1x4x4x9x9xf32, #tpu.memory_space<vmem>>, vector<1x1x1x9x9xf32>
    %948 = vector.shape_cast %947 : vector<1x1x1x9x9xf32> to vector<9x9xf32>
    %c12_468 = arith.constant 12 : index
    %949 = memref.load %arg2[%c12_468] : memref<208xf32, #tpu.memory_space<smem>>
    %950 = vector.broadcast %949 : f32 to vector<9x9xf32>
    %951 = arith.mulf %948, %950 : vector<9x9xf32>
    %952 = arith.addf %946, %951 : vector<9x9xf32>
    %c0_469 = arith.constant 0 : index
    %c2_470 = arith.constant 2 : index
    %c2_471 = arith.constant 2 : index
    %c0_472 = arith.constant 0 : index
    %c0_473 = arith.constant 0 : index
    %953 = vector.load %arg1[%c0_469, %c2_470, %c2_471, %c0_472, %c0_473] : memref<1x4x4x9x9xf32, #tpu.memory_space<vmem>>, vector<1x1x1x9x9xf32>
    %954 = vector.shape_cast %953 : vector<1x1x1x9x9xf32> to vector<9x9xf32>
    %c20_474 = arith.constant 20 : index
    %955 = memref.load %arg2[%c20_474] : memref<208xf32, #tpu.memory_space<smem>>
    %956 = vector.broadcast %955 : f32 to vector<9x9xf32>
    %957 = arith.mulf %954, %956 : vector<9x9xf32>
    %958 = arith.addf %952, %957 : vector<9x9xf32>
    %c0_475 = arith.constant 0 : index
    %c2_476 = arith.constant 2 : index
    %c3_477 = arith.constant 3 : index
    %c0_478 = arith.constant 0 : index
    %c0_479 = arith.constant 0 : index
    %959 = vector.load %arg1[%c0_475, %c2_476, %c3_477, %c0_478, %c0_479] : memref<1x4x4x9x9xf32, #tpu.memory_space<vmem>>, vector<1x1x1x9x9xf32>
    %960 = vector.shape_cast %959 : vector<1x1x1x9x9xf32> to vector<9x9xf32>
    %c28_480 = arith.constant 28 : index
    %961 = memref.load %arg2[%c28_480] : memref<208xf32, #tpu.memory_space<smem>>
    %962 = vector.broadcast %961 : f32 to vector<9x9xf32>
    %963 = arith.mulf %960, %962 : vector<9x9xf32>
    %964 = arith.addf %958, %963 : vector<9x9xf32>
    %965 = vector.broadcast %874 : f32 to vector<9x9xf32>
    %966 = arith.addf %964, %965 : vector<9x9xf32>
    %cst_481 = arith.constant 0.000000e+00 : f32
    %967 = vector.broadcast %cst_481 : f32 to vector<9x9xf32>
    %968 = arith.cmpf oge, %966, %967 : vector<9x9xf32>
    %969 = vector.broadcast %875 : f32 to vector<9x9xf32>
    %970 = arith.mulf %969, %966 : vector<9x9xf32>
    %971 = arith.select %968, %966, %970 : vector<9x9xi1>, vector<9x9xf32>
    %cst_482 = arith.constant 0.000000e+00 : f32
    %972 = vector.broadcast %cst_482 : f32 to vector<9x9xf32>
    %973 = arith.select %16, %971, %972 : vector<9x9xi1>, vector<9x9xf32>
    %c0_483 = arith.constant 0 : index
    %c3_484 = arith.constant 3 : index
    %c0_485 = arith.constant 0 : index
    %c0_486 = arith.constant 0 : index
    %c0_487 = arith.constant 0 : index
    %974 = vector.load %arg1[%c0_483, %c3_484, %c0_485, %c0_486, %c0_487] : memref<1x4x4x9x9xf32, #tpu.memory_space<vmem>>, vector<1x1x1x9x9xf32>
    %975 = vector.shape_cast %974 : vector<1x1x1x9x9xf32> to vector<9x9xf32>
    %c4_488 = arith.constant 4 : index
    %976 = memref.load %arg2[%c4_488] : memref<208xf32, #tpu.memory_space<smem>>
    %977 = vector.broadcast %976 : f32 to vector<9x9xf32>
    %978 = arith.mulf %975, %977 : vector<9x9xf32>
    %c0_489 = arith.constant 0 : index
    %c3_490 = arith.constant 3 : index
    %c1_491 = arith.constant 1 : index
    %c0_492 = arith.constant 0 : index
    %c0_493 = arith.constant 0 : index
    %979 = vector.load %arg1[%c0_489, %c3_490, %c1_491, %c0_492, %c0_493] : memref<1x4x4x9x9xf32, #tpu.memory_space<vmem>>, vector<1x1x1x9x9xf32>
    %980 = vector.shape_cast %979 : vector<1x1x1x9x9xf32> to vector<9x9xf32>
    %c12_494 = arith.constant 12 : index
    %981 = memref.load %arg2[%c12_494] : memref<208xf32, #tpu.memory_space<smem>>
    %982 = vector.broadcast %981 : f32 to vector<9x9xf32>
    %983 = arith.mulf %980, %982 : vector<9x9xf32>
    %984 = arith.addf %978, %983 : vector<9x9xf32>
    %c0_495 = arith.constant 0 : index
    %c3_496 = arith.constant 3 : index
    %c2_497 = arith.constant 2 : index
    %c0_498 = arith.constant 0 : index
    %c0_499 = arith.constant 0 : index
    %985 = vector.load %arg1[%c0_495, %c3_496, %c2_497, %c0_498, %c0_499] : memref<1x4x4x9x9xf32, #tpu.memory_space<vmem>>, vector<1x1x1x9x9xf32>
    %986 = vector.shape_cast %985 : vector<1x1x1x9x9xf32> to vector<9x9xf32>
    %c20_500 = arith.constant 20 : index
    %987 = memref.load %arg2[%c20_500] : memref<208xf32, #tpu.memory_space<smem>>
    %988 = vector.broadcast %987 : f32 to vector<9x9xf32>
    %989 = arith.mulf %986, %988 : vector<9x9xf32>
    %990 = arith.addf %984, %989 : vector<9x9xf32>
    %c0_501 = arith.constant 0 : index
    %c3_502 = arith.constant 3 : index
    %c3_503 = arith.constant 3 : index
    %c0_504 = arith.constant 0 : index
    %c0_505 = arith.constant 0 : index
    %991 = vector.load %arg1[%c0_501, %c3_502, %c3_503, %c0_504, %c0_505] : memref<1x4x4x9x9xf32, #tpu.memory_space<vmem>>, vector<1x1x1x9x9xf32>
    %992 = vector.shape_cast %991 : vector<1x1x1x9x9xf32> to vector<9x9xf32>
    %c28_506 = arith.constant 28 : index
    %993 = memref.load %arg2[%c28_506] : memref<208xf32, #tpu.memory_space<smem>>
    %994 = vector.broadcast %993 : f32 to vector<9x9xf32>
    %995 = arith.mulf %992, %994 : vector<9x9xf32>
    %996 = arith.addf %990, %995 : vector<9x9xf32>
    %997 = vector.broadcast %874 : f32 to vector<9x9xf32>
    %998 = arith.addf %996, %997 : vector<9x9xf32>
    %cst_507 = arith.constant 0.000000e+00 : f32
    %999 = vector.broadcast %cst_507 : f32 to vector<9x9xf32>
    %1000 = arith.cmpf oge, %998, %999 : vector<9x9xf32>
    %1001 = vector.broadcast %875 : f32 to vector<9x9xf32>
    %1002 = arith.mulf %1001, %998 : vector<9x9xf32>
    %1003 = arith.select %1000, %998, %1002 : vector<9x9xi1>, vector<9x9xf32>
    %cst_508 = arith.constant 0.000000e+00 : f32
    %1004 = vector.broadcast %cst_508 : f32 to vector<9x9xf32>
    %1005 = arith.select %21, %1003, %1004 : vector<9x9xi1>, vector<9x9xf32>
    %1006 = vector.extract_strided_slice %909 {offsets = [0, 0], sizes = [8, 8], strides = [1, 1]} : vector<9x9xf32> to vector<8x8xf32>
    %c84 = arith.constant 84 : index
    %1007 = memref.load %arg2[%c84] : memref<208xf32, #tpu.memory_space<smem>>
    %1008 = vector.broadcast %1007 : f32 to vector<8x8xf32>
    %1009 = arith.mulf %1006, %1008 : vector<8x8xf32>
    %1010 = vector.extract_strided_slice %941 {offsets = [0, 0], sizes = [8, 8], strides = [1, 1]} : vector<9x9xf32> to vector<8x8xf32>
    %c85 = arith.constant 85 : index
    %1011 = memref.load %arg2[%c85] : memref<208xf32, #tpu.memory_space<smem>>
    %1012 = vector.broadcast %1011 : f32 to vector<8x8xf32>
    %1013 = arith.mulf %1010, %1012 : vector<8x8xf32>
    %1014 = arith.addf %1009, %1013 : vector<8x8xf32>
    %1015 = vector.extract_strided_slice %909 {offsets = [0, 1], sizes = [8, 8], strides = [1, 1]} : vector<9x9xf32> to vector<8x8xf32>
    %c86 = arith.constant 86 : index
    %1016 = memref.load %arg2[%c86] : memref<208xf32, #tpu.memory_space<smem>>
    %1017 = vector.broadcast %1016 : f32 to vector<8x8xf32>
    %1018 = arith.mulf %1015, %1017 : vector<8x8xf32>
    %1019 = arith.addf %1014, %1018 : vector<8x8xf32>
    %1020 = vector.extract_strided_slice %973 {offsets = [0, 0], sizes = [8, 8], strides = [1, 1]} : vector<9x9xf32> to vector<8x8xf32>
    %c87 = arith.constant 87 : index
    %1021 = memref.load %arg2[%c87] : memref<208xf32, #tpu.memory_space<smem>>
    %1022 = vector.broadcast %1021 : f32 to vector<8x8xf32>
    %1023 = arith.mulf %1020, %1022 : vector<8x8xf32>
    %1024 = arith.addf %1019, %1023 : vector<8x8xf32>
    %1025 = vector.extract_strided_slice %1005 {offsets = [0, 0], sizes = [8, 8], strides = [1, 1]} : vector<9x9xf32> to vector<8x8xf32>
    %c88 = arith.constant 88 : index
    %1026 = memref.load %arg2[%c88] : memref<208xf32, #tpu.memory_space<smem>>
    %1027 = vector.broadcast %1026 : f32 to vector<8x8xf32>
    %1028 = arith.mulf %1025, %1027 : vector<8x8xf32>
    %1029 = arith.addf %1024, %1028 : vector<8x8xf32>
    %1030 = vector.extract_strided_slice %973 {offsets = [0, 1], sizes = [8, 8], strides = [1, 1]} : vector<9x9xf32> to vector<8x8xf32>
    %c89 = arith.constant 89 : index
    %1031 = memref.load %arg2[%c89] : memref<208xf32, #tpu.memory_space<smem>>
    %1032 = vector.broadcast %1031 : f32 to vector<8x8xf32>
    %1033 = arith.mulf %1030, %1032 : vector<8x8xf32>
    %1034 = arith.addf %1029, %1033 : vector<8x8xf32>
    %1035 = vector.extract_strided_slice %909 {offsets = [1, 0], sizes = [8, 8], strides = [1, 1]} : vector<9x9xf32> to vector<8x8xf32>
    %c90 = arith.constant 90 : index
    %1036 = memref.load %arg2[%c90] : memref<208xf32, #tpu.memory_space<smem>>
    %1037 = vector.broadcast %1036 : f32 to vector<8x8xf32>
    %1038 = arith.mulf %1035, %1037 : vector<8x8xf32>
    %1039 = arith.addf %1034, %1038 : vector<8x8xf32>
    %1040 = vector.extract_strided_slice %941 {offsets = [1, 0], sizes = [8, 8], strides = [1, 1]} : vector<9x9xf32> to vector<8x8xf32>
    %c91 = arith.constant 91 : index
    %1041 = memref.load %arg2[%c91] : memref<208xf32, #tpu.memory_space<smem>>
    %1042 = vector.broadcast %1041 : f32 to vector<8x8xf32>
    %1043 = arith.mulf %1040, %1042 : vector<8x8xf32>
    %1044 = arith.addf %1039, %1043 : vector<8x8xf32>
    %1045 = vector.extract_strided_slice %909 {offsets = [1, 1], sizes = [8, 8], strides = [1, 1]} : vector<9x9xf32> to vector<8x8xf32>
    %c92 = arith.constant 92 : index
    %1046 = memref.load %arg2[%c92] : memref<208xf32, #tpu.memory_space<smem>>
    %1047 = vector.broadcast %1046 : f32 to vector<8x8xf32>
    %1048 = arith.mulf %1045, %1047 : vector<8x8xf32>
    %1049 = arith.addf %1044, %1048 : vector<8x8xf32>
    %1050 = vector.broadcast %876 : f32 to vector<8x8xf32>
    %1051 = arith.addf %1049, %1050 : vector<8x8xf32>
    %cst_509 = arith.constant 0.000000e+00 : f32
    %1052 = vector.broadcast %cst_509 : f32 to vector<8x8xf32>
    %1053 = arith.cmpf oge, %1051, %1052 : vector<8x8xf32>
    %1054 = vector.broadcast %877 : f32 to vector<8x8xf32>
    %1055 = arith.mulf %1054, %1051 : vector<8x8xf32>
    %1056 = arith.select %1053, %1051, %1055 : vector<8x8xi1>, vector<8x8xf32>
    %c168 = arith.constant 168 : index
    %1057 = memref.load %arg2[%c168] : memref<208xf32, #tpu.memory_space<smem>>
    %1058 = vector.broadcast %1057 : f32 to vector<8x8xf32>
    %1059 = arith.mulf %1056, %1058 : vector<8x8xf32>
    %1060 = arith.addf %845, %1059 : vector<8x8xf32>
    %c169 = arith.constant 169 : index
    %1061 = memref.load %arg2[%c169] : memref<208xf32, #tpu.memory_space<smem>>
    %1062 = vector.broadcast %1061 : f32 to vector<8x8xf32>
    %1063 = arith.mulf %1056, %1062 : vector<8x8xf32>
    %1064 = arith.addf %849, %1063 : vector<8x8xf32>
    %c170 = arith.constant 170 : index
    %1065 = memref.load %arg2[%c170] : memref<208xf32, #tpu.memory_space<smem>>
    %1066 = vector.broadcast %1065 : f32 to vector<8x8xf32>
    %1067 = arith.mulf %1056, %1066 : vector<8x8xf32>
    %1068 = arith.addf %853, %1067 : vector<8x8xf32>
    %c171 = arith.constant 171 : index
    %1069 = memref.load %arg2[%c171] : memref<208xf32, #tpu.memory_space<smem>>
    %1070 = vector.broadcast %1069 : f32 to vector<8x8xf32>
    %1071 = arith.mulf %1056, %1070 : vector<8x8xf32>
    %1072 = arith.addf %857, %1071 : vector<8x8xf32>
    %c172 = arith.constant 172 : index
    %1073 = memref.load %arg2[%c172] : memref<208xf32, #tpu.memory_space<smem>>
    %1074 = vector.broadcast %1073 : f32 to vector<8x8xf32>
    %1075 = arith.mulf %1056, %1074 : vector<8x8xf32>
    %1076 = arith.addf %861, %1075 : vector<8x8xf32>
    %c173 = arith.constant 173 : index
    %1077 = memref.load %arg2[%c173] : memref<208xf32, #tpu.memory_space<smem>>
    %1078 = vector.broadcast %1077 : f32 to vector<8x8xf32>
    %1079 = arith.mulf %1056, %1078 : vector<8x8xf32>
    %1080 = arith.addf %865, %1079 : vector<8x8xf32>
    %c174 = arith.constant 174 : index
    %1081 = memref.load %arg2[%c174] : memref<208xf32, #tpu.memory_space<smem>>
    %1082 = vector.broadcast %1081 : f32 to vector<8x8xf32>
    %1083 = arith.mulf %1056, %1082 : vector<8x8xf32>
    %1084 = arith.addf %869, %1083 : vector<8x8xf32>
    %c175 = arith.constant 175 : index
    %1085 = memref.load %arg2[%c175] : memref<208xf32, #tpu.memory_space<smem>>
    %1086 = vector.broadcast %1085 : f32 to vector<8x8xf32>
    %1087 = arith.mulf %1056, %1086 : vector<8x8xf32>
    %1088 = arith.addf %873, %1087 : vector<8x8xf32>
    %c37 = arith.constant 37 : index
    %1089 = memref.load %arg2[%c37] : memref<208xf32, #tpu.memory_space<smem>>
    %c45 = arith.constant 45 : index
    %1090 = memref.load %arg2[%c45] : memref<208xf32, #tpu.memory_space<smem>>
    %c125 = arith.constant 125 : index
    %1091 = memref.load %arg2[%c125] : memref<208xf32, #tpu.memory_space<smem>>
    %c133 = arith.constant 133 : index
    %1092 = memref.load %arg2[%c133] : memref<208xf32, #tpu.memory_space<smem>>
    %c0_510 = arith.constant 0 : index
    %c0_511 = arith.constant 0 : index
    %c0_512 = arith.constant 0 : index
    %c0_513 = arith.constant 0 : index
    %c0_514 = arith.constant 0 : index
    %1093 = vector.load %arg1[%c0_510, %c0_511, %c0_512, %c0_513, %c0_514] : memref<1x4x4x9x9xf32, #tpu.memory_space<vmem>>, vector<1x1x1x9x9xf32>
    %1094 = vector.shape_cast %1093 : vector<1x1x1x9x9xf32> to vector<9x9xf32>
    %c5 = arith.constant 5 : index
    %1095 = memref.load %arg2[%c5] : memref<208xf32, #tpu.memory_space<smem>>
    %1096 = vector.broadcast %1095 : f32 to vector<9x9xf32>
    %1097 = arith.mulf %1094, %1096 : vector<9x9xf32>
    %c0_515 = arith.constant 0 : index
    %c0_516 = arith.constant 0 : index
    %c1_517 = arith.constant 1 : index
    %c0_518 = arith.constant 0 : index
    %c0_519 = arith.constant 0 : index
    %1098 = vector.load %arg1[%c0_515, %c0_516, %c1_517, %c0_518, %c0_519] : memref<1x4x4x9x9xf32, #tpu.memory_space<vmem>>, vector<1x1x1x9x9xf32>
    %1099 = vector.shape_cast %1098 : vector<1x1x1x9x9xf32> to vector<9x9xf32>
    %c13 = arith.constant 13 : index
    %1100 = memref.load %arg2[%c13] : memref<208xf32, #tpu.memory_space<smem>>
    %1101 = vector.broadcast %1100 : f32 to vector<9x9xf32>
    %1102 = arith.mulf %1099, %1101 : vector<9x9xf32>
    %1103 = arith.addf %1097, %1102 : vector<9x9xf32>
    %c0_520 = arith.constant 0 : index
    %c0_521 = arith.constant 0 : index
    %c2_522 = arith.constant 2 : index
    %c0_523 = arith.constant 0 : index
    %c0_524 = arith.constant 0 : index
    %1104 = vector.load %arg1[%c0_520, %c0_521, %c2_522, %c0_523, %c0_524] : memref<1x4x4x9x9xf32, #tpu.memory_space<vmem>>, vector<1x1x1x9x9xf32>
    %1105 = vector.shape_cast %1104 : vector<1x1x1x9x9xf32> to vector<9x9xf32>
    %c21 = arith.constant 21 : index
    %1106 = memref.load %arg2[%c21] : memref<208xf32, #tpu.memory_space<smem>>
    %1107 = vector.broadcast %1106 : f32 to vector<9x9xf32>
    %1108 = arith.mulf %1105, %1107 : vector<9x9xf32>
    %1109 = arith.addf %1103, %1108 : vector<9x9xf32>
    %c0_525 = arith.constant 0 : index
    %c0_526 = arith.constant 0 : index
    %c3_527 = arith.constant 3 : index
    %c0_528 = arith.constant 0 : index
    %c0_529 = arith.constant 0 : index
    %1110 = vector.load %arg1[%c0_525, %c0_526, %c3_527, %c0_528, %c0_529] : memref<1x4x4x9x9xf32, #tpu.memory_space<vmem>>, vector<1x1x1x9x9xf32>
    %1111 = vector.shape_cast %1110 : vector<1x1x1x9x9xf32> to vector<9x9xf32>
    %c29 = arith.constant 29 : index
    %1112 = memref.load %arg2[%c29] : memref<208xf32, #tpu.memory_space<smem>>
    %1113 = vector.broadcast %1112 : f32 to vector<9x9xf32>
    %1114 = arith.mulf %1111, %1113 : vector<9x9xf32>
    %1115 = arith.addf %1109, %1114 : vector<9x9xf32>
    %1116 = vector.broadcast %1089 : f32 to vector<9x9xf32>
    %1117 = arith.addf %1115, %1116 : vector<9x9xf32>
    %cst_530 = arith.constant 0.000000e+00 : f32
    %1118 = vector.broadcast %cst_530 : f32 to vector<9x9xf32>
    %1119 = arith.cmpf oge, %1117, %1118 : vector<9x9xf32>
    %1120 = vector.broadcast %1090 : f32 to vector<9x9xf32>
    %1121 = arith.mulf %1120, %1117 : vector<9x9xf32>
    %1122 = arith.select %1119, %1117, %1121 : vector<9x9xi1>, vector<9x9xf32>
    %cst_531 = arith.constant 0.000000e+00 : f32
    %1123 = vector.broadcast %cst_531 : f32 to vector<9x9xf32>
    %1124 = arith.select %6, %1122, %1123 : vector<9x9xi1>, vector<9x9xf32>
    %c0_532 = arith.constant 0 : index
    %c1_533 = arith.constant 1 : index
    %c0_534 = arith.constant 0 : index
    %c0_535 = arith.constant 0 : index
    %c0_536 = arith.constant 0 : index
    %1125 = vector.load %arg1[%c0_532, %c1_533, %c0_534, %c0_535, %c0_536] : memref<1x4x4x9x9xf32, #tpu.memory_space<vmem>>, vector<1x1x1x9x9xf32>
    %1126 = vector.shape_cast %1125 : vector<1x1x1x9x9xf32> to vector<9x9xf32>
    %c5_537 = arith.constant 5 : index
    %1127 = memref.load %arg2[%c5_537] : memref<208xf32, #tpu.memory_space<smem>>
    %1128 = vector.broadcast %1127 : f32 to vector<9x9xf32>
    %1129 = arith.mulf %1126, %1128 : vector<9x9xf32>
    %c0_538 = arith.constant 0 : index
    %c1_539 = arith.constant 1 : index
    %c1_540 = arith.constant 1 : index
    %c0_541 = arith.constant 0 : index
    %c0_542 = arith.constant 0 : index
    %1130 = vector.load %arg1[%c0_538, %c1_539, %c1_540, %c0_541, %c0_542] : memref<1x4x4x9x9xf32, #tpu.memory_space<vmem>>, vector<1x1x1x9x9xf32>
    %1131 = vector.shape_cast %1130 : vector<1x1x1x9x9xf32> to vector<9x9xf32>
    %c13_543 = arith.constant 13 : index
    %1132 = memref.load %arg2[%c13_543] : memref<208xf32, #tpu.memory_space<smem>>
    %1133 = vector.broadcast %1132 : f32 to vector<9x9xf32>
    %1134 = arith.mulf %1131, %1133 : vector<9x9xf32>
    %1135 = arith.addf %1129, %1134 : vector<9x9xf32>
    %c0_544 = arith.constant 0 : index
    %c1_545 = arith.constant 1 : index
    %c2_546 = arith.constant 2 : index
    %c0_547 = arith.constant 0 : index
    %c0_548 = arith.constant 0 : index
    %1136 = vector.load %arg1[%c0_544, %c1_545, %c2_546, %c0_547, %c0_548] : memref<1x4x4x9x9xf32, #tpu.memory_space<vmem>>, vector<1x1x1x9x9xf32>
    %1137 = vector.shape_cast %1136 : vector<1x1x1x9x9xf32> to vector<9x9xf32>
    %c21_549 = arith.constant 21 : index
    %1138 = memref.load %arg2[%c21_549] : memref<208xf32, #tpu.memory_space<smem>>
    %1139 = vector.broadcast %1138 : f32 to vector<9x9xf32>
    %1140 = arith.mulf %1137, %1139 : vector<9x9xf32>
    %1141 = arith.addf %1135, %1140 : vector<9x9xf32>
    %c0_550 = arith.constant 0 : index
    %c1_551 = arith.constant 1 : index
    %c3_552 = arith.constant 3 : index
    %c0_553 = arith.constant 0 : index
    %c0_554 = arith.constant 0 : index
    %1142 = vector.load %arg1[%c0_550, %c1_551, %c3_552, %c0_553, %c0_554] : memref<1x4x4x9x9xf32, #tpu.memory_space<vmem>>, vector<1x1x1x9x9xf32>
    %1143 = vector.shape_cast %1142 : vector<1x1x1x9x9xf32> to vector<9x9xf32>
    %c29_555 = arith.constant 29 : index
    %1144 = memref.load %arg2[%c29_555] : memref<208xf32, #tpu.memory_space<smem>>
    %1145 = vector.broadcast %1144 : f32 to vector<9x9xf32>
    %1146 = arith.mulf %1143, %1145 : vector<9x9xf32>
    %1147 = arith.addf %1141, %1146 : vector<9x9xf32>
    %1148 = vector.broadcast %1089 : f32 to vector<9x9xf32>
    %1149 = arith.addf %1147, %1148 : vector<9x9xf32>
    %cst_556 = arith.constant 0.000000e+00 : f32
    %1150 = vector.broadcast %cst_556 : f32 to vector<9x9xf32>
    %1151 = arith.cmpf oge, %1149, %1150 : vector<9x9xf32>
    %1152 = vector.broadcast %1090 : f32 to vector<9x9xf32>
    %1153 = arith.mulf %1152, %1149 : vector<9x9xf32>
    %1154 = arith.select %1151, %1149, %1153 : vector<9x9xi1>, vector<9x9xf32>
    %cst_557 = arith.constant 0.000000e+00 : f32
    %1155 = vector.broadcast %cst_557 : f32 to vector<9x9xf32>
    %1156 = arith.select %11, %1154, %1155 : vector<9x9xi1>, vector<9x9xf32>
    %c0_558 = arith.constant 0 : index
    %c2_559 = arith.constant 2 : index
    %c0_560 = arith.constant 0 : index
    %c0_561 = arith.constant 0 : index
    %c0_562 = arith.constant 0 : index
    %1157 = vector.load %arg1[%c0_558, %c2_559, %c0_560, %c0_561, %c0_562] : memref<1x4x4x9x9xf32, #tpu.memory_space<vmem>>, vector<1x1x1x9x9xf32>
    %1158 = vector.shape_cast %1157 : vector<1x1x1x9x9xf32> to vector<9x9xf32>
    %c5_563 = arith.constant 5 : index
    %1159 = memref.load %arg2[%c5_563] : memref<208xf32, #tpu.memory_space<smem>>
    %1160 = vector.broadcast %1159 : f32 to vector<9x9xf32>
    %1161 = arith.mulf %1158, %1160 : vector<9x9xf32>
    %c0_564 = arith.constant 0 : index
    %c2_565 = arith.constant 2 : index
    %c1_566 = arith.constant 1 : index
    %c0_567 = arith.constant 0 : index
    %c0_568 = arith.constant 0 : index
    %1162 = vector.load %arg1[%c0_564, %c2_565, %c1_566, %c0_567, %c0_568] : memref<1x4x4x9x9xf32, #tpu.memory_space<vmem>>, vector<1x1x1x9x9xf32>
    %1163 = vector.shape_cast %1162 : vector<1x1x1x9x9xf32> to vector<9x9xf32>
    %c13_569 = arith.constant 13 : index
    %1164 = memref.load %arg2[%c13_569] : memref<208xf32, #tpu.memory_space<smem>>
    %1165 = vector.broadcast %1164 : f32 to vector<9x9xf32>
    %1166 = arith.mulf %1163, %1165 : vector<9x9xf32>
    %1167 = arith.addf %1161, %1166 : vector<9x9xf32>
    %c0_570 = arith.constant 0 : index
    %c2_571 = arith.constant 2 : index
    %c2_572 = arith.constant 2 : index
    %c0_573 = arith.constant 0 : index
    %c0_574 = arith.constant 0 : index
    %1168 = vector.load %arg1[%c0_570, %c2_571, %c2_572, %c0_573, %c0_574] : memref<1x4x4x9x9xf32, #tpu.memory_space<vmem>>, vector<1x1x1x9x9xf32>
    %1169 = vector.shape_cast %1168 : vector<1x1x1x9x9xf32> to vector<9x9xf32>
    %c21_575 = arith.constant 21 : index
    %1170 = memref.load %arg2[%c21_575] : memref<208xf32, #tpu.memory_space<smem>>
    %1171 = vector.broadcast %1170 : f32 to vector<9x9xf32>
    %1172 = arith.mulf %1169, %1171 : vector<9x9xf32>
    %1173 = arith.addf %1167, %1172 : vector<9x9xf32>
    %c0_576 = arith.constant 0 : index
    %c2_577 = arith.constant 2 : index
    %c3_578 = arith.constant 3 : index
    %c0_579 = arith.constant 0 : index
    %c0_580 = arith.constant 0 : index
    %1174 = vector.load %arg1[%c0_576, %c2_577, %c3_578, %c0_579, %c0_580] : memref<1x4x4x9x9xf32, #tpu.memory_space<vmem>>, vector<1x1x1x9x9xf32>
    %1175 = vector.shape_cast %1174 : vector<1x1x1x9x9xf32> to vector<9x9xf32>
    %c29_581 = arith.constant 29 : index
    %1176 = memref.load %arg2[%c29_581] : memref<208xf32, #tpu.memory_space<smem>>
    %1177 = vector.broadcast %1176 : f32 to vector<9x9xf32>
    %1178 = arith.mulf %1175, %1177 : vector<9x9xf32>
    %1179 = arith.addf %1173, %1178 : vector<9x9xf32>
    %1180 = vector.broadcast %1089 : f32 to vector<9x9xf32>
    %1181 = arith.addf %1179, %1180 : vector<9x9xf32>
    %cst_582 = arith.constant 0.000000e+00 : f32
    %1182 = vector.broadcast %cst_582 : f32 to vector<9x9xf32>
    %1183 = arith.cmpf oge, %1181, %1182 : vector<9x9xf32>
    %1184 = vector.broadcast %1090 : f32 to vector<9x9xf32>
    %1185 = arith.mulf %1184, %1181 : vector<9x9xf32>
    %1186 = arith.select %1183, %1181, %1185 : vector<9x9xi1>, vector<9x9xf32>
    %cst_583 = arith.constant 0.000000e+00 : f32
    %1187 = vector.broadcast %cst_583 : f32 to vector<9x9xf32>
    %1188 = arith.select %16, %1186, %1187 : vector<9x9xi1>, vector<9x9xf32>
    %c0_584 = arith.constant 0 : index
    %c3_585 = arith.constant 3 : index
    %c0_586 = arith.constant 0 : index
    %c0_587 = arith.constant 0 : index
    %c0_588 = arith.constant 0 : index
    %1189 = vector.load %arg1[%c0_584, %c3_585, %c0_586, %c0_587, %c0_588] : memref<1x4x4x9x9xf32, #tpu.memory_space<vmem>>, vector<1x1x1x9x9xf32>
    %1190 = vector.shape_cast %1189 : vector<1x1x1x9x9xf32> to vector<9x9xf32>
    %c5_589 = arith.constant 5 : index
    %1191 = memref.load %arg2[%c5_589] : memref<208xf32, #tpu.memory_space<smem>>
    %1192 = vector.broadcast %1191 : f32 to vector<9x9xf32>
    %1193 = arith.mulf %1190, %1192 : vector<9x9xf32>
    %c0_590 = arith.constant 0 : index
    %c3_591 = arith.constant 3 : index
    %c1_592 = arith.constant 1 : index
    %c0_593 = arith.constant 0 : index
    %c0_594 = arith.constant 0 : index
    %1194 = vector.load %arg1[%c0_590, %c3_591, %c1_592, %c0_593, %c0_594] : memref<1x4x4x9x9xf32, #tpu.memory_space<vmem>>, vector<1x1x1x9x9xf32>
    %1195 = vector.shape_cast %1194 : vector<1x1x1x9x9xf32> to vector<9x9xf32>
    %c13_595 = arith.constant 13 : index
    %1196 = memref.load %arg2[%c13_595] : memref<208xf32, #tpu.memory_space<smem>>
    %1197 = vector.broadcast %1196 : f32 to vector<9x9xf32>
    %1198 = arith.mulf %1195, %1197 : vector<9x9xf32>
    %1199 = arith.addf %1193, %1198 : vector<9x9xf32>
    %c0_596 = arith.constant 0 : index
    %c3_597 = arith.constant 3 : index
    %c2_598 = arith.constant 2 : index
    %c0_599 = arith.constant 0 : index
    %c0_600 = arith.constant 0 : index
    %1200 = vector.load %arg1[%c0_596, %c3_597, %c2_598, %c0_599, %c0_600] : memref<1x4x4x9x9xf32, #tpu.memory_space<vmem>>, vector<1x1x1x9x9xf32>
    %1201 = vector.shape_cast %1200 : vector<1x1x1x9x9xf32> to vector<9x9xf32>
    %c21_601 = arith.constant 21 : index
    %1202 = memref.load %arg2[%c21_601] : memref<208xf32, #tpu.memory_space<smem>>
    %1203 = vector.broadcast %1202 : f32 to vector<9x9xf32>
    %1204 = arith.mulf %1201, %1203 : vector<9x9xf32>
    %1205 = arith.addf %1199, %1204 : vector<9x9xf32>
    %c0_602 = arith.constant 0 : index
    %c3_603 = arith.constant 3 : index
    %c3_604 = arith.constant 3 : index
    %c0_605 = arith.constant 0 : index
    %c0_606 = arith.constant 0 : index
    %1206 = vector.load %arg1[%c0_602, %c3_603, %c3_604, %c0_605, %c0_606] : memref<1x4x4x9x9xf32, #tpu.memory_space<vmem>>, vector<1x1x1x9x9xf32>
    %1207 = vector.shape_cast %1206 : vector<1x1x1x9x9xf32> to vector<9x9xf32>
    %c29_607 = arith.constant 29 : index
    %1208 = memref.load %arg2[%c29_607] : memref<208xf32, #tpu.memory_space<smem>>
    %1209 = vector.broadcast %1208 : f32 to vector<9x9xf32>
    %1210 = arith.mulf %1207, %1209 : vector<9x9xf32>
    %1211 = arith.addf %1205, %1210 : vector<9x9xf32>
    %1212 = vector.broadcast %1089 : f32 to vector<9x9xf32>
    %1213 = arith.addf %1211, %1212 : vector<9x9xf32>
    %cst_608 = arith.constant 0.000000e+00 : f32
    %1214 = vector.broadcast %cst_608 : f32 to vector<9x9xf32>
    %1215 = arith.cmpf oge, %1213, %1214 : vector<9x9xf32>
    %1216 = vector.broadcast %1090 : f32 to vector<9x9xf32>
    %1217 = arith.mulf %1216, %1213 : vector<9x9xf32>
    %1218 = arith.select %1215, %1213, %1217 : vector<9x9xi1>, vector<9x9xf32>
    %cst_609 = arith.constant 0.000000e+00 : f32
    %1219 = vector.broadcast %cst_609 : f32 to vector<9x9xf32>
    %1220 = arith.select %21, %1218, %1219 : vector<9x9xi1>, vector<9x9xf32>
    %1221 = vector.extract_strided_slice %1124 {offsets = [0, 0], sizes = [8, 8], strides = [1, 1]} : vector<9x9xf32> to vector<8x8xf32>
    %c93 = arith.constant 93 : index
    %1222 = memref.load %arg2[%c93] : memref<208xf32, #tpu.memory_space<smem>>
    %1223 = vector.broadcast %1222 : f32 to vector<8x8xf32>
    %1224 = arith.mulf %1221, %1223 : vector<8x8xf32>
    %1225 = vector.extract_strided_slice %1156 {offsets = [0, 0], sizes = [8, 8], strides = [1, 1]} : vector<9x9xf32> to vector<8x8xf32>
    %c94 = arith.constant 94 : index
    %1226 = memref.load %arg2[%c94] : memref<208xf32, #tpu.memory_space<smem>>
    %1227 = vector.broadcast %1226 : f32 to vector<8x8xf32>
    %1228 = arith.mulf %1225, %1227 : vector<8x8xf32>
    %1229 = arith.addf %1224, %1228 : vector<8x8xf32>
    %1230 = vector.extract_strided_slice %1124 {offsets = [0, 1], sizes = [8, 8], strides = [1, 1]} : vector<9x9xf32> to vector<8x8xf32>
    %c95 = arith.constant 95 : index
    %1231 = memref.load %arg2[%c95] : memref<208xf32, #tpu.memory_space<smem>>
    %1232 = vector.broadcast %1231 : f32 to vector<8x8xf32>
    %1233 = arith.mulf %1230, %1232 : vector<8x8xf32>
    %1234 = arith.addf %1229, %1233 : vector<8x8xf32>
    %1235 = vector.extract_strided_slice %1188 {offsets = [0, 0], sizes = [8, 8], strides = [1, 1]} : vector<9x9xf32> to vector<8x8xf32>
    %c96 = arith.constant 96 : index
    %1236 = memref.load %arg2[%c96] : memref<208xf32, #tpu.memory_space<smem>>
    %1237 = vector.broadcast %1236 : f32 to vector<8x8xf32>
    %1238 = arith.mulf %1235, %1237 : vector<8x8xf32>
    %1239 = arith.addf %1234, %1238 : vector<8x8xf32>
    %1240 = vector.extract_strided_slice %1220 {offsets = [0, 0], sizes = [8, 8], strides = [1, 1]} : vector<9x9xf32> to vector<8x8xf32>
    %c97 = arith.constant 97 : index
    %1241 = memref.load %arg2[%c97] : memref<208xf32, #tpu.memory_space<smem>>
    %1242 = vector.broadcast %1241 : f32 to vector<8x8xf32>
    %1243 = arith.mulf %1240, %1242 : vector<8x8xf32>
    %1244 = arith.addf %1239, %1243 : vector<8x8xf32>
    %1245 = vector.extract_strided_slice %1188 {offsets = [0, 1], sizes = [8, 8], strides = [1, 1]} : vector<9x9xf32> to vector<8x8xf32>
    %c98 = arith.constant 98 : index
    %1246 = memref.load %arg2[%c98] : memref<208xf32, #tpu.memory_space<smem>>
    %1247 = vector.broadcast %1246 : f32 to vector<8x8xf32>
    %1248 = arith.mulf %1245, %1247 : vector<8x8xf32>
    %1249 = arith.addf %1244, %1248 : vector<8x8xf32>
    %1250 = vector.extract_strided_slice %1124 {offsets = [1, 0], sizes = [8, 8], strides = [1, 1]} : vector<9x9xf32> to vector<8x8xf32>
    %c99 = arith.constant 99 : index
    %1251 = memref.load %arg2[%c99] : memref<208xf32, #tpu.memory_space<smem>>
    %1252 = vector.broadcast %1251 : f32 to vector<8x8xf32>
    %1253 = arith.mulf %1250, %1252 : vector<8x8xf32>
    %1254 = arith.addf %1249, %1253 : vector<8x8xf32>
    %1255 = vector.extract_strided_slice %1156 {offsets = [1, 0], sizes = [8, 8], strides = [1, 1]} : vector<9x9xf32> to vector<8x8xf32>
    %c100 = arith.constant 100 : index
    %1256 = memref.load %arg2[%c100] : memref<208xf32, #tpu.memory_space<smem>>
    %1257 = vector.broadcast %1256 : f32 to vector<8x8xf32>
    %1258 = arith.mulf %1255, %1257 : vector<8x8xf32>
    %1259 = arith.addf %1254, %1258 : vector<8x8xf32>
    %1260 = vector.extract_strided_slice %1124 {offsets = [1, 1], sizes = [8, 8], strides = [1, 1]} : vector<9x9xf32> to vector<8x8xf32>
    %c101 = arith.constant 101 : index
    %1261 = memref.load %arg2[%c101] : memref<208xf32, #tpu.memory_space<smem>>
    %1262 = vector.broadcast %1261 : f32 to vector<8x8xf32>
    %1263 = arith.mulf %1260, %1262 : vector<8x8xf32>
    %1264 = arith.addf %1259, %1263 : vector<8x8xf32>
    %1265 = vector.broadcast %1091 : f32 to vector<8x8xf32>
    %1266 = arith.addf %1264, %1265 : vector<8x8xf32>
    %cst_610 = arith.constant 0.000000e+00 : f32
    %1267 = vector.broadcast %cst_610 : f32 to vector<8x8xf32>
    %1268 = arith.cmpf oge, %1266, %1267 : vector<8x8xf32>
    %1269 = vector.broadcast %1092 : f32 to vector<8x8xf32>
    %1270 = arith.mulf %1269, %1266 : vector<8x8xf32>
    %1271 = arith.select %1268, %1266, %1270 : vector<8x8xi1>, vector<8x8xf32>
    %c176 = arith.constant 176 : index
    %1272 = memref.load %arg2[%c176] : memref<208xf32, #tpu.memory_space<smem>>
    %1273 = vector.broadcast %1272 : f32 to vector<8x8xf32>
    %1274 = arith.mulf %1271, %1273 : vector<8x8xf32>
    %1275 = arith.addf %1060, %1274 : vector<8x8xf32>
    %c177 = arith.constant 177 : index
    %1276 = memref.load %arg2[%c177] : memref<208xf32, #tpu.memory_space<smem>>
    %1277 = vector.broadcast %1276 : f32 to vector<8x8xf32>
    %1278 = arith.mulf %1271, %1277 : vector<8x8xf32>
    %1279 = arith.addf %1064, %1278 : vector<8x8xf32>
    %c178 = arith.constant 178 : index
    %1280 = memref.load %arg2[%c178] : memref<208xf32, #tpu.memory_space<smem>>
    %1281 = vector.broadcast %1280 : f32 to vector<8x8xf32>
    %1282 = arith.mulf %1271, %1281 : vector<8x8xf32>
    %1283 = arith.addf %1068, %1282 : vector<8x8xf32>
    %c179 = arith.constant 179 : index
    %1284 = memref.load %arg2[%c179] : memref<208xf32, #tpu.memory_space<smem>>
    %1285 = vector.broadcast %1284 : f32 to vector<8x8xf32>
    %1286 = arith.mulf %1271, %1285 : vector<8x8xf32>
    %1287 = arith.addf %1072, %1286 : vector<8x8xf32>
    %c180 = arith.constant 180 : index
    %1288 = memref.load %arg2[%c180] : memref<208xf32, #tpu.memory_space<smem>>
    %1289 = vector.broadcast %1288 : f32 to vector<8x8xf32>
    %1290 = arith.mulf %1271, %1289 : vector<8x8xf32>
    %1291 = arith.addf %1076, %1290 : vector<8x8xf32>
    %c181 = arith.constant 181 : index
    %1292 = memref.load %arg2[%c181] : memref<208xf32, #tpu.memory_space<smem>>
    %1293 = vector.broadcast %1292 : f32 to vector<8x8xf32>
    %1294 = arith.mulf %1271, %1293 : vector<8x8xf32>
    %1295 = arith.addf %1080, %1294 : vector<8x8xf32>
    %c182 = arith.constant 182 : index
    %1296 = memref.load %arg2[%c182] : memref<208xf32, #tpu.memory_space<smem>>
    %1297 = vector.broadcast %1296 : f32 to vector<8x8xf32>
    %1298 = arith.mulf %1271, %1297 : vector<8x8xf32>
    %1299 = arith.addf %1084, %1298 : vector<8x8xf32>
    %c183 = arith.constant 183 : index
    %1300 = memref.load %arg2[%c183] : memref<208xf32, #tpu.memory_space<smem>>
    %1301 = vector.broadcast %1300 : f32 to vector<8x8xf32>
    %1302 = arith.mulf %1271, %1301 : vector<8x8xf32>
    %1303 = arith.addf %1088, %1302 : vector<8x8xf32>
    %c38 = arith.constant 38 : index
    %1304 = memref.load %arg2[%c38] : memref<208xf32, #tpu.memory_space<smem>>
    %c46 = arith.constant 46 : index
    %1305 = memref.load %arg2[%c46] : memref<208xf32, #tpu.memory_space<smem>>
    %c126 = arith.constant 126 : index
    %1306 = memref.load %arg2[%c126] : memref<208xf32, #tpu.memory_space<smem>>
    %c134 = arith.constant 134 : index
    %1307 = memref.load %arg2[%c134] : memref<208xf32, #tpu.memory_space<smem>>
    %c0_611 = arith.constant 0 : index
    %c0_612 = arith.constant 0 : index
    %c0_613 = arith.constant 0 : index
    %c0_614 = arith.constant 0 : index
    %c0_615 = arith.constant 0 : index
    %1308 = vector.load %arg1[%c0_611, %c0_612, %c0_613, %c0_614, %c0_615] : memref<1x4x4x9x9xf32, #tpu.memory_space<vmem>>, vector<1x1x1x9x9xf32>
    %1309 = vector.shape_cast %1308 : vector<1x1x1x9x9xf32> to vector<9x9xf32>
    %c6 = arith.constant 6 : index
    %1310 = memref.load %arg2[%c6] : memref<208xf32, #tpu.memory_space<smem>>
    %1311 = vector.broadcast %1310 : f32 to vector<9x9xf32>
    %1312 = arith.mulf %1309, %1311 : vector<9x9xf32>
    %c0_616 = arith.constant 0 : index
    %c0_617 = arith.constant 0 : index
    %c1_618 = arith.constant 1 : index
    %c0_619 = arith.constant 0 : index
    %c0_620 = arith.constant 0 : index
    %1313 = vector.load %arg1[%c0_616, %c0_617, %c1_618, %c0_619, %c0_620] : memref<1x4x4x9x9xf32, #tpu.memory_space<vmem>>, vector<1x1x1x9x9xf32>
    %1314 = vector.shape_cast %1313 : vector<1x1x1x9x9xf32> to vector<9x9xf32>
    %c14 = arith.constant 14 : index
    %1315 = memref.load %arg2[%c14] : memref<208xf32, #tpu.memory_space<smem>>
    %1316 = vector.broadcast %1315 : f32 to vector<9x9xf32>
    %1317 = arith.mulf %1314, %1316 : vector<9x9xf32>
    %1318 = arith.addf %1312, %1317 : vector<9x9xf32>
    %c0_621 = arith.constant 0 : index
    %c0_622 = arith.constant 0 : index
    %c2_623 = arith.constant 2 : index
    %c0_624 = arith.constant 0 : index
    %c0_625 = arith.constant 0 : index
    %1319 = vector.load %arg1[%c0_621, %c0_622, %c2_623, %c0_624, %c0_625] : memref<1x4x4x9x9xf32, #tpu.memory_space<vmem>>, vector<1x1x1x9x9xf32>
    %1320 = vector.shape_cast %1319 : vector<1x1x1x9x9xf32> to vector<9x9xf32>
    %c22 = arith.constant 22 : index
    %1321 = memref.load %arg2[%c22] : memref<208xf32, #tpu.memory_space<smem>>
    %1322 = vector.broadcast %1321 : f32 to vector<9x9xf32>
    %1323 = arith.mulf %1320, %1322 : vector<9x9xf32>
    %1324 = arith.addf %1318, %1323 : vector<9x9xf32>
    %c0_626 = arith.constant 0 : index
    %c0_627 = arith.constant 0 : index
    %c3_628 = arith.constant 3 : index
    %c0_629 = arith.constant 0 : index
    %c0_630 = arith.constant 0 : index
    %1325 = vector.load %arg1[%c0_626, %c0_627, %c3_628, %c0_629, %c0_630] : memref<1x4x4x9x9xf32, #tpu.memory_space<vmem>>, vector<1x1x1x9x9xf32>
    %1326 = vector.shape_cast %1325 : vector<1x1x1x9x9xf32> to vector<9x9xf32>
    %c30 = arith.constant 30 : index
    %1327 = memref.load %arg2[%c30] : memref<208xf32, #tpu.memory_space<smem>>
    %1328 = vector.broadcast %1327 : f32 to vector<9x9xf32>
    %1329 = arith.mulf %1326, %1328 : vector<9x9xf32>
    %1330 = arith.addf %1324, %1329 : vector<9x9xf32>
    %1331 = vector.broadcast %1304 : f32 to vector<9x9xf32>
    %1332 = arith.addf %1330, %1331 : vector<9x9xf32>
    %cst_631 = arith.constant 0.000000e+00 : f32
    %1333 = vector.broadcast %cst_631 : f32 to vector<9x9xf32>
    %1334 = arith.cmpf oge, %1332, %1333 : vector<9x9xf32>
    %1335 = vector.broadcast %1305 : f32 to vector<9x9xf32>
    %1336 = arith.mulf %1335, %1332 : vector<9x9xf32>
    %1337 = arith.select %1334, %1332, %1336 : vector<9x9xi1>, vector<9x9xf32>
    %cst_632 = arith.constant 0.000000e+00 : f32
    %1338 = vector.broadcast %cst_632 : f32 to vector<9x9xf32>
    %1339 = arith.select %6, %1337, %1338 : vector<9x9xi1>, vector<9x9xf32>
    %c0_633 = arith.constant 0 : index
    %c1_634 = arith.constant 1 : index
    %c0_635 = arith.constant 0 : index
    %c0_636 = arith.constant 0 : index
    %c0_637 = arith.constant 0 : index
    %1340 = vector.load %arg1[%c0_633, %c1_634, %c0_635, %c0_636, %c0_637] : memref<1x4x4x9x9xf32, #tpu.memory_space<vmem>>, vector<1x1x1x9x9xf32>
    %1341 = vector.shape_cast %1340 : vector<1x1x1x9x9xf32> to vector<9x9xf32>
    %c6_638 = arith.constant 6 : index
    %1342 = memref.load %arg2[%c6_638] : memref<208xf32, #tpu.memory_space<smem>>
    %1343 = vector.broadcast %1342 : f32 to vector<9x9xf32>
    %1344 = arith.mulf %1341, %1343 : vector<9x9xf32>
    %c0_639 = arith.constant 0 : index
    %c1_640 = arith.constant 1 : index
    %c1_641 = arith.constant 1 : index
    %c0_642 = arith.constant 0 : index
    %c0_643 = arith.constant 0 : index
    %1345 = vector.load %arg1[%c0_639, %c1_640, %c1_641, %c0_642, %c0_643] : memref<1x4x4x9x9xf32, #tpu.memory_space<vmem>>, vector<1x1x1x9x9xf32>
    %1346 = vector.shape_cast %1345 : vector<1x1x1x9x9xf32> to vector<9x9xf32>
    %c14_644 = arith.constant 14 : index
    %1347 = memref.load %arg2[%c14_644] : memref<208xf32, #tpu.memory_space<smem>>
    %1348 = vector.broadcast %1347 : f32 to vector<9x9xf32>
    %1349 = arith.mulf %1346, %1348 : vector<9x9xf32>
    %1350 = arith.addf %1344, %1349 : vector<9x9xf32>
    %c0_645 = arith.constant 0 : index
    %c1_646 = arith.constant 1 : index
    %c2_647 = arith.constant 2 : index
    %c0_648 = arith.constant 0 : index
    %c0_649 = arith.constant 0 : index
    %1351 = vector.load %arg1[%c0_645, %c1_646, %c2_647, %c0_648, %c0_649] : memref<1x4x4x9x9xf32, #tpu.memory_space<vmem>>, vector<1x1x1x9x9xf32>
    %1352 = vector.shape_cast %1351 : vector<1x1x1x9x9xf32> to vector<9x9xf32>
    %c22_650 = arith.constant 22 : index
    %1353 = memref.load %arg2[%c22_650] : memref<208xf32, #tpu.memory_space<smem>>
    %1354 = vector.broadcast %1353 : f32 to vector<9x9xf32>
    %1355 = arith.mulf %1352, %1354 : vector<9x9xf32>
    %1356 = arith.addf %1350, %1355 : vector<9x9xf32>
    %c0_651 = arith.constant 0 : index
    %c1_652 = arith.constant 1 : index
    %c3_653 = arith.constant 3 : index
    %c0_654 = arith.constant 0 : index
    %c0_655 = arith.constant 0 : index
    %1357 = vector.load %arg1[%c0_651, %c1_652, %c3_653, %c0_654, %c0_655] : memref<1x4x4x9x9xf32, #tpu.memory_space<vmem>>, vector<1x1x1x9x9xf32>
    %1358 = vector.shape_cast %1357 : vector<1x1x1x9x9xf32> to vector<9x9xf32>
    %c30_656 = arith.constant 30 : index
    %1359 = memref.load %arg2[%c30_656] : memref<208xf32, #tpu.memory_space<smem>>
    %1360 = vector.broadcast %1359 : f32 to vector<9x9xf32>
    %1361 = arith.mulf %1358, %1360 : vector<9x9xf32>
    %1362 = arith.addf %1356, %1361 : vector<9x9xf32>
    %1363 = vector.broadcast %1304 : f32 to vector<9x9xf32>
    %1364 = arith.addf %1362, %1363 : vector<9x9xf32>
    %cst_657 = arith.constant 0.000000e+00 : f32
    %1365 = vector.broadcast %cst_657 : f32 to vector<9x9xf32>
    %1366 = arith.cmpf oge, %1364, %1365 : vector<9x9xf32>
    %1367 = vector.broadcast %1305 : f32 to vector<9x9xf32>
    %1368 = arith.mulf %1367, %1364 : vector<9x9xf32>
    %1369 = arith.select %1366, %1364, %1368 : vector<9x9xi1>, vector<9x9xf32>
    %cst_658 = arith.constant 0.000000e+00 : f32
    %1370 = vector.broadcast %cst_658 : f32 to vector<9x9xf32>
    %1371 = arith.select %11, %1369, %1370 : vector<9x9xi1>, vector<9x9xf32>
    %c0_659 = arith.constant 0 : index
    %c2_660 = arith.constant 2 : index
    %c0_661 = arith.constant 0 : index
    %c0_662 = arith.constant 0 : index
    %c0_663 = arith.constant 0 : index
    %1372 = vector.load %arg1[%c0_659, %c2_660, %c0_661, %c0_662, %c0_663] : memref<1x4x4x9x9xf32, #tpu.memory_space<vmem>>, vector<1x1x1x9x9xf32>
    %1373 = vector.shape_cast %1372 : vector<1x1x1x9x9xf32> to vector<9x9xf32>
    %c6_664 = arith.constant 6 : index
    %1374 = memref.load %arg2[%c6_664] : memref<208xf32, #tpu.memory_space<smem>>
    %1375 = vector.broadcast %1374 : f32 to vector<9x9xf32>
    %1376 = arith.mulf %1373, %1375 : vector<9x9xf32>
    %c0_665 = arith.constant 0 : index
    %c2_666 = arith.constant 2 : index
    %c1_667 = arith.constant 1 : index
    %c0_668 = arith.constant 0 : index
    %c0_669 = arith.constant 0 : index
    %1377 = vector.load %arg1[%c0_665, %c2_666, %c1_667, %c0_668, %c0_669] : memref<1x4x4x9x9xf32, #tpu.memory_space<vmem>>, vector<1x1x1x9x9xf32>
    %1378 = vector.shape_cast %1377 : vector<1x1x1x9x9xf32> to vector<9x9xf32>
    %c14_670 = arith.constant 14 : index
    %1379 = memref.load %arg2[%c14_670] : memref<208xf32, #tpu.memory_space<smem>>
    %1380 = vector.broadcast %1379 : f32 to vector<9x9xf32>
    %1381 = arith.mulf %1378, %1380 : vector<9x9xf32>
    %1382 = arith.addf %1376, %1381 : vector<9x9xf32>
    %c0_671 = arith.constant 0 : index
    %c2_672 = arith.constant 2 : index
    %c2_673 = arith.constant 2 : index
    %c0_674 = arith.constant 0 : index
    %c0_675 = arith.constant 0 : index
    %1383 = vector.load %arg1[%c0_671, %c2_672, %c2_673, %c0_674, %c0_675] : memref<1x4x4x9x9xf32, #tpu.memory_space<vmem>>, vector<1x1x1x9x9xf32>
    %1384 = vector.shape_cast %1383 : vector<1x1x1x9x9xf32> to vector<9x9xf32>
    %c22_676 = arith.constant 22 : index
    %1385 = memref.load %arg2[%c22_676] : memref<208xf32, #tpu.memory_space<smem>>
    %1386 = vector.broadcast %1385 : f32 to vector<9x9xf32>
    %1387 = arith.mulf %1384, %1386 : vector<9x9xf32>
    %1388 = arith.addf %1382, %1387 : vector<9x9xf32>
    %c0_677 = arith.constant 0 : index
    %c2_678 = arith.constant 2 : index
    %c3_679 = arith.constant 3 : index
    %c0_680 = arith.constant 0 : index
    %c0_681 = arith.constant 0 : index
    %1389 = vector.load %arg1[%c0_677, %c2_678, %c3_679, %c0_680, %c0_681] : memref<1x4x4x9x9xf32, #tpu.memory_space<vmem>>, vector<1x1x1x9x9xf32>
    %1390 = vector.shape_cast %1389 : vector<1x1x1x9x9xf32> to vector<9x9xf32>
    %c30_682 = arith.constant 30 : index
    %1391 = memref.load %arg2[%c30_682] : memref<208xf32, #tpu.memory_space<smem>>
    %1392 = vector.broadcast %1391 : f32 to vector<9x9xf32>
    %1393 = arith.mulf %1390, %1392 : vector<9x9xf32>
    %1394 = arith.addf %1388, %1393 : vector<9x9xf32>
    %1395 = vector.broadcast %1304 : f32 to vector<9x9xf32>
    %1396 = arith.addf %1394, %1395 : vector<9x9xf32>
    %cst_683 = arith.constant 0.000000e+00 : f32
    %1397 = vector.broadcast %cst_683 : f32 to vector<9x9xf32>
    %1398 = arith.cmpf oge, %1396, %1397 : vector<9x9xf32>
    %1399 = vector.broadcast %1305 : f32 to vector<9x9xf32>
    %1400 = arith.mulf %1399, %1396 : vector<9x9xf32>
    %1401 = arith.select %1398, %1396, %1400 : vector<9x9xi1>, vector<9x9xf32>
    %cst_684 = arith.constant 0.000000e+00 : f32
    %1402 = vector.broadcast %cst_684 : f32 to vector<9x9xf32>
    %1403 = arith.select %16, %1401, %1402 : vector<9x9xi1>, vector<9x9xf32>
    %c0_685 = arith.constant 0 : index
    %c3_686 = arith.constant 3 : index
    %c0_687 = arith.constant 0 : index
    %c0_688 = arith.constant 0 : index
    %c0_689 = arith.constant 0 : index
    %1404 = vector.load %arg1[%c0_685, %c3_686, %c0_687, %c0_688, %c0_689] : memref<1x4x4x9x9xf32, #tpu.memory_space<vmem>>, vector<1x1x1x9x9xf32>
    %1405 = vector.shape_cast %1404 : vector<1x1x1x9x9xf32> to vector<9x9xf32>
    %c6_690 = arith.constant 6 : index
    %1406 = memref.load %arg2[%c6_690] : memref<208xf32, #tpu.memory_space<smem>>
    %1407 = vector.broadcast %1406 : f32 to vector<9x9xf32>
    %1408 = arith.mulf %1405, %1407 : vector<9x9xf32>
    %c0_691 = arith.constant 0 : index
    %c3_692 = arith.constant 3 : index
    %c1_693 = arith.constant 1 : index
    %c0_694 = arith.constant 0 : index
    %c0_695 = arith.constant 0 : index
    %1409 = vector.load %arg1[%c0_691, %c3_692, %c1_693, %c0_694, %c0_695] : memref<1x4x4x9x9xf32, #tpu.memory_space<vmem>>, vector<1x1x1x9x9xf32>
    %1410 = vector.shape_cast %1409 : vector<1x1x1x9x9xf32> to vector<9x9xf32>
    %c14_696 = arith.constant 14 : index
    %1411 = memref.load %arg2[%c14_696] : memref<208xf32, #tpu.memory_space<smem>>
    %1412 = vector.broadcast %1411 : f32 to vector<9x9xf32>
    %1413 = arith.mulf %1410, %1412 : vector<9x9xf32>
    %1414 = arith.addf %1408, %1413 : vector<9x9xf32>
    %c0_697 = arith.constant 0 : index
    %c3_698 = arith.constant 3 : index
    %c2_699 = arith.constant 2 : index
    %c0_700 = arith.constant 0 : index
    %c0_701 = arith.constant 0 : index
    %1415 = vector.load %arg1[%c0_697, %c3_698, %c2_699, %c0_700, %c0_701] : memref<1x4x4x9x9xf32, #tpu.memory_space<vmem>>, vector<1x1x1x9x9xf32>
    %1416 = vector.shape_cast %1415 : vector<1x1x1x9x9xf32> to vector<9x9xf32>
    %c22_702 = arith.constant 22 : index
    %1417 = memref.load %arg2[%c22_702] : memref<208xf32, #tpu.memory_space<smem>>
    %1418 = vector.broadcast %1417 : f32 to vector<9x9xf32>
    %1419 = arith.mulf %1416, %1418 : vector<9x9xf32>
    %1420 = arith.addf %1414, %1419 : vector<9x9xf32>
    %c0_703 = arith.constant 0 : index
    %c3_704 = arith.constant 3 : index
    %c3_705 = arith.constant 3 : index
    %c0_706 = arith.constant 0 : index
    %c0_707 = arith.constant 0 : index
    %1421 = vector.load %arg1[%c0_703, %c3_704, %c3_705, %c0_706, %c0_707] : memref<1x4x4x9x9xf32, #tpu.memory_space<vmem>>, vector<1x1x1x9x9xf32>
    %1422 = vector.shape_cast %1421 : vector<1x1x1x9x9xf32> to vector<9x9xf32>
    %c30_708 = arith.constant 30 : index
    %1423 = memref.load %arg2[%c30_708] : memref<208xf32, #tpu.memory_space<smem>>
    %1424 = vector.broadcast %1423 : f32 to vector<9x9xf32>
    %1425 = arith.mulf %1422, %1424 : vector<9x9xf32>
    %1426 = arith.addf %1420, %1425 : vector<9x9xf32>
    %1427 = vector.broadcast %1304 : f32 to vector<9x9xf32>
    %1428 = arith.addf %1426, %1427 : vector<9x9xf32>
    %cst_709 = arith.constant 0.000000e+00 : f32
    %1429 = vector.broadcast %cst_709 : f32 to vector<9x9xf32>
    %1430 = arith.cmpf oge, %1428, %1429 : vector<9x9xf32>
    %1431 = vector.broadcast %1305 : f32 to vector<9x9xf32>
    %1432 = arith.mulf %1431, %1428 : vector<9x9xf32>
    %1433 = arith.select %1430, %1428, %1432 : vector<9x9xi1>, vector<9x9xf32>
    %cst_710 = arith.constant 0.000000e+00 : f32
    %1434 = vector.broadcast %cst_710 : f32 to vector<9x9xf32>
    %1435 = arith.select %21, %1433, %1434 : vector<9x9xi1>, vector<9x9xf32>
    %1436 = vector.extract_strided_slice %1339 {offsets = [0, 0], sizes = [8, 8], strides = [1, 1]} : vector<9x9xf32> to vector<8x8xf32>
    %c102 = arith.constant 102 : index
    %1437 = memref.load %arg2[%c102] : memref<208xf32, #tpu.memory_space<smem>>
    %1438 = vector.broadcast %1437 : f32 to vector<8x8xf32>
    %1439 = arith.mulf %1436, %1438 : vector<8x8xf32>
    %1440 = vector.extract_strided_slice %1371 {offsets = [0, 0], sizes = [8, 8], strides = [1, 1]} : vector<9x9xf32> to vector<8x8xf32>
    %c103 = arith.constant 103 : index
    %1441 = memref.load %arg2[%c103] : memref<208xf32, #tpu.memory_space<smem>>
    %1442 = vector.broadcast %1441 : f32 to vector<8x8xf32>
    %1443 = arith.mulf %1440, %1442 : vector<8x8xf32>
    %1444 = arith.addf %1439, %1443 : vector<8x8xf32>
    %1445 = vector.extract_strided_slice %1339 {offsets = [0, 1], sizes = [8, 8], strides = [1, 1]} : vector<9x9xf32> to vector<8x8xf32>
    %c104 = arith.constant 104 : index
    %1446 = memref.load %arg2[%c104] : memref<208xf32, #tpu.memory_space<smem>>
    %1447 = vector.broadcast %1446 : f32 to vector<8x8xf32>
    %1448 = arith.mulf %1445, %1447 : vector<8x8xf32>
    %1449 = arith.addf %1444, %1448 : vector<8x8xf32>
    %1450 = vector.extract_strided_slice %1403 {offsets = [0, 0], sizes = [8, 8], strides = [1, 1]} : vector<9x9xf32> to vector<8x8xf32>
    %c105 = arith.constant 105 : index
    %1451 = memref.load %arg2[%c105] : memref<208xf32, #tpu.memory_space<smem>>
    %1452 = vector.broadcast %1451 : f32 to vector<8x8xf32>
    %1453 = arith.mulf %1450, %1452 : vector<8x8xf32>
    %1454 = arith.addf %1449, %1453 : vector<8x8xf32>
    %1455 = vector.extract_strided_slice %1435 {offsets = [0, 0], sizes = [8, 8], strides = [1, 1]} : vector<9x9xf32> to vector<8x8xf32>
    %c106 = arith.constant 106 : index
    %1456 = memref.load %arg2[%c106] : memref<208xf32, #tpu.memory_space<smem>>
    %1457 = vector.broadcast %1456 : f32 to vector<8x8xf32>
    %1458 = arith.mulf %1455, %1457 : vector<8x8xf32>
    %1459 = arith.addf %1454, %1458 : vector<8x8xf32>
    %1460 = vector.extract_strided_slice %1403 {offsets = [0, 1], sizes = [8, 8], strides = [1, 1]} : vector<9x9xf32> to vector<8x8xf32>
    %c107 = arith.constant 107 : index
    %1461 = memref.load %arg2[%c107] : memref<208xf32, #tpu.memory_space<smem>>
    %1462 = vector.broadcast %1461 : f32 to vector<8x8xf32>
    %1463 = arith.mulf %1460, %1462 : vector<8x8xf32>
    %1464 = arith.addf %1459, %1463 : vector<8x8xf32>
    %1465 = vector.extract_strided_slice %1339 {offsets = [1, 0], sizes = [8, 8], strides = [1, 1]} : vector<9x9xf32> to vector<8x8xf32>
    %c108 = arith.constant 108 : index
    %1466 = memref.load %arg2[%c108] : memref<208xf32, #tpu.memory_space<smem>>
    %1467 = vector.broadcast %1466 : f32 to vector<8x8xf32>
    %1468 = arith.mulf %1465, %1467 : vector<8x8xf32>
    %1469 = arith.addf %1464, %1468 : vector<8x8xf32>
    %1470 = vector.extract_strided_slice %1371 {offsets = [1, 0], sizes = [8, 8], strides = [1, 1]} : vector<9x9xf32> to vector<8x8xf32>
    %c109 = arith.constant 109 : index
    %1471 = memref.load %arg2[%c109] : memref<208xf32, #tpu.memory_space<smem>>
    %1472 = vector.broadcast %1471 : f32 to vector<8x8xf32>
    %1473 = arith.mulf %1470, %1472 : vector<8x8xf32>
    %1474 = arith.addf %1469, %1473 : vector<8x8xf32>
    %1475 = vector.extract_strided_slice %1339 {offsets = [1, 1], sizes = [8, 8], strides = [1, 1]} : vector<9x9xf32> to vector<8x8xf32>
    %c110 = arith.constant 110 : index
    %1476 = memref.load %arg2[%c110] : memref<208xf32, #tpu.memory_space<smem>>
    %1477 = vector.broadcast %1476 : f32 to vector<8x8xf32>
    %1478 = arith.mulf %1475, %1477 : vector<8x8xf32>
    %1479 = arith.addf %1474, %1478 : vector<8x8xf32>
    %1480 = vector.broadcast %1306 : f32 to vector<8x8xf32>
    %1481 = arith.addf %1479, %1480 : vector<8x8xf32>
    %cst_711 = arith.constant 0.000000e+00 : f32
    %1482 = vector.broadcast %cst_711 : f32 to vector<8x8xf32>
    %1483 = arith.cmpf oge, %1481, %1482 : vector<8x8xf32>
    %1484 = vector.broadcast %1307 : f32 to vector<8x8xf32>
    %1485 = arith.mulf %1484, %1481 : vector<8x8xf32>
    %1486 = arith.select %1483, %1481, %1485 : vector<8x8xi1>, vector<8x8xf32>
    %c184 = arith.constant 184 : index
    %1487 = memref.load %arg2[%c184] : memref<208xf32, #tpu.memory_space<smem>>
    %1488 = vector.broadcast %1487 : f32 to vector<8x8xf32>
    %1489 = arith.mulf %1486, %1488 : vector<8x8xf32>
    %1490 = arith.addf %1275, %1489 : vector<8x8xf32>
    %c185 = arith.constant 185 : index
    %1491 = memref.load %arg2[%c185] : memref<208xf32, #tpu.memory_space<smem>>
    %1492 = vector.broadcast %1491 : f32 to vector<8x8xf32>
    %1493 = arith.mulf %1486, %1492 : vector<8x8xf32>
    %1494 = arith.addf %1279, %1493 : vector<8x8xf32>
    %c186 = arith.constant 186 : index
    %1495 = memref.load %arg2[%c186] : memref<208xf32, #tpu.memory_space<smem>>
    %1496 = vector.broadcast %1495 : f32 to vector<8x8xf32>
    %1497 = arith.mulf %1486, %1496 : vector<8x8xf32>
    %1498 = arith.addf %1283, %1497 : vector<8x8xf32>
    %c187 = arith.constant 187 : index
    %1499 = memref.load %arg2[%c187] : memref<208xf32, #tpu.memory_space<smem>>
    %1500 = vector.broadcast %1499 : f32 to vector<8x8xf32>
    %1501 = arith.mulf %1486, %1500 : vector<8x8xf32>
    %1502 = arith.addf %1287, %1501 : vector<8x8xf32>
    %c188 = arith.constant 188 : index
    %1503 = memref.load %arg2[%c188] : memref<208xf32, #tpu.memory_space<smem>>
    %1504 = vector.broadcast %1503 : f32 to vector<8x8xf32>
    %1505 = arith.mulf %1486, %1504 : vector<8x8xf32>
    %1506 = arith.addf %1291, %1505 : vector<8x8xf32>
    %c189 = arith.constant 189 : index
    %1507 = memref.load %arg2[%c189] : memref<208xf32, #tpu.memory_space<smem>>
    %1508 = vector.broadcast %1507 : f32 to vector<8x8xf32>
    %1509 = arith.mulf %1486, %1508 : vector<8x8xf32>
    %1510 = arith.addf %1295, %1509 : vector<8x8xf32>
    %c190 = arith.constant 190 : index
    %1511 = memref.load %arg2[%c190] : memref<208xf32, #tpu.memory_space<smem>>
    %1512 = vector.broadcast %1511 : f32 to vector<8x8xf32>
    %1513 = arith.mulf %1486, %1512 : vector<8x8xf32>
    %1514 = arith.addf %1299, %1513 : vector<8x8xf32>
    %c191 = arith.constant 191 : index
    %1515 = memref.load %arg2[%c191] : memref<208xf32, #tpu.memory_space<smem>>
    %1516 = vector.broadcast %1515 : f32 to vector<8x8xf32>
    %1517 = arith.mulf %1486, %1516 : vector<8x8xf32>
    %1518 = arith.addf %1303, %1517 : vector<8x8xf32>
    %c39 = arith.constant 39 : index
    %1519 = memref.load %arg2[%c39] : memref<208xf32, #tpu.memory_space<smem>>
    %c47 = arith.constant 47 : index
    %1520 = memref.load %arg2[%c47] : memref<208xf32, #tpu.memory_space<smem>>
    %c127 = arith.constant 127 : index
    %1521 = memref.load %arg2[%c127] : memref<208xf32, #tpu.memory_space<smem>>
    %c135 = arith.constant 135 : index
    %1522 = memref.load %arg2[%c135] : memref<208xf32, #tpu.memory_space<smem>>
    %c0_712 = arith.constant 0 : index
    %c0_713 = arith.constant 0 : index
    %c0_714 = arith.constant 0 : index
    %c0_715 = arith.constant 0 : index
    %c0_716 = arith.constant 0 : index
    %1523 = vector.load %arg1[%c0_712, %c0_713, %c0_714, %c0_715, %c0_716] : memref<1x4x4x9x9xf32, #tpu.memory_space<vmem>>, vector<1x1x1x9x9xf32>
    %1524 = vector.shape_cast %1523 : vector<1x1x1x9x9xf32> to vector<9x9xf32>
    %c7 = arith.constant 7 : index
    %1525 = memref.load %arg2[%c7] : memref<208xf32, #tpu.memory_space<smem>>
    %1526 = vector.broadcast %1525 : f32 to vector<9x9xf32>
    %1527 = arith.mulf %1524, %1526 : vector<9x9xf32>
    %c0_717 = arith.constant 0 : index
    %c0_718 = arith.constant 0 : index
    %c1_719 = arith.constant 1 : index
    %c0_720 = arith.constant 0 : index
    %c0_721 = arith.constant 0 : index
    %1528 = vector.load %arg1[%c0_717, %c0_718, %c1_719, %c0_720, %c0_721] : memref<1x4x4x9x9xf32, #tpu.memory_space<vmem>>, vector<1x1x1x9x9xf32>
    %1529 = vector.shape_cast %1528 : vector<1x1x1x9x9xf32> to vector<9x9xf32>
    %c15 = arith.constant 15 : index
    %1530 = memref.load %arg2[%c15] : memref<208xf32, #tpu.memory_space<smem>>
    %1531 = vector.broadcast %1530 : f32 to vector<9x9xf32>
    %1532 = arith.mulf %1529, %1531 : vector<9x9xf32>
    %1533 = arith.addf %1527, %1532 : vector<9x9xf32>
    %c0_722 = arith.constant 0 : index
    %c0_723 = arith.constant 0 : index
    %c2_724 = arith.constant 2 : index
    %c0_725 = arith.constant 0 : index
    %c0_726 = arith.constant 0 : index
    %1534 = vector.load %arg1[%c0_722, %c0_723, %c2_724, %c0_725, %c0_726] : memref<1x4x4x9x9xf32, #tpu.memory_space<vmem>>, vector<1x1x1x9x9xf32>
    %1535 = vector.shape_cast %1534 : vector<1x1x1x9x9xf32> to vector<9x9xf32>
    %c23 = arith.constant 23 : index
    %1536 = memref.load %arg2[%c23] : memref<208xf32, #tpu.memory_space<smem>>
    %1537 = vector.broadcast %1536 : f32 to vector<9x9xf32>
    %1538 = arith.mulf %1535, %1537 : vector<9x9xf32>
    %1539 = arith.addf %1533, %1538 : vector<9x9xf32>
    %c0_727 = arith.constant 0 : index
    %c0_728 = arith.constant 0 : index
    %c3_729 = arith.constant 3 : index
    %c0_730 = arith.constant 0 : index
    %c0_731 = arith.constant 0 : index
    %1540 = vector.load %arg1[%c0_727, %c0_728, %c3_729, %c0_730, %c0_731] : memref<1x4x4x9x9xf32, #tpu.memory_space<vmem>>, vector<1x1x1x9x9xf32>
    %1541 = vector.shape_cast %1540 : vector<1x1x1x9x9xf32> to vector<9x9xf32>
    %c31 = arith.constant 31 : index
    %1542 = memref.load %arg2[%c31] : memref<208xf32, #tpu.memory_space<smem>>
    %1543 = vector.broadcast %1542 : f32 to vector<9x9xf32>
    %1544 = arith.mulf %1541, %1543 : vector<9x9xf32>
    %1545 = arith.addf %1539, %1544 : vector<9x9xf32>
    %1546 = vector.broadcast %1519 : f32 to vector<9x9xf32>
    %1547 = arith.addf %1545, %1546 : vector<9x9xf32>
    %cst_732 = arith.constant 0.000000e+00 : f32
    %1548 = vector.broadcast %cst_732 : f32 to vector<9x9xf32>
    %1549 = arith.cmpf oge, %1547, %1548 : vector<9x9xf32>
    %1550 = vector.broadcast %1520 : f32 to vector<9x9xf32>
    %1551 = arith.mulf %1550, %1547 : vector<9x9xf32>
    %1552 = arith.select %1549, %1547, %1551 : vector<9x9xi1>, vector<9x9xf32>
    %cst_733 = arith.constant 0.000000e+00 : f32
    %1553 = vector.broadcast %cst_733 : f32 to vector<9x9xf32>
    %1554 = arith.select %6, %1552, %1553 : vector<9x9xi1>, vector<9x9xf32>
    %c0_734 = arith.constant 0 : index
    %c1_735 = arith.constant 1 : index
    %c0_736 = arith.constant 0 : index
    %c0_737 = arith.constant 0 : index
    %c0_738 = arith.constant 0 : index
    %1555 = vector.load %arg1[%c0_734, %c1_735, %c0_736, %c0_737, %c0_738] : memref<1x4x4x9x9xf32, #tpu.memory_space<vmem>>, vector<1x1x1x9x9xf32>
    %1556 = vector.shape_cast %1555 : vector<1x1x1x9x9xf32> to vector<9x9xf32>
    %c7_739 = arith.constant 7 : index
    %1557 = memref.load %arg2[%c7_739] : memref<208xf32, #tpu.memory_space<smem>>
    %1558 = vector.broadcast %1557 : f32 to vector<9x9xf32>
    %1559 = arith.mulf %1556, %1558 : vector<9x9xf32>
    %c0_740 = arith.constant 0 : index
    %c1_741 = arith.constant 1 : index
    %c1_742 = arith.constant 1 : index
    %c0_743 = arith.constant 0 : index
    %c0_744 = arith.constant 0 : index
    %1560 = vector.load %arg1[%c0_740, %c1_741, %c1_742, %c0_743, %c0_744] : memref<1x4x4x9x9xf32, #tpu.memory_space<vmem>>, vector<1x1x1x9x9xf32>
    %1561 = vector.shape_cast %1560 : vector<1x1x1x9x9xf32> to vector<9x9xf32>
    %c15_745 = arith.constant 15 : index
    %1562 = memref.load %arg2[%c15_745] : memref<208xf32, #tpu.memory_space<smem>>
    %1563 = vector.broadcast %1562 : f32 to vector<9x9xf32>
    %1564 = arith.mulf %1561, %1563 : vector<9x9xf32>
    %1565 = arith.addf %1559, %1564 : vector<9x9xf32>
    %c0_746 = arith.constant 0 : index
    %c1_747 = arith.constant 1 : index
    %c2_748 = arith.constant 2 : index
    %c0_749 = arith.constant 0 : index
    %c0_750 = arith.constant 0 : index
    %1566 = vector.load %arg1[%c0_746, %c1_747, %c2_748, %c0_749, %c0_750] : memref<1x4x4x9x9xf32, #tpu.memory_space<vmem>>, vector<1x1x1x9x9xf32>
    %1567 = vector.shape_cast %1566 : vector<1x1x1x9x9xf32> to vector<9x9xf32>
    %c23_751 = arith.constant 23 : index
    %1568 = memref.load %arg2[%c23_751] : memref<208xf32, #tpu.memory_space<smem>>
    %1569 = vector.broadcast %1568 : f32 to vector<9x9xf32>
    %1570 = arith.mulf %1567, %1569 : vector<9x9xf32>
    %1571 = arith.addf %1565, %1570 : vector<9x9xf32>
    %c0_752 = arith.constant 0 : index
    %c1_753 = arith.constant 1 : index
    %c3_754 = arith.constant 3 : index
    %c0_755 = arith.constant 0 : index
    %c0_756 = arith.constant 0 : index
    %1572 = vector.load %arg1[%c0_752, %c1_753, %c3_754, %c0_755, %c0_756] : memref<1x4x4x9x9xf32, #tpu.memory_space<vmem>>, vector<1x1x1x9x9xf32>
    %1573 = vector.shape_cast %1572 : vector<1x1x1x9x9xf32> to vector<9x9xf32>
    %c31_757 = arith.constant 31 : index
    %1574 = memref.load %arg2[%c31_757] : memref<208xf32, #tpu.memory_space<smem>>
    %1575 = vector.broadcast %1574 : f32 to vector<9x9xf32>
    %1576 = arith.mulf %1573, %1575 : vector<9x9xf32>
    %1577 = arith.addf %1571, %1576 : vector<9x9xf32>
    %1578 = vector.broadcast %1519 : f32 to vector<9x9xf32>
    %1579 = arith.addf %1577, %1578 : vector<9x9xf32>
    %cst_758 = arith.constant 0.000000e+00 : f32
    %1580 = vector.broadcast %cst_758 : f32 to vector<9x9xf32>
    %1581 = arith.cmpf oge, %1579, %1580 : vector<9x9xf32>
    %1582 = vector.broadcast %1520 : f32 to vector<9x9xf32>
    %1583 = arith.mulf %1582, %1579 : vector<9x9xf32>
    %1584 = arith.select %1581, %1579, %1583 : vector<9x9xi1>, vector<9x9xf32>
    %cst_759 = arith.constant 0.000000e+00 : f32
    %1585 = vector.broadcast %cst_759 : f32 to vector<9x9xf32>
    %1586 = arith.select %11, %1584, %1585 : vector<9x9xi1>, vector<9x9xf32>
    %c0_760 = arith.constant 0 : index
    %c2_761 = arith.constant 2 : index
    %c0_762 = arith.constant 0 : index
    %c0_763 = arith.constant 0 : index
    %c0_764 = arith.constant 0 : index
    %1587 = vector.load %arg1[%c0_760, %c2_761, %c0_762, %c0_763, %c0_764] : memref<1x4x4x9x9xf32, #tpu.memory_space<vmem>>, vector<1x1x1x9x9xf32>
    %1588 = vector.shape_cast %1587 : vector<1x1x1x9x9xf32> to vector<9x9xf32>
    %c7_765 = arith.constant 7 : index
    %1589 = memref.load %arg2[%c7_765] : memref<208xf32, #tpu.memory_space<smem>>
    %1590 = vector.broadcast %1589 : f32 to vector<9x9xf32>
    %1591 = arith.mulf %1588, %1590 : vector<9x9xf32>
    %c0_766 = arith.constant 0 : index
    %c2_767 = arith.constant 2 : index
    %c1_768 = arith.constant 1 : index
    %c0_769 = arith.constant 0 : index
    %c0_770 = arith.constant 0 : index
    %1592 = vector.load %arg1[%c0_766, %c2_767, %c1_768, %c0_769, %c0_770] : memref<1x4x4x9x9xf32, #tpu.memory_space<vmem>>, vector<1x1x1x9x9xf32>
    %1593 = vector.shape_cast %1592 : vector<1x1x1x9x9xf32> to vector<9x9xf32>
    %c15_771 = arith.constant 15 : index
    %1594 = memref.load %arg2[%c15_771] : memref<208xf32, #tpu.memory_space<smem>>
    %1595 = vector.broadcast %1594 : f32 to vector<9x9xf32>
    %1596 = arith.mulf %1593, %1595 : vector<9x9xf32>
    %1597 = arith.addf %1591, %1596 : vector<9x9xf32>
    %c0_772 = arith.constant 0 : index
    %c2_773 = arith.constant 2 : index
    %c2_774 = arith.constant 2 : index
    %c0_775 = arith.constant 0 : index
    %c0_776 = arith.constant 0 : index
    %1598 = vector.load %arg1[%c0_772, %c2_773, %c2_774, %c0_775, %c0_776] : memref<1x4x4x9x9xf32, #tpu.memory_space<vmem>>, vector<1x1x1x9x9xf32>
    %1599 = vector.shape_cast %1598 : vector<1x1x1x9x9xf32> to vector<9x9xf32>
    %c23_777 = arith.constant 23 : index
    %1600 = memref.load %arg2[%c23_777] : memref<208xf32, #tpu.memory_space<smem>>
    %1601 = vector.broadcast %1600 : f32 to vector<9x9xf32>
    %1602 = arith.mulf %1599, %1601 : vector<9x9xf32>
    %1603 = arith.addf %1597, %1602 : vector<9x9xf32>
    %c0_778 = arith.constant 0 : index
    %c2_779 = arith.constant 2 : index
    %c3_780 = arith.constant 3 : index
    %c0_781 = arith.constant 0 : index
    %c0_782 = arith.constant 0 : index
    %1604 = vector.load %arg1[%c0_778, %c2_779, %c3_780, %c0_781, %c0_782] : memref<1x4x4x9x9xf32, #tpu.memory_space<vmem>>, vector<1x1x1x9x9xf32>
    %1605 = vector.shape_cast %1604 : vector<1x1x1x9x9xf32> to vector<9x9xf32>
    %c31_783 = arith.constant 31 : index
    %1606 = memref.load %arg2[%c31_783] : memref<208xf32, #tpu.memory_space<smem>>
    %1607 = vector.broadcast %1606 : f32 to vector<9x9xf32>
    %1608 = arith.mulf %1605, %1607 : vector<9x9xf32>
    %1609 = arith.addf %1603, %1608 : vector<9x9xf32>
    %1610 = vector.broadcast %1519 : f32 to vector<9x9xf32>
    %1611 = arith.addf %1609, %1610 : vector<9x9xf32>
    %cst_784 = arith.constant 0.000000e+00 : f32
    %1612 = vector.broadcast %cst_784 : f32 to vector<9x9xf32>
    %1613 = arith.cmpf oge, %1611, %1612 : vector<9x9xf32>
    %1614 = vector.broadcast %1520 : f32 to vector<9x9xf32>
    %1615 = arith.mulf %1614, %1611 : vector<9x9xf32>
    %1616 = arith.select %1613, %1611, %1615 : vector<9x9xi1>, vector<9x9xf32>
    %cst_785 = arith.constant 0.000000e+00 : f32
    %1617 = vector.broadcast %cst_785 : f32 to vector<9x9xf32>
    %1618 = arith.select %16, %1616, %1617 : vector<9x9xi1>, vector<9x9xf32>
    %c0_786 = arith.constant 0 : index
    %c3_787 = arith.constant 3 : index
    %c0_788 = arith.constant 0 : index
    %c0_789 = arith.constant 0 : index
    %c0_790 = arith.constant 0 : index
    %1619 = vector.load %arg1[%c0_786, %c3_787, %c0_788, %c0_789, %c0_790] : memref<1x4x4x9x9xf32, #tpu.memory_space<vmem>>, vector<1x1x1x9x9xf32>
    %1620 = vector.shape_cast %1619 : vector<1x1x1x9x9xf32> to vector<9x9xf32>
    %c7_791 = arith.constant 7 : index
    %1621 = memref.load %arg2[%c7_791] : memref<208xf32, #tpu.memory_space<smem>>
    %1622 = vector.broadcast %1621 : f32 to vector<9x9xf32>
    %1623 = arith.mulf %1620, %1622 : vector<9x9xf32>
    %c0_792 = arith.constant 0 : index
    %c3_793 = arith.constant 3 : index
    %c1_794 = arith.constant 1 : index
    %c0_795 = arith.constant 0 : index
    %c0_796 = arith.constant 0 : index
    %1624 = vector.load %arg1[%c0_792, %c3_793, %c1_794, %c0_795, %c0_796] : memref<1x4x4x9x9xf32, #tpu.memory_space<vmem>>, vector<1x1x1x9x9xf32>
    %1625 = vector.shape_cast %1624 : vector<1x1x1x9x9xf32> to vector<9x9xf32>
    %c15_797 = arith.constant 15 : index
    %1626 = memref.load %arg2[%c15_797] : memref<208xf32, #tpu.memory_space<smem>>
    %1627 = vector.broadcast %1626 : f32 to vector<9x9xf32>
    %1628 = arith.mulf %1625, %1627 : vector<9x9xf32>
    %1629 = arith.addf %1623, %1628 : vector<9x9xf32>
    %c0_798 = arith.constant 0 : index
    %c3_799 = arith.constant 3 : index
    %c2_800 = arith.constant 2 : index
    %c0_801 = arith.constant 0 : index
    %c0_802 = arith.constant 0 : index
    %1630 = vector.load %arg1[%c0_798, %c3_799, %c2_800, %c0_801, %c0_802] : memref<1x4x4x9x9xf32, #tpu.memory_space<vmem>>, vector<1x1x1x9x9xf32>
    %1631 = vector.shape_cast %1630 : vector<1x1x1x9x9xf32> to vector<9x9xf32>
    %c23_803 = arith.constant 23 : index
    %1632 = memref.load %arg2[%c23_803] : memref<208xf32, #tpu.memory_space<smem>>
    %1633 = vector.broadcast %1632 : f32 to vector<9x9xf32>
    %1634 = arith.mulf %1631, %1633 : vector<9x9xf32>
    %1635 = arith.addf %1629, %1634 : vector<9x9xf32>
    %c0_804 = arith.constant 0 : index
    %c3_805 = arith.constant 3 : index
    %c3_806 = arith.constant 3 : index
    %c0_807 = arith.constant 0 : index
    %c0_808 = arith.constant 0 : index
    %1636 = vector.load %arg1[%c0_804, %c3_805, %c3_806, %c0_807, %c0_808] : memref<1x4x4x9x9xf32, #tpu.memory_space<vmem>>, vector<1x1x1x9x9xf32>
    %1637 = vector.shape_cast %1636 : vector<1x1x1x9x9xf32> to vector<9x9xf32>
    %c31_809 = arith.constant 31 : index
    %1638 = memref.load %arg2[%c31_809] : memref<208xf32, #tpu.memory_space<smem>>
    %1639 = vector.broadcast %1638 : f32 to vector<9x9xf32>
    %1640 = arith.mulf %1637, %1639 : vector<9x9xf32>
    %1641 = arith.addf %1635, %1640 : vector<9x9xf32>
    %1642 = vector.broadcast %1519 : f32 to vector<9x9xf32>
    %1643 = arith.addf %1641, %1642 : vector<9x9xf32>
    %cst_810 = arith.constant 0.000000e+00 : f32
    %1644 = vector.broadcast %cst_810 : f32 to vector<9x9xf32>
    %1645 = arith.cmpf oge, %1643, %1644 : vector<9x9xf32>
    %1646 = vector.broadcast %1520 : f32 to vector<9x9xf32>
    %1647 = arith.mulf %1646, %1643 : vector<9x9xf32>
    %1648 = arith.select %1645, %1643, %1647 : vector<9x9xi1>, vector<9x9xf32>
    %cst_811 = arith.constant 0.000000e+00 : f32
    %1649 = vector.broadcast %cst_811 : f32 to vector<9x9xf32>
    %1650 = arith.select %21, %1648, %1649 : vector<9x9xi1>, vector<9x9xf32>
    %1651 = vector.extract_strided_slice %1554 {offsets = [0, 0], sizes = [8, 8], strides = [1, 1]} : vector<9x9xf32> to vector<8x8xf32>
    %c111 = arith.constant 111 : index
    %1652 = memref.load %arg2[%c111] : memref<208xf32, #tpu.memory_space<smem>>
    %1653 = vector.broadcast %1652 : f32 to vector<8x8xf32>
    %1654 = arith.mulf %1651, %1653 : vector<8x8xf32>
    %1655 = vector.extract_strided_slice %1586 {offsets = [0, 0], sizes = [8, 8], strides = [1, 1]} : vector<9x9xf32> to vector<8x8xf32>
    %c112 = arith.constant 112 : index
    %1656 = memref.load %arg2[%c112] : memref<208xf32, #tpu.memory_space<smem>>
    %1657 = vector.broadcast %1656 : f32 to vector<8x8xf32>
    %1658 = arith.mulf %1655, %1657 : vector<8x8xf32>
    %1659 = arith.addf %1654, %1658 : vector<8x8xf32>
    %1660 = vector.extract_strided_slice %1554 {offsets = [0, 1], sizes = [8, 8], strides = [1, 1]} : vector<9x9xf32> to vector<8x8xf32>
    %c113 = arith.constant 113 : index
    %1661 = memref.load %arg2[%c113] : memref<208xf32, #tpu.memory_space<smem>>
    %1662 = vector.broadcast %1661 : f32 to vector<8x8xf32>
    %1663 = arith.mulf %1660, %1662 : vector<8x8xf32>
    %1664 = arith.addf %1659, %1663 : vector<8x8xf32>
    %1665 = vector.extract_strided_slice %1618 {offsets = [0, 0], sizes = [8, 8], strides = [1, 1]} : vector<9x9xf32> to vector<8x8xf32>
    %c114 = arith.constant 114 : index
    %1666 = memref.load %arg2[%c114] : memref<208xf32, #tpu.memory_space<smem>>
    %1667 = vector.broadcast %1666 : f32 to vector<8x8xf32>
    %1668 = arith.mulf %1665, %1667 : vector<8x8xf32>
    %1669 = arith.addf %1664, %1668 : vector<8x8xf32>
    %1670 = vector.extract_strided_slice %1650 {offsets = [0, 0], sizes = [8, 8], strides = [1, 1]} : vector<9x9xf32> to vector<8x8xf32>
    %c115 = arith.constant 115 : index
    %1671 = memref.load %arg2[%c115] : memref<208xf32, #tpu.memory_space<smem>>
    %1672 = vector.broadcast %1671 : f32 to vector<8x8xf32>
    %1673 = arith.mulf %1670, %1672 : vector<8x8xf32>
    %1674 = arith.addf %1669, %1673 : vector<8x8xf32>
    %1675 = vector.extract_strided_slice %1618 {offsets = [0, 1], sizes = [8, 8], strides = [1, 1]} : vector<9x9xf32> to vector<8x8xf32>
    %c116 = arith.constant 116 : index
    %1676 = memref.load %arg2[%c116] : memref<208xf32, #tpu.memory_space<smem>>
    %1677 = vector.broadcast %1676 : f32 to vector<8x8xf32>
    %1678 = arith.mulf %1675, %1677 : vector<8x8xf32>
    %1679 = arith.addf %1674, %1678 : vector<8x8xf32>
    %1680 = vector.extract_strided_slice %1554 {offsets = [1, 0], sizes = [8, 8], strides = [1, 1]} : vector<9x9xf32> to vector<8x8xf32>
    %c117 = arith.constant 117 : index
    %1681 = memref.load %arg2[%c117] : memref<208xf32, #tpu.memory_space<smem>>
    %1682 = vector.broadcast %1681 : f32 to vector<8x8xf32>
    %1683 = arith.mulf %1680, %1682 : vector<8x8xf32>
    %1684 = arith.addf %1679, %1683 : vector<8x8xf32>
    %1685 = vector.extract_strided_slice %1586 {offsets = [1, 0], sizes = [8, 8], strides = [1, 1]} : vector<9x9xf32> to vector<8x8xf32>
    %c118 = arith.constant 118 : index
    %1686 = memref.load %arg2[%c118] : memref<208xf32, #tpu.memory_space<smem>>
    %1687 = vector.broadcast %1686 : f32 to vector<8x8xf32>
    %1688 = arith.mulf %1685, %1687 : vector<8x8xf32>
    %1689 = arith.addf %1684, %1688 : vector<8x8xf32>
    %1690 = vector.extract_strided_slice %1554 {offsets = [1, 1], sizes = [8, 8], strides = [1, 1]} : vector<9x9xf32> to vector<8x8xf32>
    %c119 = arith.constant 119 : index
    %1691 = memref.load %arg2[%c119] : memref<208xf32, #tpu.memory_space<smem>>
    %1692 = vector.broadcast %1691 : f32 to vector<8x8xf32>
    %1693 = arith.mulf %1690, %1692 : vector<8x8xf32>
    %1694 = arith.addf %1689, %1693 : vector<8x8xf32>
    %1695 = vector.broadcast %1521 : f32 to vector<8x8xf32>
    %1696 = arith.addf %1694, %1695 : vector<8x8xf32>
    %cst_812 = arith.constant 0.000000e+00 : f32
    %1697 = vector.broadcast %cst_812 : f32 to vector<8x8xf32>
    %1698 = arith.cmpf oge, %1696, %1697 : vector<8x8xf32>
    %1699 = vector.broadcast %1522 : f32 to vector<8x8xf32>
    %1700 = arith.mulf %1699, %1696 : vector<8x8xf32>
    %1701 = arith.select %1698, %1696, %1700 : vector<8x8xi1>, vector<8x8xf32>
    %c192 = arith.constant 192 : index
    %1702 = memref.load %arg2[%c192] : memref<208xf32, #tpu.memory_space<smem>>
    %1703 = vector.broadcast %1702 : f32 to vector<8x8xf32>
    %1704 = arith.mulf %1701, %1703 : vector<8x8xf32>
    %1705 = arith.addf %1490, %1704 : vector<8x8xf32>
    %c193 = arith.constant 193 : index
    %1706 = memref.load %arg2[%c193] : memref<208xf32, #tpu.memory_space<smem>>
    %1707 = vector.broadcast %1706 : f32 to vector<8x8xf32>
    %1708 = arith.mulf %1701, %1707 : vector<8x8xf32>
    %1709 = arith.addf %1494, %1708 : vector<8x8xf32>
    %c194 = arith.constant 194 : index
    %1710 = memref.load %arg2[%c194] : memref<208xf32, #tpu.memory_space<smem>>
    %1711 = vector.broadcast %1710 : f32 to vector<8x8xf32>
    %1712 = arith.mulf %1701, %1711 : vector<8x8xf32>
    %1713 = arith.addf %1498, %1712 : vector<8x8xf32>
    %c195 = arith.constant 195 : index
    %1714 = memref.load %arg2[%c195] : memref<208xf32, #tpu.memory_space<smem>>
    %1715 = vector.broadcast %1714 : f32 to vector<8x8xf32>
    %1716 = arith.mulf %1701, %1715 : vector<8x8xf32>
    %1717 = arith.addf %1502, %1716 : vector<8x8xf32>
    %c196 = arith.constant 196 : index
    %1718 = memref.load %arg2[%c196] : memref<208xf32, #tpu.memory_space<smem>>
    %1719 = vector.broadcast %1718 : f32 to vector<8x8xf32>
    %1720 = arith.mulf %1701, %1719 : vector<8x8xf32>
    %1721 = arith.addf %1506, %1720 : vector<8x8xf32>
    %c197 = arith.constant 197 : index
    %1722 = memref.load %arg2[%c197] : memref<208xf32, #tpu.memory_space<smem>>
    %1723 = vector.broadcast %1722 : f32 to vector<8x8xf32>
    %1724 = arith.mulf %1701, %1723 : vector<8x8xf32>
    %1725 = arith.addf %1510, %1724 : vector<8x8xf32>
    %c198 = arith.constant 198 : index
    %1726 = memref.load %arg2[%c198] : memref<208xf32, #tpu.memory_space<smem>>
    %1727 = vector.broadcast %1726 : f32 to vector<8x8xf32>
    %1728 = arith.mulf %1701, %1727 : vector<8x8xf32>
    %1729 = arith.addf %1514, %1728 : vector<8x8xf32>
    %c199 = arith.constant 199 : index
    %1730 = memref.load %arg2[%c199] : memref<208xf32, #tpu.memory_space<smem>>
    %1731 = vector.broadcast %1730 : f32 to vector<8x8xf32>
    %1732 = arith.mulf %1701, %1731 : vector<8x8xf32>
    %1733 = arith.addf %1518, %1732 : vector<8x8xf32>
    %c200 = arith.constant 200 : index
    %1734 = memref.load %arg2[%c200] : memref<208xf32, #tpu.memory_space<smem>>
    %1735 = vector.broadcast %1734 : f32 to vector<8x8xf32>
    %1736 = arith.addf %1705, %1735 : vector<8x8xf32>
    %c0_813 = arith.constant 0 : index
    %c0_814 = arith.constant 0 : index
    %c0_815 = arith.constant 0 : index
    %c0_816 = arith.constant 0 : index
    %1737 = vector.load %arg3[%c0_813, %c0_814, %c0_815, %c0_816] : memref<1x8x8x8xf32, #tpu.memory_space<vmem>>, vector<1x1x8x8xf32>
    %1738 = vector.shape_cast %1737 : vector<1x1x8x8xf32> to vector<8x8xf32>
    %1739 = vector.shape_cast %1736 : vector<8x8xf32> to vector<1x1x8x8xf32>
    tpu.vector_store %arg3[%c0_813, %c0_814, %c0_815, %c0_816], %1739 {strides = array<i32>} : memref<1x8x8x8xf32, #tpu.memory_space<vmem>>, vector<1x1x8x8xf32>,
    %c201 = arith.constant 201 : index
    %1740 = memref.load %arg2[%c201] : memref<208xf32, #tpu.memory_space<smem>>
    %1741 = vector.broadcast %1740 : f32 to vector<8x8xf32>
    %1742 = arith.addf %1709, %1741 : vector<8x8xf32>
    %c0_817 = arith.constant 0 : index
    %c1_818 = arith.constant 1 : index
    %c0_819 = arith.constant 0 : index
    %c0_820 = arith.constant 0 : index
    %1743 = vector.load %arg3[%c0_817, %c1_818, %c0_819, %c0_820] : memref<1x8x8x8xf32, #tpu.memory_space<vmem>>, vector<1x1x8x8xf32>
    %1744 = vector.shape_cast %1743 : vector<1x1x8x8xf32> to vector<8x8xf32>
    %1745 = vector.shape_cast %1742 : vector<8x8xf32> to vector<1x1x8x8xf32>
    tpu.vector_store %arg3[%c0_817, %c1_818, %c0_819, %c0_820], %1745 {strides = array<i32>} : memref<1x8x8x8xf32, #tpu.memory_space<vmem>>, vector<1x1x8x8xf32>,
    %c202 = arith.constant 202 : index
    %1746 = memref.load %arg2[%c202] : memref<208xf32, #tpu.memory_space<smem>>
    %1747 = vector.broadcast %1746 : f32 to vector<8x8xf32>
    %1748 = arith.addf %1713, %1747 : vector<8x8xf32>
    %c0_821 = arith.constant 0 : index
    %c2_822 = arith.constant 2 : index
    %c0_823 = arith.constant 0 : index
    %c0_824 = arith.constant 0 : index
    %1749 = vector.load %arg3[%c0_821, %c2_822, %c0_823, %c0_824] : memref<1x8x8x8xf32, #tpu.memory_space<vmem>>, vector<1x1x8x8xf32>
    %1750 = vector.shape_cast %1749 : vector<1x1x8x8xf32> to vector<8x8xf32>
    %1751 = vector.shape_cast %1748 : vector<8x8xf32> to vector<1x1x8x8xf32>
    tpu.vector_store %arg3[%c0_821, %c2_822, %c0_823, %c0_824], %1751 {strides = array<i32>} : memref<1x8x8x8xf32, #tpu.memory_space<vmem>>, vector<1x1x8x8xf32>,
    %c203 = arith.constant 203 : index
    %1752 = memref.load %arg2[%c203] : memref<208xf32, #tpu.memory_space<smem>>
    %1753 = vector.broadcast %1752 : f32 to vector<8x8xf32>
    %1754 = arith.addf %1717, %1753 : vector<8x8xf32>
    %c0_825 = arith.constant 0 : index
    %c3_826 = arith.constant 3 : index
    %c0_827 = arith.constant 0 : index
    %c0_828 = arith.constant 0 : index
    %1755 = vector.load %arg3[%c0_825, %c3_826, %c0_827, %c0_828] : memref<1x8x8x8xf32, #tpu.memory_space<vmem>>, vector<1x1x8x8xf32>
    %1756 = vector.shape_cast %1755 : vector<1x1x8x8xf32> to vector<8x8xf32>
    %1757 = vector.shape_cast %1754 : vector<8x8xf32> to vector<1x1x8x8xf32>
    tpu.vector_store %arg3[%c0_825, %c3_826, %c0_827, %c0_828], %1757 {strides = array<i32>} : memref<1x8x8x8xf32, #tpu.memory_space<vmem>>, vector<1x1x8x8xf32>,
    %c204 = arith.constant 204 : index
    %1758 = memref.load %arg2[%c204] : memref<208xf32, #tpu.memory_space<smem>>
    %1759 = vector.broadcast %1758 : f32 to vector<8x8xf32>
    %1760 = arith.addf %1721, %1759 : vector<8x8xf32>
    %c0_829 = arith.constant 0 : index
    %c4_830 = arith.constant 4 : index
    %c0_831 = arith.constant 0 : index
    %c0_832 = arith.constant 0 : index
    %1761 = vector.load %arg3[%c0_829, %c4_830, %c0_831, %c0_832] : memref<1x8x8x8xf32, #tpu.memory_space<vmem>>, vector<1x1x8x8xf32>
    %1762 = vector.shape_cast %1761 : vector<1x1x8x8xf32> to vector<8x8xf32>
    %1763 = vector.shape_cast %1760 : vector<8x8xf32> to vector<1x1x8x8xf32>
    tpu.vector_store %arg3[%c0_829, %c4_830, %c0_831, %c0_832], %1763 {strides = array<i32>} : memref<1x8x8x8xf32, #tpu.memory_space<vmem>>, vector<1x1x8x8xf32>,
    %c205 = arith.constant 205 : index
    %1764 = memref.load %arg2[%c205] : memref<208xf32, #tpu.memory_space<smem>>
    %1765 = vector.broadcast %1764 : f32 to vector<8x8xf32>
    %1766 = arith.addf %1725, %1765 : vector<8x8xf32>
    %c0_833 = arith.constant 0 : index
    %c5_834 = arith.constant 5 : index
    %c0_835 = arith.constant 0 : index
    %c0_836 = arith.constant 0 : index
    %1767 = vector.load %arg3[%c0_833, %c5_834, %c0_835, %c0_836] : memref<1x8x8x8xf32, #tpu.memory_space<vmem>>, vector<1x1x8x8xf32>
    %1768 = vector.shape_cast %1767 : vector<1x1x8x8xf32> to vector<8x8xf32>
    %1769 = vector.shape_cast %1766 : vector<8x8xf32> to vector<1x1x8x8xf32>
    tpu.vector_store %arg3[%c0_833, %c5_834, %c0_835, %c0_836], %1769 {strides = array<i32>} : memref<1x8x8x8xf32, #tpu.memory_space<vmem>>, vector<1x1x8x8xf32>,
    %c206 = arith.constant 206 : index
    %1770 = memref.load %arg2[%c206] : memref<208xf32, #tpu.memory_space<smem>>
    %1771 = vector.broadcast %1770 : f32 to vector<8x8xf32>
    %1772 = arith.addf %1729, %1771 : vector<8x8xf32>
    %c0_837 = arith.constant 0 : index
    %c6_838 = arith.constant 6 : index
    %c0_839 = arith.constant 0 : index
    %c0_840 = arith.constant 0 : index
    %1773 = vector.load %arg3[%c0_837, %c6_838, %c0_839, %c0_840] : memref<1x8x8x8xf32, #tpu.memory_space<vmem>>, vector<1x1x8x8xf32>
    %1774 = vector.shape_cast %1773 : vector<1x1x8x8xf32> to vector<8x8xf32>
    %1775 = vector.shape_cast %1772 : vector<8x8xf32> to vector<1x1x8x8xf32>
    tpu.vector_store %arg3[%c0_837, %c6_838, %c0_839, %c0_840], %1775 {strides = array<i32>} : memref<1x8x8x8xf32, #tpu.memory_space<vmem>>, vector<1x1x8x8xf32>,
    %c207 = arith.constant 207 : index
    %1776 = memref.load %arg2[%c207] : memref<208xf32, #tpu.memory_space<smem>>
    %1777 = vector.broadcast %1776 : f32 to vector<8x8xf32>
    %1778 = arith.addf %1733, %1777 : vector<8x8xf32>
    %c0_841 = arith.constant 0 : index
    %c7_842 = arith.constant 7 : index
    %c0_843 = arith.constant 0 : index
    %c0_844 = arith.constant 0 : index
    %1779 = vector.load %arg3[%c0_841, %c7_842, %c0_843, %c0_844] : memref<1x8x8x8xf32, #tpu.memory_space<vmem>>, vector<1x1x8x8xf32>
    %1780 = vector.shape_cast %1779 : vector<1x1x8x8xf32> to vector<8x8xf32>
    %1781 = vector.shape_cast %1778 : vector<8x8xf32> to vector<1x1x8x8xf32>
    tpu.vector_store %arg3[%c0_841, %c7_842, %c0_843, %c0_844], %1781 {strides = array<i32>} : memref<1x8x8x8xf32, #tpu.memory_space<vmem>>, vector<1x1x8x8xf32>,
    return
  }
  func.func @transform_0(%arg0: i32) -> (i32, i32, i32, i32, i32) {
    %c0_i32 = arith.constant 0 : i32
    %c0_i32_0 = arith.constant 0 : i32
    %c0_i32_1 = arith.constant 0 : i32
    %c0_i32_2 = arith.constant 0 : i32
    %c0_i32_3 = arith.constant 0 : i32
    return %arg0, %c0_i32, %c0_i32_0, %c0_i32_1, %c0_i32_2 : i32, i32, i32, i32, i32
  }
  func.func @transform_1(%arg0: i32) -> i32 {
    %c0_i32 = arith.constant 0 : i32
    %c0_i32_0 = arith.constant 0 : i32
    return %c0_i32 : i32
  }
  func.func @transform_2(%arg0: i32) -> (i32, i32, i32, i32) {
    %c0_i32 = arith.constant 0 : i32
    %c0_i32_0 = arith.constant 0 : i32
    %c0_i32_1 = arith.constant 0 : i32
    %c0_i32_2 = arith.constant 0 : i32
    return %arg0, %c0_i32, %c0_i32_0, %c0_i32_1 : i32, i32, i32, i32
  }
}

</mosaic_0001>

<llo_original>
// kernel: depth_wise_forward.1
$region0: #{depth_wise_forward.1}
  #allocation0 [shape = 'u32[]', space=smem, size = 0x4, offset = 0x4, fixed_abs, tag = 'smem constant byte address 0x4 - core index']
  #allocation1 [shape = 'u32[144,128]{1,0:T(1,128)}', space=vmem, size = 0x12000, scoped, tag = 'internal scratch']
  %s0 = inlined_call_operand.vmem [shape: f32[2,4,4,9,9], index: 0, kind: input, shape index: {}]
  %s1 = inlined_call_operand.vmem [shape: f32[208], index: 1, kind: input, shape index: {}]
  %s2 = inlined_call_operand.hbm [shape: f32[2,8,8,8], index: 2, kind: output, shape index: {}]
  %s3 = sld [smem:[#allocation0]]
  $region45: #{depth_wise_forward.1} parent=0
    _
  %s5 = ssub.s32 1, %s3
  %s6 = scalar_select 0, %s5, %s3
  $region1: #{depth_wise_forward.1} parent=0
    #allocation2 [shape = 'u8[1024]{0}', space=smem, size = 0x400, scoped, tag = 'input window, operand 1, single buffered']
    #allocation3 [shape = 's32[2]{0}', space=sflag, size = 0x8, scoped, tag = 'scoped memory for depth_wise_forward.1']
    #allocation4 [shape = 's32[2]{0}', space=sflag, size = 0x8, scoped, tag = 'scoped memory for depth_wise_forward.1']
    #allocation5 [shape = 'u8[65536]{0}', space=vmem, size = 0x10000, scoped, tag = 'output window, operand 0']
    %7 = vsyncpa [#allocation4], 0
    %8 = vsyncpa [#allocation3], 0
    %s9 = scalar_lea.sflag [#allocation3], 1
    %10 = vsyncpa %s9, 0
    loop: start=0, step=1, limit=4
    $region2: #{depth_wise_forward.1} parent=1 // loop_pre_header
      _
    $region3: #{depth_wise_forward.1} parent=1 // loop_header
      %s12 = sphi 0, %s16
      %p13 = scmp.ge.s32.totalorder %s12, 4
      %s22 = sphi 0, %s24
      %s25 = sphi 0, %s22
      %s26 = sphi 0, %s25
      %s42 = sphi 0, %s26
      %s46 = sphi 0, %s46
      %s48 = sphi 0, %s46
      %s49 = sphi 0, %s48
      %s63 = sphi 0, %s49
      %s69 = sphi 0, %s71
      %s72 = sphi 0, %s69
      %s73 = sphi 0, %s72
      %s89 = sphi 0, %s73
    $region4: #{depth_wise_forward.1} parent=1 // loop_header_branch
      %15 = sbr.rel (%p13) target = $region8
    $region5: #{depth_wise_forward.1} parent=1 // loop_body
      %s17 = ssub.s32 %s12, 1
      %s18 = ssub.s32 %s12, 2
      %s19 = sadd.s32 %s12, 1
      %s20 = ssub.s32 %s12, %s19
      %p21 = scmp.eq.s32.totalorder %s20, 0
      %s23 = sadd.s32 %s22, 1
      %s24 = scalar_select %p21, %s22, %s23
      %p27 = pneg %p21
      %p28 = scmp.eq.s32.totalorder %s12, 1
      %p29 = por %p27, %p28
      %p30 = scmp.ne.s32.totalorder %s22, %s25
      %p31 = scmp.eq.s32.totalorder %s12, 0
      %p32 = por %p30, %p31
      %p33 = scmp.ne.s32.totalorder %s22, %s25
      %p34 = scmp.eq.s32.totalorder %s17, 1
      %p35 = por %p33, %p34
      %p36 = scmp.ne.s32.totalorder %s25, %s26
      %p37 = scmp.eq.s32.totalorder %s17, 0
      %p38 = por %p36, %p37
      %p39 = scmp.ne.s32.totalorder %s25, %s26
      %p40 = scmp.eq.s32.totalorder %s18, 1
      %p41 = por %p39, %p40
      %p43 = scmp.ne.s32.totalorder %s26, %s42
      %p44 = scmp.eq.s32.totalorder %s18, 0
      %p45 = por %p43, %p44
      %s47 = sadd.s32 %s46, 1
      %p50 = scmp.eq.s32.totalorder %s12, 1
      %p51 = scmp.ne.s32.totalorder %s46, %s48
      %p52 = scmp.eq.s32.totalorder %s12, 0
      %p53 = por %p51, %p52
      %p54 = scmp.ne.s32.totalorder %s46, %s48
      %p55 = scmp.eq.s32.totalorder %s17, 1
      %p56 = por %p54, %p55
      %p57 = scmp.ne.s32.totalorder %s48, %s49
      %p58 = scmp.eq.s32.totalorder %s17, 0
      %p59 = por %p57, %p58
      %p60 = scmp.ne.s32.totalorder %s48, %s49
      %p61 = scmp.eq.s32.totalorder %s18, 1
      %p62 = por %p60, %p61
      %p64 = scmp.ne.s32.totalorder %s49, %s63
      %p65 = scmp.eq.s32.totalorder %s18, 0
      %p66 = por %p64, %p65
      %s67 = ssub.s32 %s12, %s19
      %p68 = scmp.eq.s32.totalorder %s67, 0
      %s70 = sadd.s32 %s69, 1
      %s71 = scalar_select %p68, %s69, %s70
      %p74 = pneg %p68
      %p75 = scmp.eq.s32.totalorder %s12, 1
      %p76 = por %p74, %p75
      %p77 = scmp.ne.s32.totalorder %s69, %s72
      %p78 = scmp.eq.s32.totalorder %s12, 0
      %p79 = por %p77, %p78
      %p80 = scmp.ne.s32.totalorder %s69, %s72
      %p81 = scmp.eq.s32.totalorder %s17, 1
      %p82 = por %p80, %p81
      %p83 = scmp.ne.s32.totalorder %s72, %s73
      %p84 = scmp.eq.s32.totalorder %s17, 0
      %p85 = por %p83, %p84
      %p86 = scmp.ne.s32.totalorder %s72, %s73
      %p87 = scmp.eq.s32.totalorder %s18, 1
      %p88 = por %p86, %p87
      %p90 = scmp.ne.s32.totalorder %s73, %s89
      %p91 = scmp.eq.s32.totalorder %s18, 0
      %p92 = por %p90, %p91
      %p93 = scmp.le.s32.totalorder 1, %s12
      %p94 = scmp.lt.s32.totalorder %s12, 3
      %p95 = pnand %p93, %p94
      %p96 = pneg %p95
      // Predicated region
      $region9: #{depth_wise_forward.1} parent=5 // pred_check
        _
      $region10: #{depth_wise_forward.1} parent=5 // pred_check_branch
        %98 = sbr.rel (%p95) target = $region12
      $region11: #{depth_wise_forward.1} parent=5 // pred_region
        %s99 = ssub.s32 %s12, 1
        // Predicated region
        $region13: #{depth_wise_forward.1} parent=11 // pred_check
          %p100 = pneg %p59
        $region14: #{depth_wise_forward.1} parent=11 // pred_check_branch
          %102 = sbr.rel (%p100) target = $region16
        $region15: #{depth_wise_forward.1} parent=11 // pred_region
          %s104 = ssub.s32 32, 32
          %105 = vsyncadd [#allocation4], %s104
          %s107 = sshll.u32 %s1, 4
          %s108 = int_to_ptr.vmem [resolvable:$true] %s107
          %110 = dma.vmem_to_smem %s108, 32, [#allocation2], [#allocation4]
        $region16: #{depth_wise_forward.1} parent=11 // pred_fallthru
          _
      $region12: #{depth_wise_forward.1} parent=5 // pred_fallthru
        _
      %p111 = scmp.lt.s32.totalorder %s12, 2
      // Predicated region
      $region17: #{depth_wise_forward.1} parent=5 // pred_check
        %p112 = pneg %p111
      $region18: #{depth_wise_forward.1} parent=5 // pred_check_branch
        %114 = sbr.rel (%p112) target = $region20
      $region19: #{depth_wise_forward.1} parent=5 // pred_region
        // Predicated region
        $region21: #{depth_wise_forward.1} parent=19 // pred_check
          %p115 = pneg %p32
        $region22: #{depth_wise_forward.1} parent=19 // pred_check_branch
          %117 = sbr.rel (%p115) target = $region24
        $region23: #{depth_wise_forward.1} parent=19 // pred_region
          %p118 = scmp.lt.s32.totalorder %s12, 1
          %s119 = scalar_select %p118, %s12, 1
          %s120 = smul.addr %s119, 32
          %s121 = smul.addr %s120, 8
          %s122 = scalar_lea.vmem %s0, %s121
        $region24: #{depth_wise_forward.1} parent=19 // pred_fallthru
          _
      $region20: #{depth_wise_forward.1} parent=5 // pred_fallthru
        _
      %p123 = scmp.le.s32.totalorder 1, %s12
      %p124 = scmp.lt.s32.totalorder %s12, 3
      %p125 = pnand %p123, %p124
      %p126 = pneg %p125
      // Predicated region
      $region25: #{depth_wise_forward.1} parent=5 // pred_check
        _
      $region26: #{depth_wise_forward.1} parent=5 // pred_check_branch
        %128 = sbr.rel (%p125) target = $region28
      $region27: #{depth_wise_forward.1} parent=5 // pred_region
        %s129 = ssub.s32 %s12, 1
        // Predicated region
        $region29: #{depth_wise_forward.1} parent=27 // pred_check
          %p130 = pneg %p59
        $region30: #{depth_wise_forward.1} parent=27 // pred_check_branch
          %132 = sbr.rel (%p130) target = $region32
        $region31: #{depth_wise_forward.1} parent=27 // pred_region
          %133 = dma.done [#allocation4], 32
        $region32: #{depth_wise_forward.1} parent=27 // pred_fallthru
          _
        %134 = sfence
        %p135 = scmp.lt.s32.totalorder %s17, 1
        %s136 = scalar_select %p135, %s17, 1
        %s137 = smul.addr %s136, 32
        %s138 = smul.addr %s137, 8
        %s139 = scalar_lea.vmem %s0, %s138
        %p140 = pneg %p38
        %p141 = pneg %p35
        %p142 = pneg %p59
        %p143 = pneg %p56
        %p144 = pneg %p85
        %p145 = pneg %p82
        %s146 = sand.u32 %s72, 1
        %s147 = scalar_lea.sflag [#allocation3], %s146
        %s148 = sand.u32 %s72, 1
        %s149 = smul.addr %s148, 64
        %s150 = scalar_lea.vmem [#allocation5], %s149
        %p151 = scmp.lt.s32.totalorder %s17, 1
        %s152 = scalar_select %p151, %s17, 1
        %s153 = smul.addr %s152, 32
        %s154 = smul.addr %s153, 8
        %s155 = scalar_lea.vmem %s0, %s154
        %v156 = vlaneseq
        %v157 = vshrl.u32 %v156, 7
        %v158 = vadd.s32 %v157, 8
        %v159 = vlaneseq
        %v160 = vand.u32 %v159, 127
        %vm161 = vcmp.ge.s32.totalorder %v157, 1
        %vm162 = vcmp.ge.s32.totalorder %v158, 1
        %vm163 = vcmp.ge.s32.totalorder %v160, 1
        %vm164 = vmand %vm161, %vm163
        %vm165 = vmand %vm162, %vm163
        %vm166 = vcmp.le.s32.totalorder %v160, 7
        %vm167 = vmand %vm161, %vm166
        %vm168 = vmand %vm162, %vm166
        %vm169 = vcmp.le.s32.totalorder %v157, 7
        %vm170 = vmand %vm169, %vm163
        %vm171 = vmand %vm169, %vm166
        %s172 = sld [smem:[#allocation2 + $0x20]]
        %s173 = sld [smem:[#allocation2 + $0x28]]
        %s174 = sld [smem:[#allocation2 + $0x78]]
        %s175 = sld [smem:[#allocation2 + $0x80]]
        %v176 = vld [vmem:[%s155] sm:$0xff]
        %v177 = vld [vmem:[%s155 + $0x8] sm:$0x1]
        %s178 = sld [smem:[#allocation2]]
        %v179 = vstv %s178
        %v180 = vmul.f32 %v176, %v179
        %v181 = vmul.f32 %v177, %v179
        %s182 = scalar_lea.vmem %s155, 16
        %v183 = vld [vmem:[%s182] sm:$0xff]
        %v184 = vld [vmem:[%s182 + $0x8] sm:$0x1]
        %s185 = sld [smem:[#allocation2 + $0x8]]
        %v186 = vstv %s185
        %v187 = vmul.f32 %v183, %v186
        %v188 = vmul.f32 %v184, %v186
        %v189 = vadd.f32 %v180, %v187
        %v190 = vadd.f32 %v181, %v188
        %s191 = scalar_lea.vmem %s155, 32
        %v192 = vld [vmem:[%s191] sm:$0xff]
        %v193 = vld [vmem:[%s191 + $0x8] sm:$0x1]
        %s194 = sld [smem:[#allocation2 + $0x10]]
        %v195 = vstv %s194
        %v196 = vmul.f32 %v192, %v195
        %v197 = vmul.f32 %v193, %v195
        %v198 = vadd.f32 %v189, %v196
        %v199 = vadd.f32 %v190, %v197
        %s200 = scalar_lea.vmem %s155, 48
        %v201 = vld [vmem:[%s200] sm:$0xff]
        %v202 = vld [vmem:[%s200 + $0x8] sm:$0x1]
        %s203 = sld [smem:[#allocation2 + $0x18]]
        %v204 = vstv %s203
        %v205 = vmul.f32 %v201, %v204
        %v206 = vmul.f32 %v202, %v204
        %v207 = vadd.f32 %v198, %v205
        %v208 = vadd.f32 %v199, %v206
        %v209 = vstv %s172
        %v210 = vadd.f32 %v207, %v209
        %v211 = vadd.f32 %v208, %v209
        %vm212 = vcmp.ge.f32.partialorder %v210, 0.0
        %vm213 = vcmp.ge.f32.partialorder %v211, 0.0
        %v214 = vstv %s173
        %v215 = vmul.f32 %v214, %v210
        %v216 = vmul.f32 %v214, %v211
        %v217 = vsel %vm212, %v210, %v215
        %v218 = vsel %vm213, %v211, %v216
        %v219 = vsel %vm164, %v217, 0.0
        %v220 = vsel %vm165, %v218, 0.0
        %s221 = scalar_lea.vmem %s155, 64
        %v222 = vld [vmem:[%s221] sm:$0xff]
        %v223 = vld [vmem:[%s221 + $0x8] sm:$0x1]
        %v224 = vmul.f32 %v222, %v179
        %v225 = vmul.f32 %v223, %v179
        %s226 = scalar_lea.vmem %s155, 80
        %v227 = vld [vmem:[%s226] sm:$0xff]
        %v228 = vld [vmem:[%s226 + $0x8] sm:$0x1]
        %v229 = vmul.f32 %v227, %v186
        %v230 = vmul.f32 %v228, %v186
        %v231 = vadd.f32 %v224, %v229
        %v232 = vadd.f32 %v225, %v230
        %s233 = scalar_lea.vmem %s155, 96
        %v234 = vld [vmem:[%s233] sm:$0xff]
        %v235 = vld [vmem:[%s233 + $0x8] sm:$0x1]
        %v236 = vmul.f32 %v234, %v195
        %v237 = vmul.f32 %v235, %v195
        %v238 = vadd.f32 %v231, %v236
        %v239 = vadd.f32 %v232, %v237
        %s240 = scalar_lea.vmem %s155, 112
        %v241 = vld [vmem:[%s240] sm:$0xff]
        %v242 = vld [vmem:[%s240 + $0x8] sm:$0x1]
        %v243 = vmul.f32 %v241, %v204
        %v244 = vmul.f32 %v242, %v204
        %v245 = vadd.f32 %v238, %v243
        %v246 = vadd.f32 %v239, %v244
        %v247 = vadd.f32 %v245, %v209
        %v248 = vadd.f32 %v246, %v209
        %vm249 = vcmp.ge.f32.partialorder %v247, 0.0
        %vm250 = vcmp.ge.f32.partialorder %v248, 0.0
        %v251 = vmul.f32 %v214, %v247
        %v252 = vmul.f32 %v214, %v248
        %v253 = vsel %vm249, %v247, %v251
        %v254 = vsel %vm250, %v248, %v252
        %v255 = vsel %vm167, %v253, 0.0
        %v256 = vsel %vm168, %v254, 0.0
        %s257 = scalar_lea.vmem %s155, 128
        %v258 = vld [vmem:[%s257] sm:$0xff]
        %v259 = vmul.f32 %v258, %v179
        %s260 = scalar_lea.vmem %s155, 144
        %v261 = vld [vmem:[%s260] sm:$0xff]
        %v262 = vmul.f32 %v261, %v186
        %v263 = vadd.f32 %v259, %v262
        %s264 = scalar_lea.vmem %s155, 160
        %v265 = vld [vmem:[%s264] sm:$0xff]
        %v266 = vmul.f32 %v265, %v195
        %v267 = vadd.f32 %v263, %v266
        %s268 = scalar_lea.vmem %s155, 176
        %v269 = vld [vmem:[%s268] sm:$0xff]
        %v270 = vmul.f32 %v269, %v204
        %v271 = vadd.f32 %v267, %v270
        %v272 = vadd.f32 %v271, %v209
        %vm273 = vcmp.ge.f32.partialorder %v272, 0.0
        %v274 = vmul.f32 %v214, %v272
        %v275 = vsel %vm273, %v272, %v274
        %v276 = vsel %vm170, %v275, 0.0
        %s277 = scalar_lea.vmem %s155, 192
        %v278 = vld [vmem:[%s277] sm:$0xff]
        %v279 = vmul.f32 %v278, %v179
        %s280 = scalar_lea.vmem %s155, 208
        %v281 = vld [vmem:[%s280] sm:$0xff]
        %v282 = vmul.f32 %v281, %v186
        %v283 = vadd.f32 %v279, %v282
        %s284 = scalar_lea.vmem %s155, 224
        %v285 = vld [vmem:[%s284] sm:$0xff]
        %v286 = vmul.f32 %v285, %v195
        %v287 = vadd.f32 %v283, %v286
        %s288 = scalar_lea.vmem %s155, 240
        %v289 = vld [vmem:[%s288] sm:$0xff]
        %v290 = vmul.f32 %v289, %v204
        %v291 = vadd.f32 %v287, %v290
        %v292 = vadd.f32 %v291, %v209
        %vm293 = vcmp.ge.f32.partialorder %v292, 0.0
        %v294 = vmul.f32 %v214, %v292
        %v295 = vsel %vm293, %v292, %v294
        %v296 = vsel %vm171, %v295, 0.0
        %s297 = sld [smem:[#allocation2 + $0x30]]
        %v298 = vstv %s297
        %v299 = vmul.f32 %v219, %v298
        %s300 = sld [smem:[#allocation2 + $0x31]]
        %v301 = vstv %s300
        %v302 = vmul.f32 %v255, %v301
        %v303 = vadd.f32 %v299, %v302
        %s304 = sld [smem:[#allocation2 + $0x32]]
        %v305 = vstv %s304
        %v306 = vmul.f32 %v219, %v305
        %308 = vrot.lane.b32.xlu0 %v306, 127
        %v309 = vpop.permute.xlu0 %308
        %v311 = vadd.f32 %v303, %v309
        %s312 = sld [smem:[#allocation2 + $0x33]]
        %v313 = vstv %s312
        %v314 = vmul.f32 %v276, %v313
        %v315 = vadd.f32 %v311, %v314
        %s316 = sld [smem:[#allocation2 + $0x34]]
        %v317 = vstv %s316
        %v318 = vmul.f32 %v296, %v317
        %v319 = vadd.f32 %v315, %v318
        %s320 = sld [smem:[#allocation2 + $0x35]]
        %v321 = vstv %s320
        %v322 = vmul.f32 %v276, %v321
        %324 = vrot.lane.b32.xlu0 %v322, 127
        %v325 = vpop.permute.xlu0 %324
        %v327 = vadd.f32 %v319, %v325
        %s328 = sld [smem:[#allocation2 + $0x36]]
        %v329 = vstv %s328
        %v330 = vmul.f32 %v219, %v329
        %v331 = vmul.f32 %v220, %v329
        %vm334 = vcmask 1046528
        %v335 = vrot.slane %v330, 1
        %v336 = vrot.slane %v331, 1
        %v337 = vsel %vm334, %v335, %v336
        %v339 = vadd.f32 %v327, %v337
        %s340 = sld [smem:[#allocation2 + $0x37]]
        %v341 = vstv %s340
        %v342 = vmul.f32 %v255, %v341
        %v343 = vmul.f32 %v256, %v341
        %v346 = vrot.slane %v342, 1
        %v347 = vrot.slane %v343, 1
        %v348 = vsel %vm334, %v346, %v347
        %v350 = vadd.f32 %v339, %v348
        %s351 = sld [smem:[#allocation2 + $0x38]]
        %v352 = vstv %s351
        %v353 = vmul.f32 %v219, %v352
        %v354 = vmul.f32 %v220, %v352
        %v357 = vrot.slane %v353, 1
        %v358 = vrot.slane %v354, 1
        %v359 = vsel %vm334, %v357, %v358
        %360 = vrot.lane.b32.xlu0 %v359, 127
        %v361 = vpop.permute.xlu0 %360
        %v363 = vadd.f32 %v350, %v361
        %v364 = vstv %s174
        %v365 = vadd.f32 %v363, %v364
        %vm366 = vcmp.ge.f32.partialorder %v365, 0.0
        %v367 = vstv %s175
        %v368 = vmul.f32 %v367, %v365
        %v369 = vsel %vm366, %v365, %v368
        %s370 = sld [smem:[#allocation2 + $0x88]]
        %v371 = vstv %s370
        %v372 = vmul.f32 %v369, %v371
        %s373 = sld [smem:[#allocation2 + $0x89]]
        %v374 = vstv %s373
        %v375 = vmul.f32 %v369, %v374
        %s376 = sld [smem:[#allocation2 + $0x8a]]
        %v377 = vstv %s376
        %v378 = vmul.f32 %v369, %v377
        %s379 = sld [smem:[#allocation2 + $0x8b]]
        %v380 = vstv %s379
        %v381 = vmul.f32 %v369, %v380
        %s382 = sld [smem:[#allocation2 + $0x8c]]
        %v383 = vstv %s382
        %v384 = vmul.f32 %v369, %v383
        %s385 = sld [smem:[#allocation2 + $0x8d]]
        %v386 = vstv %s385
        %v387 = vmul.f32 %v369, %v386
        %s388 = sld [smem:[#allocation2 + $0x8e]]
        %v389 = vstv %s388
        %v390 = vmul.f32 %v369, %v389
        %s391 = sld [smem:[#allocation2 + $0x8f]]
        %v392 = vstv %s391
        %v393 = vmul.f32 %v369, %v392
        %s394 = sld [smem:[#allocation2 + $0x21]]
        %s395 = sld [smem:[#allocation2 + $0x29]]
        %s396 = sld [smem:[#allocation2 + $0x79]]
        %s397 = sld [smem:[#allocation2 + $0x81]]
        %s398 = sld [smem:[#allocation2 + $0x1]]
        %v399 = vstv %s398
        %v400 = vmul.f32 %v176, %v399
        %v401 = vmul.f32 %v177, %v399
        %s402 = sld [smem:[#allocation2 + $0x9]]
        %v403 = vstv %s402
        %v404 = vmul.f32 %v183, %v403
        %v405 = vmul.f32 %v184, %v403
        %v406 = vadd.f32 %v400, %v404
        %v407 = vadd.f32 %v401, %v405
        %s408 = sld [smem:[#allocation2 + $0x11]]
        %v409 = vstv %s408
        %v410 = vmul.f32 %v192, %v409
        %v411 = vmul.f32 %v193, %v409
        %v412 = vadd.f32 %v406, %v410
        %v413 = vadd.f32 %v407, %v411
        %s414 = sld [smem:[#allocation2 + $0x19]]
        %v415 = vstv %s414
        %v416 = vmul.f32 %v201, %v415
        %v417 = vmul.f32 %v202, %v415
        %v418 = vadd.f32 %v412, %v416
        %v419 = vadd.f32 %v413, %v417
        %v420 = vstv %s394
        %v421 = vadd.f32 %v418, %v420
        %v422 = vadd.f32 %v419, %v420
        %vm423 = vcmp.ge.f32.partialorder %v421, 0.0
        %vm424 = vcmp.ge.f32.partialorder %v422, 0.0
        %v425 = vstv %s395
        %v426 = vmul.f32 %v425, %v421
        %v427 = vmul.f32 %v425, %v422
        %v428 = vsel %vm423, %v421, %v426
        %v429 = vsel %vm424, %v422, %v427
        %v430 = vsel %vm164, %v428, 0.0
        %v431 = vsel %vm165, %v429, 0.0
        %v432 = vmul.f32 %v222, %v399
        %v433 = vmul.f32 %v223, %v399
        %v434 = vmul.f32 %v227, %v403
        %v435 = vmul.f32 %v228, %v403
        %v436 = vadd.f32 %v432, %v434
        %v437 = vadd.f32 %v433, %v435
        %v438 = vmul.f32 %v234, %v409
        %v439 = vmul.f32 %v235, %v409
        %v440 = vadd.f32 %v436, %v438
        %v441 = vadd.f32 %v437, %v439
        %v442 = vmul.f32 %v241, %v415
        %v443 = vmul.f32 %v242, %v415
        %v444 = vadd.f32 %v440, %v442
        %v445 = vadd.f32 %v441, %v443
        %v446 = vadd.f32 %v444, %v420
        %v447 = vadd.f32 %v445, %v420
        %vm448 = vcmp.ge.f32.partialorder %v446, 0.0
        %vm449 = vcmp.ge.f32.partialorder %v447, 0.0
        %v450 = vmul.f32 %v425, %v446
        %v451 = vmul.f32 %v425, %v447
        %v452 = vsel %vm448, %v446, %v450
        %v453 = vsel %vm449, %v447, %v451
        %v454 = vsel %vm167, %v452, 0.0
        %v455 = vsel %vm168, %v453, 0.0
        %v456 = vmul.f32 %v258, %v399
        %v457 = vmul.f32 %v261, %v403
        %v458 = vadd.f32 %v456, %v457
        %v459 = vmul.f32 %v265, %v409
        %v460 = vadd.f32 %v458, %v459
        %v461 = vmul.f32 %v269, %v415
        %v462 = vadd.f32 %v460, %v461
        %v463 = vadd.f32 %v462, %v420
        %vm464 = vcmp.ge.f32.partialorder %v463, 0.0
        %v465 = vmul.f32 %v425, %v463
        %v466 = vsel %vm464, %v463, %v465
        %v467 = vsel %vm170, %v466, 0.0
        %v468 = vmul.f32 %v278, %v399
        %v469 = vmul.f32 %v281, %v403
        %v470 = vadd.f32 %v468, %v469
        %v471 = vmul.f32 %v285, %v409
        %v472 = vadd.f32 %v470, %v471
        %v473 = vmul.f32 %v289, %v415
        %v474 = vadd.f32 %v472, %v473
        %v475 = vadd.f32 %v474, %v420
        %vm476 = vcmp.ge.f32.partialorder %v475, 0.0
        %v477 = vmul.f32 %v425, %v475
        %v478 = vsel %vm476, %v475, %v477
        %v479 = vsel %vm171, %v478, 0.0
        %s480 = sld [smem:[#allocation2 + $0x39]]
        %v481 = vstv %s480
        %v482 = vmul.f32 %v430, %v481
        %s483 = sld [smem:[#allocation2 + $0x3a]]
        %v484 = vstv %s483
        %v485 = vmul.f32 %v454, %v484
        %v486 = vadd.f32 %v482, %v485
        %s487 = sld [smem:[#allocation2 + $0x3b]]
        %v488 = vstv %s487
        %v489 = vmul.f32 %v430, %v488
        %491 = vrot.lane.b32.xlu0 %v489, 127
        %v492 = vpop.permute.xlu0 %491
        %v494 = vadd.f32 %v486, %v492
        %s495 = sld [smem:[#allocation2 + $0x3c]]
        %v496 = vstv %s495
        %v497 = vmul.f32 %v467, %v496
        %v498 = vadd.f32 %v494, %v497
        %s499 = sld [smem:[#allocation2 + $0x3d]]
        %v500 = vstv %s499
        %v501 = vmul.f32 %v479, %v500
        %v502 = vadd.f32 %v498, %v501
        %s503 = sld [smem:[#allocation2 + $0x3e]]
        %v504 = vstv %s503
        %v505 = vmul.f32 %v467, %v504
        %507 = vrot.lane.b32.xlu0 %v505, 127
        %v508 = vpop.permute.xlu0 %507
        %v510 = vadd.f32 %v502, %v508
        %s511 = sld [smem:[#allocation2 + $0x3f]]
        %v512 = vstv %s511
        %v513 = vmul.f32 %v430, %v512
        %v514 = vmul.f32 %v431, %v512
        %v517 = vrot.slane %v513, 1
        %v518 = vrot.slane %v514, 1
        %v519 = vsel %vm334, %v517, %v518
        %v521 = vadd.f32 %v510, %v519
        %s522 = sld [smem:[#allocation2 + $0x40]]
        %v523 = vstv %s522
        %v524 = vmul.f32 %v454, %v523
        %v525 = vmul.f32 %v455, %v523
        %v528 = vrot.slane %v524, 1
        %v529 = vrot.slane %v525, 1
        %v530 = vsel %vm334, %v528, %v529
        %v532 = vadd.f32 %v521, %v530
        %s533 = sld [smem:[#allocation2 + $0x41]]
        %v534 = vstv %s533
        %v535 = vmul.f32 %v430, %v534
        %v536 = vmul.f32 %v431, %v534
        %v539 = vrot.slane %v535, 1
        %v540 = vrot.slane %v536, 1
        %v541 = vsel %vm334, %v539, %v540
        %542 = vrot.lane.b32.xlu0 %v541, 127
        %v543 = vpop.permute.xlu0 %542
        %v545 = vadd.f32 %v532, %v543
        %v546 = vstv %s396
        %v547 = vadd.f32 %v545, %v546
        %vm548 = vcmp.ge.f32.partialorder %v547, 0.0
        %v549 = vstv %s397
        %v550 = vmul.f32 %v549, %v547
        %v551 = vsel %vm548, %v547, %v550
        %s552 = sld [smem:[#allocation2 + $0x90]]
        %v553 = vstv %s552
        %v554 = vmul.f32 %v551, %v553
        %v555 = vadd.f32 %v372, %v554
        %s556 = sld [smem:[#allocation2 + $0x91]]
        %v557 = vstv %s556
        %v558 = vmul.f32 %v551, %v557
        %v559 = vadd.f32 %v375, %v558
        %s560 = sld [smem:[#allocation2 + $0x92]]
        %v561 = vstv %s560
        %v562 = vmul.f32 %v551, %v561
        %v563 = vadd.f32 %v378, %v562
        %s564 = sld [smem:[#allocation2 + $0x93]]
        %v565 = vstv %s564
        %v566 = vmul.f32 %v551, %v565
        %v567 = vadd.f32 %v381, %v566
        %s568 = sld [smem:[#allocation2 + $0x94]]
        %v569 = vstv %s568
        %v570 = vmul.f32 %v551, %v569
        %v571 = vadd.f32 %v384, %v570
        %s572 = sld [smem:[#allocation2 + $0x95]]
        %v573 = vstv %s572
        %v574 = vmul.f32 %v551, %v573
        %v575 = vadd.f32 %v387, %v574
        %s576 = sld [smem:[#allocation2 + $0x96]]
        %v577 = vstv %s576
        %v578 = vmul.f32 %v551, %v577
        %v579 = vadd.f32 %v390, %v578
        %s580 = sld [smem:[#allocation2 + $0x97]]
        %v581 = vstv %s580
        %v582 = vmul.f32 %v551, %v581
        %v583 = vadd.f32 %v393, %v582
        %s584 = sld [smem:[#allocation2 + $0x22]]
        %s585 = sld [smem:[#allocation2 + $0x2a]]
        %s586 = sld [smem:[#allocation2 + $0x7a]]
        %s587 = sld [smem:[#allocation2 + $0x82]]
        %s588 = sld [smem:[#allocation2 + $0x2]]
        %v589 = vstv %s588
        %v590 = vmul.f32 %v176, %v589
        %v591 = vmul.f32 %v177, %v589
        %s592 = sld [smem:[#allocation2 + $0xa]]
        %v593 = vstv %s592
        %v594 = vmul.f32 %v183, %v593
        %v595 = vmul.f32 %v184, %v593
        %v596 = vadd.f32 %v590, %v594
        %v597 = vadd.f32 %v591, %v595
        %s598 = sld [smem:[#allocation2 + $0x12]]
        %v599 = vstv %s598
        %v600 = vmul.f32 %v192, %v599
        %v601 = vmul.f32 %v193, %v599
        %v602 = vadd.f32 %v596, %v600
        %v603 = vadd.f32 %v597, %v601
        %s604 = sld [smem:[#allocation2 + $0x1a]]
        %v605 = vstv %s604
        %v606 = vmul.f32 %v201, %v605
        %v607 = vmul.f32 %v202, %v605
        %v608 = vadd.f32 %v602, %v606
        %v609 = vadd.f32 %v603, %v607
        %v610 = vstv %s584
        %v611 = vadd.f32 %v608, %v610
        %v612 = vadd.f32 %v609, %v610
        %vm613 = vcmp.ge.f32.partialorder %v611, 0.0
        %vm614 = vcmp.ge.f32.partialorder %v612, 0.0
        %v615 = vstv %s585
        %v616 = vmul.f32 %v615, %v611
        %v617 = vmul.f32 %v615, %v612
        %v618 = vsel %vm613, %v611, %v616
        %v619 = vsel %vm614, %v612, %v617
        %v620 = vsel %vm164, %v618, 0.0
        %v621 = vsel %vm165, %v619, 0.0
        %v622 = vmul.f32 %v222, %v589
        %v623 = vmul.f32 %v223, %v589
        %v624 = vmul.f32 %v227, %v593
        %v625 = vmul.f32 %v228, %v593
        %v626 = vadd.f32 %v622, %v624
        %v627 = vadd.f32 %v623, %v625
        %v628 = vmul.f32 %v234, %v599
        %v629 = vmul.f32 %v235, %v599
        %v630 = vadd.f32 %v626, %v628
        %v631 = vadd.f32 %v627, %v629
        %v632 = vmul.f32 %v241, %v605
        %v633 = vmul.f32 %v242, %v605
        %v634 = vadd.f32 %v630, %v632
        %v635 = vadd.f32 %v631, %v633
        %v636 = vadd.f32 %v634, %v610
        %v637 = vadd.f32 %v635, %v610
        %vm638 = vcmp.ge.f32.partialorder %v636, 0.0
        %vm639 = vcmp.ge.f32.partialorder %v637, 0.0
        %v640 = vmul.f32 %v615, %v636
        %v641 = vmul.f32 %v615, %v637
        %v642 = vsel %vm638, %v636, %v640
        %v643 = vsel %vm639, %v637, %v641
        %v644 = vsel %vm167, %v642, 0.0
        %v645 = vsel %vm168, %v643, 0.0
        %v646 = vmul.f32 %v258, %v589
        %v647 = vmul.f32 %v261, %v593
        %v648 = vadd.f32 %v646, %v647
        %v649 = vmul.f32 %v265, %v599
        %v650 = vadd.f32 %v648, %v649
        %v651 = vmul.f32 %v269, %v605
        %v652 = vadd.f32 %v650, %v651
        %v653 = vadd.f32 %v652, %v610
        %vm654 = vcmp.ge.f32.partialorder %v653, 0.0
        %v655 = vmul.f32 %v615, %v653
        %v656 = vsel %vm654, %v653, %v655
        %v657 = vsel %vm170, %v656, 0.0
        %v658 = vmul.f32 %v278, %v589
        %v659 = vmul.f32 %v281, %v593
        %v660 = vadd.f32 %v658, %v659
        %v661 = vmul.f32 %v285, %v599
        %v662 = vadd.f32 %v660, %v661
        %v663 = vmul.f32 %v289, %v605
        %v664 = vadd.f32 %v662, %v663
        %v665 = vadd.f32 %v664, %v610
        %vm666 = vcmp.ge.f32.partialorder %v665, 0.0
        %v667 = vmul.f32 %v615, %v665
        %v668 = vsel %vm666, %v665, %v667
        %v669 = vsel %vm171, %v668, 0.0
        %s670 = sld [smem:[#allocation2 + $0x42]]
        %v671 = vstv %s670
        %v672 = vmul.f32 %v620, %v671
        %s673 = sld [smem:[#allocation2 + $0x43]]
        %v674 = vstv %s673
        %v675 = vmul.f32 %v644, %v674
        %v676 = vadd.f32 %v672, %v675
        %s677 = sld [smem:[#allocation2 + $0x44]]
        %v678 = vstv %s677
        %v679 = vmul.f32 %v620, %v678
        %681 = vrot.lane.b32.xlu0 %v679, 127
        %v682 = vpop.permute.xlu0 %681
        %v684 = vadd.f32 %v676, %v682
        %s685 = sld [smem:[#allocation2 + $0x45]]
        %v686 = vstv %s685
        %v687 = vmul.f32 %v657, %v686
        %v688 = vadd.f32 %v684, %v687
        %s689 = sld [smem:[#allocation2 + $0x46]]
        %v690 = vstv %s689
        %v691 = vmul.f32 %v669, %v690
        %v692 = vadd.f32 %v688, %v691
        %s693 = sld [smem:[#allocation2 + $0x47]]
        %v694 = vstv %s693
        %v695 = vmul.f32 %v657, %v694
        %697 = vrot.lane.b32.xlu0 %v695, 127
        %v698 = vpop.permute.xlu0 %697
        %v700 = vadd.f32 %v692, %v698
        %s701 = sld [smem:[#allocation2 + $0x48]]
        %v702 = vstv %s701
        %v703 = vmul.f32 %v620, %v702
        %v704 = vmul.f32 %v621, %v702
        %v707 = vrot.slane %v703, 1
        %v708 = vrot.slane %v704, 1
        %v709 = vsel %vm334, %v707, %v708
        %v711 = vadd.f32 %v700, %v709
        %s712 = sld [smem:[#allocation2 + $0x49]]
        %v713 = vstv %s712
        %v714 = vmul.f32 %v644, %v713
        %v715 = vmul.f32 %v645, %v713
        %v718 = vrot.slane %v714, 1
        %v719 = vrot.slane %v715, 1
        %v720 = vsel %vm334, %v718, %v719
        %v722 = vadd.f32 %v711, %v720
        %s723 = sld [smem:[#allocation2 + $0x4a]]
        %v724 = vstv %s723
        %v725 = vmul.f32 %v620, %v724
        %v726 = vmul.f32 %v621, %v724
        %v729 = vrot.slane %v725, 1
        %v730 = vrot.slane %v726, 1
        %v731 = vsel %vm334, %v729, %v730
        %732 = vrot.lane.b32.xlu0 %v731, 127
        %v733 = vpop.permute.xlu0 %732
        %v735 = vadd.f32 %v722, %v733
        %v736 = vstv %s586
        %v737 = vadd.f32 %v735, %v736
        %vm738 = vcmp.ge.f32.partialorder %v737, 0.0
        %v739 = vstv %s587
        %v740 = vmul.f32 %v739, %v737
        %v741 = vsel %vm738, %v737, %v740
        %s742 = sld [smem:[#allocation2 + $0x98]]
        %v743 = vstv %s742
        %v744 = vmul.f32 %v741, %v743
        %v745 = vadd.f32 %v555, %v744
        %s746 = sld [smem:[#allocation2 + $0x99]]
        %v747 = vstv %s746
        %v748 = vmul.f32 %v741, %v747
        %v749 = vadd.f32 %v559, %v748
        %s750 = sld [smem:[#allocation2 + $0x9a]]
        %v751 = vstv %s750
        %v752 = vmul.f32 %v741, %v751
        %v753 = vadd.f32 %v563, %v752
        %s754 = sld [smem:[#allocation2 + $0x9b]]
        %v755 = vstv %s754
        %v756 = vmul.f32 %v741, %v755
        %v757 = vadd.f32 %v567, %v756
        %s758 = sld [smem:[#allocation2 + $0x9c]]
        %v759 = vstv %s758
        %v760 = vmul.f32 %v741, %v759
        %v761 = vadd.f32 %v571, %v760
        %s762 = sld [smem:[#allocation2 + $0x9d]]
        %v763 = vstv %s762
        %v764 = vmul.f32 %v741, %v763
        %v765 = vadd.f32 %v575, %v764
        %s766 = sld [smem:[#allocation2 + $0x9e]]
        %v767 = vstv %s766
        %v768 = vmul.f32 %v741, %v767
        %v769 = vadd.f32 %v579, %v768
        %s770 = sld [smem:[#allocation2 + $0x9f]]
        %v771 = vstv %s770
        %v772 = vmul.f32 %v741, %v771
        %v773 = vadd.f32 %v583, %v772
        %s774 = sld [smem:[#allocation2 + $0x23]]
        %s775 = sld [smem:[#allocation2 + $0x2b]]
        %s776 = sld [smem:[#allocation2 + $0x7b]]
        %s777 = sld [smem:[#allocation2 + $0x83]]
        %s778 = sld [smem:[#allocation2 + $0x3]]
        %v779 = vstv %s778
        %v780 = vmul.f32 %v176, %v779
        %v781 = vmul.f32 %v177, %v779
        %s782 = sld [smem:[#allocation2 + $0xb]]
        %v783 = vstv %s782
        %v784 = vmul.f32 %v183, %v783
        %v785 = vmul.f32 %v184, %v783
        %v786 = vadd.f32 %v780, %v784
        %v787 = vadd.f32 %v781, %v785
        %s788 = sld [smem:[#allocation2 + $0x13]]
        %v789 = vstv %s788
        %v790 = vmul.f32 %v192, %v789
        %v791 = vmul.f32 %v193, %v789
        %v792 = vadd.f32 %v786, %v790
        %v793 = vadd.f32 %v787, %v791
        %s794 = sld [smem:[#allocation2 + $0x1b]]
        %v795 = vstv %s794
        %v796 = vmul.f32 %v201, %v795
        %v797 = vmul.f32 %v202, %v795
        %v798 = vadd.f32 %v792, %v796
        %v799 = vadd.f32 %v793, %v797
        %v800 = vstv %s774
        %v801 = vadd.f32 %v798, %v800
        %v802 = vadd.f32 %v799, %v800
        %vm803 = vcmp.ge.f32.partialorder %v801, 0.0
        %vm804 = vcmp.ge.f32.partialorder %v802, 0.0
        %v805 = vstv %s775
        %v806 = vmul.f32 %v805, %v801
        %v807 = vmul.f32 %v805, %v802
        %v808 = vsel %vm803, %v801, %v806
        %v809 = vsel %vm804, %v802, %v807
        %v810 = vsel %vm164, %v808, 0.0
        %v811 = vsel %vm165, %v809, 0.0
        %v812 = vmul.f32 %v222, %v779
        %v813 = vmul.f32 %v223, %v779
        %v814 = vmul.f32 %v227, %v783
        %v815 = vmul.f32 %v228, %v783
        %v816 = vadd.f32 %v812, %v814
        %v817 = vadd.f32 %v813, %v815
        %v818 = vmul.f32 %v234, %v789
        %v819 = vmul.f32 %v235, %v789
        %v820 = vadd.f32 %v816, %v818
        %v821 = vadd.f32 %v817, %v819
        %v822 = vmul.f32 %v241, %v795
        %v823 = vmul.f32 %v242, %v795
        %v824 = vadd.f32 %v820, %v822
        %v825 = vadd.f32 %v821, %v823
        %v826 = vadd.f32 %v824, %v800
        %v827 = vadd.f32 %v825, %v800
        %vm828 = vcmp.ge.f32.partialorder %v826, 0.0
        %vm829 = vcmp.ge.f32.partialorder %v827, 0.0
        %v830 = vmul.f32 %v805, %v826
        %v831 = vmul.f32 %v805, %v827
        %v832 = vsel %vm828, %v826, %v830
        %v833 = vsel %vm829, %v827, %v831
        %v834 = vsel %vm167, %v832, 0.0
        %v835 = vsel %vm168, %v833, 0.0
        %v836 = vmul.f32 %v258, %v779
        %v837 = vmul.f32 %v261, %v783
        %v838 = vadd.f32 %v836, %v837
        %v839 = vmul.f32 %v265, %v789
        %v840 = vadd.f32 %v838, %v839
        %v841 = vmul.f32 %v269, %v795
        %v842 = vadd.f32 %v840, %v841
        %v843 = vadd.f32 %v842, %v800
        %vm844 = vcmp.ge.f32.partialorder %v843, 0.0
        %v845 = vmul.f32 %v805, %v843
        %v846 = vsel %vm844, %v843, %v845
        %v847 = vsel %vm170, %v846, 0.0
        %v848 = vmul.f32 %v278, %v779
        %v849 = vmul.f32 %v281, %v783
        %v850 = vadd.f32 %v848, %v849
        %v851 = vmul.f32 %v285, %v789
        %v852 = vadd.f32 %v850, %v851
        %v853 = vmul.f32 %v289, %v795
        %v854 = vadd.f32 %v852, %v853
        %v855 = vadd.f32 %v854, %v800
        %vm856 = vcmp.ge.f32.partialorder %v855, 0.0
        %v857 = vmul.f32 %v805, %v855
        %v858 = vsel %vm856, %v855, %v857
        %v859 = vsel %vm171, %v858, 0.0
        %s860 = sld [smem:[#allocation2 + $0x4b]]
        %v861 = vstv %s860
        %v862 = vmul.f32 %v810, %v861
        %s863 = sld [smem:[#allocation2 + $0x4c]]
        %v864 = vstv %s863
        %v865 = vmul.f32 %v834, %v864
        %v866 = vadd.f32 %v862, %v865
        %s867 = sld [smem:[#allocation2 + $0x4d]]
        %v868 = vstv %s867
        %v869 = vmul.f32 %v810, %v868
        %871 = vrot.lane.b32.xlu0 %v869, 127
        %v872 = vpop.permute.xlu0 %871
        %v874 = vadd.f32 %v866, %v872
        %s875 = sld [smem:[#allocation2 + $0x4e]]
        %v876 = vstv %s875
        %v877 = vmul.f32 %v847, %v876
        %v878 = vadd.f32 %v874, %v877
        %s879 = sld [smem:[#allocation2 + $0x4f]]
        %v880 = vstv %s879
        %v881 = vmul.f32 %v859, %v880
        %v882 = vadd.f32 %v878, %v881
        %s883 = sld [smem:[#allocation2 + $0x50]]
        %v884 = vstv %s883
        %v885 = vmul.f32 %v847, %v884
        %887 = vrot.lane.b32.xlu0 %v885, 127
        %v888 = vpop.permute.xlu0 %887
        %v890 = vadd.f32 %v882, %v888
        %s891 = sld [smem:[#allocation2 + $0x51]]
        %v892 = vstv %s891
        %v893 = vmul.f32 %v810, %v892
        %v894 = vmul.f32 %v811, %v892
        %v897 = vrot.slane %v893, 1
        %v898 = vrot.slane %v894, 1
        %v899 = vsel %vm334, %v897, %v898
        %v901 = vadd.f32 %v890, %v899
        %s902 = sld [smem:[#allocation2 + $0x52]]
        %v903 = vstv %s902
        %v904 = vmul.f32 %v834, %v903
        %v905 = vmul.f32 %v835, %v903
        %v908 = vrot.slane %v904, 1
        %v909 = vrot.slane %v905, 1
        %v910 = vsel %vm334, %v908, %v909
        %v912 = vadd.f32 %v901, %v910
        %s913 = sld [smem:[#allocation2 + $0x53]]
        %v914 = vstv %s913
        %v915 = vmul.f32 %v810, %v914
        %v916 = vmul.f32 %v811, %v914
        %v919 = vrot.slane %v915, 1
        %v920 = vrot.slane %v916, 1
        %v921 = vsel %vm334, %v919, %v920
        %922 = vrot.lane.b32.xlu0 %v921, 127
        %v923 = vpop.permute.xlu0 %922
        %v925 = vadd.f32 %v912, %v923
        %v926 = vstv %s776
        %v927 = vadd.f32 %v925, %v926
        %vm928 = vcmp.ge.f32.partialorder %v927, 0.0
        %v929 = vstv %s777
        %v930 = vmul.f32 %v929, %v927
        %v931 = vsel %vm928, %v927, %v930
        %s932 = sld [smem:[#allocation2 + $0xa0]]
        %v933 = vstv %s932
        %v934 = vmul.f32 %v931, %v933
        %v935 = vadd.f32 %v745, %v934
        %s936 = sld [smem:[#allocation2 + $0xa1]]
        %v937 = vstv %s936
        %v938 = vmul.f32 %v931, %v937
        %v939 = vadd.f32 %v749, %v938
        %s940 = sld [smem:[#allocation2 + $0xa2]]
        %v941 = vstv %s940
        %v942 = vmul.f32 %v931, %v941
        %v943 = vadd.f32 %v753, %v942
        %s944 = sld [smem:[#allocation2 + $0xa3]]
        %v945 = vstv %s944
        %v946 = vmul.f32 %v931, %v945
        %v947 = vadd.f32 %v757, %v946
        %s948 = sld [smem:[#allocation2 + $0xa4]]
        %v949 = vstv %s948
        %v950 = vmul.f32 %v931, %v949
        %v951 = vadd.f32 %v761, %v950
        %s952 = sld [smem:[#allocation2 + $0xa5]]
        %v953 = vstv %s952
        %v954 = vmul.f32 %v931, %v953
        %v955 = vadd.f32 %v765, %v954
        %s956 = sld [smem:[#allocation2 + $0xa6]]
        %v957 = vstv %s956
        %v958 = vmul.f32 %v931, %v957
        %v959 = vadd.f32 %v769, %v958
        %s960 = sld [smem:[#allocation2 + $0xa7]]
        %v961 = vstv %s960
        %v962 = vmul.f32 %v931, %v961
        %v963 = vadd.f32 %v773, %v962
        %s964 = sld [smem:[#allocation2 + $0x24]]
        %s965 = sld [smem:[#allocation2 + $0x2c]]
        %s966 = sld [smem:[#allocation2 + $0x7c]]
        %s967 = sld [smem:[#allocation2 + $0x84]]
        %s968 = sld [smem:[#allocation2 + $0x4]]
        %v969 = vstv %s968
        %v970 = vmul.f32 %v176, %v969
        %v971 = vmul.f32 %v177, %v969
        %s972 = sld [smem:[#allocation2 + $0xc]]
        %v973 = vstv %s972
        %v974 = vmul.f32 %v183, %v973
        %v975 = vmul.f32 %v184, %v973
        %v976 = vadd.f32 %v970, %v974
        %v977 = vadd.f32 %v971, %v975
        %s978 = sld [smem:[#allocation2 + $0x14]]
        %v979 = vstv %s978
        %v980 = vmul.f32 %v192, %v979
        %v981 = vmul.f32 %v193, %v979
        %v982 = vadd.f32 %v976, %v980
        %v983 = vadd.f32 %v977, %v981
        %s984 = sld [smem:[#allocation2 + $0x1c]]
        %v985 = vstv %s984
        %v986 = vmul.f32 %v201, %v985
        %v987 = vmul.f32 %v202, %v985
        %v988 = vadd.f32 %v982, %v986
        %v989 = vadd.f32 %v983, %v987
        %v990 = vstv %s964
        %v991 = vadd.f32 %v988, %v990
        %v992 = vadd.f32 %v989, %v990
        %vm993 = vcmp.ge.f32.partialorder %v991, 0.0
        %vm994 = vcmp.ge.f32.partialorder %v992, 0.0
        %v995 = vstv %s965
        %v996 = vmul.f32 %v995, %v991
        %v997 = vmul.f32 %v995, %v992
        %v998 = vsel %vm993, %v991, %v996
        %v999 = vsel %vm994, %v992, %v997
        %v1000 = vsel %vm164, %v998, 0.0
        %v1001 = vsel %vm165, %v999, 0.0
        %v1002 = vmul.f32 %v222, %v969
        %v1003 = vmul.f32 %v223, %v969
        %v1004 = vmul.f32 %v227, %v973
        %v1005 = vmul.f32 %v228, %v973
        %v1006 = vadd.f32 %v1002, %v1004
        %v1007 = vadd.f32 %v1003, %v1005
        %v1008 = vmul.f32 %v234, %v979
        %v1009 = vmul.f32 %v235, %v979
        %v1010 = vadd.f32 %v1006, %v1008
        %v1011 = vadd.f32 %v1007, %v1009
        %v1012 = vmul.f32 %v241, %v985
        %v1013 = vmul.f32 %v242, %v985
        %v1014 = vadd.f32 %v1010, %v1012
        %v1015 = vadd.f32 %v1011, %v1013
        %v1016 = vadd.f32 %v1014, %v990
        %v1017 = vadd.f32 %v1015, %v990
        %vm1018 = vcmp.ge.f32.partialorder %v1016, 0.0
        %vm1019 = vcmp.ge.f32.partialorder %v1017, 0.0
        %v1020 = vmul.f32 %v995, %v1016
        %v1021 = vmul.f32 %v995, %v1017
        %v1022 = vsel %vm1018, %v1016, %v1020
        %v1023 = vsel %vm1019, %v1017, %v1021
        %v1024 = vsel %vm167, %v1022, 0.0
        %v1025 = vsel %vm168, %v1023, 0.0
        %v1026 = vmul.f32 %v258, %v969
        %v1027 = vmul.f32 %v261, %v973
        %v1028 = vadd.f32 %v1026, %v1027
        %v1029 = vmul.f32 %v265, %v979
        %v1030 = vadd.f32 %v1028, %v1029
        %v1031 = vmul.f32 %v269, %v985
        %v1032 = vadd.f32 %v1030, %v1031
        %v1033 = vadd.f32 %v1032, %v990
        %vm1034 = vcmp.ge.f32.partialorder %v1033, 0.0
        %v1035 = vmul.f32 %v995, %v1033
        %v1036 = vsel %vm1034, %v1033, %v1035
        %v1037 = vsel %vm170, %v1036, 0.0
        %v1038 = vmul.f32 %v278, %v969
        %v1039 = vmul.f32 %v281, %v973
        %v1040 = vadd.f32 %v1038, %v1039
        %v1041 = vmul.f32 %v285, %v979
        %v1042 = vadd.f32 %v1040, %v1041
        %v1043 = vmul.f32 %v289, %v985
        %v1044 = vadd.f32 %v1042, %v1043
        %v1045 = vadd.f32 %v1044, %v990
        %vm1046 = vcmp.ge.f32.partialorder %v1045, 0.0
        %v1047 = vmul.f32 %v995, %v1045
        %v1048 = vsel %vm1046, %v1045, %v1047
        %v1049 = vsel %vm171, %v1048, 0.0
        %s1050 = sld [smem:[#allocation2 + $0x54]]
        %v1051 = vstv %s1050
        %v1052 = vmul.f32 %v1000, %v1051
        %s1053 = sld [smem:[#allocation2 + $0x55]]
        %v1054 = vstv %s1053
        %v1055 = vmul.f32 %v1024, %v1054
        %v1056 = vadd.f32 %v1052, %v1055
        %s1057 = sld [smem:[#allocation2 + $0x56]]
        %v1058 = vstv %s1057
        %v1059 = vmul.f32 %v1000, %v1058
        %1061 = vrot.lane.b32.xlu0 %v1059, 127
        %v1062 = vpop.permute.xlu0 %1061
        %v1064 = vadd.f32 %v1056, %v1062
        %s1065 = sld [smem:[#allocation2 + $0x57]]
        %v1066 = vstv %s1065
        %v1067 = vmul.f32 %v1037, %v1066
        %v1068 = vadd.f32 %v1064, %v1067
        %s1069 = sld [smem:[#allocation2 + $0x58]]
        %v1070 = vstv %s1069
        %v1071 = vmul.f32 %v1049, %v1070
        %v1072 = vadd.f32 %v1068, %v1071
        %s1073 = sld [smem:[#allocation2 + $0x59]]
        %v1074 = vstv %s1073
        %v1075 = vmul.f32 %v1037, %v1074
        %1077 = vrot.lane.b32.xlu0 %v1075, 127
        %v1078 = vpop.permute.xlu0 %1077
        %v1080 = vadd.f32 %v1072, %v1078
        %s1081 = sld [smem:[#allocation2 + $0x5a]]
        %v1082 = vstv %s1081
        %v1083 = vmul.f32 %v1000, %v1082
        %v1084 = vmul.f32 %v1001, %v1082
        %v1087 = vrot.slane %v1083, 1
        %v1088 = vrot.slane %v1084, 1
        %v1089 = vsel %vm334, %v1087, %v1088
        %v1091 = vadd.f32 %v1080, %v1089
        %s1092 = sld [smem:[#allocation2 + $0x5b]]
        %v1093 = vstv %s1092
        %v1094 = vmul.f32 %v1024, %v1093
        %v1095 = vmul.f32 %v1025, %v1093
        %v1098 = vrot.slane %v1094, 1
        %v1099 = vrot.slane %v1095, 1
        %v1100 = vsel %vm334, %v1098, %v1099
        %v1102 = vadd.f32 %v1091, %v1100
        %s1103 = sld [smem:[#allocation2 + $0x5c]]
        %v1104 = vstv %s1103
        %v1105 = vmul.f32 %v1000, %v1104
        %v1106 = vmul.f32 %v1001, %v1104
        %v1109 = vrot.slane %v1105, 1
        %v1110 = vrot.slane %v1106, 1
        %v1111 = vsel %vm334, %v1109, %v1110
        %1112 = vrot.lane.b32.xlu0 %v1111, 127
        %v1113 = vpop.permute.xlu0 %1112
        %v1115 = vadd.f32 %v1102, %v1113
        %v1116 = vstv %s966
        %v1117 = vadd.f32 %v1115, %v1116
        %vm1118 = vcmp.ge.f32.partialorder %v1117, 0.0
        %v1119 = vstv %s967
        %v1120 = vmul.f32 %v1119, %v1117
        %v1121 = vsel %vm1118, %v1117, %v1120
        %s1122 = sld [smem:[#allocation2 + $0xa8]]
        %v1123 = vstv %s1122
        %v1124 = vmul.f32 %v1121, %v1123
        %v1125 = vadd.f32 %v935, %v1124
        %s1126 = sld [smem:[#allocation2 + $0xa9]]
        %v1127 = vstv %s1126
        %v1128 = vmul.f32 %v1121, %v1127
        %v1129 = vadd.f32 %v939, %v1128
        %s1130 = sld [smem:[#allocation2 + $0xaa]]
        %v1131 = vstv %s1130
        %v1132 = vmul.f32 %v1121, %v1131
        %v1133 = vadd.f32 %v943, %v1132
        %s1134 = sld [smem:[#allocation2 + $0xab]]
        %v1135 = vstv %s1134
        %v1136 = vmul.f32 %v1121, %v1135
        %v1137 = vadd.f32 %v947, %v1136
        %s1138 = sld [smem:[#allocation2 + $0xac]]
        %v1139 = vstv %s1138
        %v1140 = vmul.f32 %v1121, %v1139
        %v1141 = vadd.f32 %v951, %v1140
        %s1142 = sld [smem:[#allocation2 + $0xad]]
        %v1143 = vstv %s1142
        %v1144 = vmul.f32 %v1121, %v1143
        %v1145 = vadd.f32 %v955, %v1144
        %s1146 = sld [smem:[#allocation2 + $0xae]]
        %v1147 = vstv %s1146
        %v1148 = vmul.f32 %v1121, %v1147
        %v1149 = vadd.f32 %v959, %v1148
        %s1150 = sld [smem:[#allocation2 + $0xaf]]
        %v1151 = vstv %s1150
        %v1152 = vmul.f32 %v1121, %v1151
        %v1153 = vadd.f32 %v963, %v1152
        %s1154 = sld [smem:[#allocation2 + $0x25]]
        %s1155 = sld [smem:[#allocation2 + $0x2d]]
        %s1156 = sld [smem:[#allocation2 + $0x7d]]
        %s1157 = sld [smem:[#allocation2 + $0x85]]
        %s1158 = sld [smem:[#allocation2 + $0x5]]
        %v1159 = vstv %s1158
        %v1160 = vmul.f32 %v176, %v1159
        %v1161 = vmul.f32 %v177, %v1159
        %s1162 = sld [smem:[#allocation2 + $0xd]]
        %v1163 = vstv %s1162
        %v1164 = vmul.f32 %v183, %v1163
        %v1165 = vmul.f32 %v184, %v1163
        %v1166 = vadd.f32 %v1160, %v1164
        %v1167 = vadd.f32 %v1161, %v1165
        %s1168 = sld [smem:[#allocation2 + $0x15]]
        %v1169 = vstv %s1168
        %v1170 = vmul.f32 %v192, %v1169
        %v1171 = vmul.f32 %v193, %v1169
        %v1172 = vadd.f32 %v1166, %v1170
        %v1173 = vadd.f32 %v1167, %v1171
        %s1174 = sld [smem:[#allocation2 + $0x1d]]
        %v1175 = vstv %s1174
        %v1176 = vmul.f32 %v201, %v1175
        %v1177 = vmul.f32 %v202, %v1175
        %v1178 = vadd.f32 %v1172, %v1176
        %v1179 = vadd.f32 %v1173, %v1177
        %v1180 = vstv %s1154
        %v1181 = vadd.f32 %v1178, %v1180
        %v1182 = vadd.f32 %v1179, %v1180
        %vm1183 = vcmp.ge.f32.partialorder %v1181, 0.0
        %vm1184 = vcmp.ge.f32.partialorder %v1182, 0.0
        %v1185 = vstv %s1155
        %v1186 = vmul.f32 %v1185, %v1181
        %v1187 = vmul.f32 %v1185, %v1182
        %v1188 = vsel %vm1183, %v1181, %v1186
        %v1189 = vsel %vm1184, %v1182, %v1187
        %v1190 = vsel %vm164, %v1188, 0.0
        %v1191 = vsel %vm165, %v1189, 0.0
        %v1192 = vmul.f32 %v222, %v1159
        %v1193 = vmul.f32 %v223, %v1159
        %v1194 = vmul.f32 %v227, %v1163
        %v1195 = vmul.f32 %v228, %v1163
        %v1196 = vadd.f32 %v1192, %v1194
        %v1197 = vadd.f32 %v1193, %v1195
        %v1198 = vmul.f32 %v234, %v1169
        %v1199 = vmul.f32 %v235, %v1169
        %v1200 = vadd.f32 %v1196, %v1198
        %v1201 = vadd.f32 %v1197, %v1199
        %v1202 = vmul.f32 %v241, %v1175
        %v1203 = vmul.f32 %v242, %v1175
        %v1204 = vadd.f32 %v1200, %v1202
        %v1205 = vadd.f32 %v1201, %v1203
        %v1206 = vadd.f32 %v1204, %v1180
        %v1207 = vadd.f32 %v1205, %v1180
        %vm1208 = vcmp.ge.f32.partialorder %v1206, 0.0
        %vm1209 = vcmp.ge.f32.partialorder %v1207, 0.0
        %v1210 = vmul.f32 %v1185, %v1206
        %v1211 = vmul.f32 %v1185, %v1207
        %v1212 = vsel %vm1208, %v1206, %v1210
        %v1213 = vsel %vm1209, %v1207, %v1211
        %v1214 = vsel %vm167, %v1212, 0.0
        %v1215 = vsel %vm168, %v1213, 0.0
        %v1216 = vmul.f32 %v258, %v1159
        %v1217 = vmul.f32 %v261, %v1163
        %v1218 = vadd.f32 %v1216, %v1217
        %v1219 = vmul.f32 %v265, %v1169
        %v1220 = vadd.f32 %v1218, %v1219
        %v1221 = vmul.f32 %v269, %v1175
        %v1222 = vadd.f32 %v1220, %v1221
        %v1223 = vadd.f32 %v1222, %v1180
        %vm1224 = vcmp.ge.f32.partialorder %v1223, 0.0
        %v1225 = vmul.f32 %v1185, %v1223
        %v1226 = vsel %vm1224, %v1223, %v1225
        %v1227 = vsel %vm170, %v1226, 0.0
        %v1228 = vmul.f32 %v278, %v1159
        %v1229 = vmul.f32 %v281, %v1163
        %v1230 = vadd.f32 %v1228, %v1229
        %v1231 = vmul.f32 %v285, %v1169
        %v1232 = vadd.f32 %v1230, %v1231
        %v1233 = vmul.f32 %v289, %v1175
        %v1234 = vadd.f32 %v1232, %v1233
        %v1235 = vadd.f32 %v1234, %v1180
        %vm1236 = vcmp.ge.f32.partialorder %v1235, 0.0
        %v1237 = vmul.f32 %v1185, %v1235
        %v1238 = vsel %vm1236, %v1235, %v1237
        %v1239 = vsel %vm171, %v1238, 0.0
        %s1240 = sld [smem:[#allocation2 + $0x5d]]
        %v1241 = vstv %s1240
        %v1242 = vmul.f32 %v1190, %v1241
        %s1243 = sld [smem:[#allocation2 + $0x5e]]
        %v1244 = vstv %s1243
        %v1245 = vmul.f32 %v1214, %v1244
        %v1246 = vadd.f32 %v1242, %v1245
        %s1247 = sld [smem:[#allocation2 + $0x5f]]
        %v1248 = vstv %s1247
        %v1249 = vmul.f32 %v1190, %v1248
        %1251 = vrot.lane.b32.xlu0 %v1249, 127
        %v1252 = vpop.permute.xlu0 %1251
        %v1254 = vadd.f32 %v1246, %v1252
        %s1255 = sld [smem:[#allocation2 + $0x60]]
        %v1256 = vstv %s1255
        %v1257 = vmul.f32 %v1227, %v1256
        %v1258 = vadd.f32 %v1254, %v1257
        %s1259 = sld [smem:[#allocation2 + $0x61]]
        %v1260 = vstv %s1259
        %v1261 = vmul.f32 %v1239, %v1260
        %v1262 = vadd.f32 %v1258, %v1261
        %s1263 = sld [smem:[#allocation2 + $0x62]]
        %v1264 = vstv %s1263
        %v1265 = vmul.f32 %v1227, %v1264
        %1267 = vrot.lane.b32.xlu0 %v1265, 127
        %v1268 = vpop.permute.xlu0 %1267
        %v1270 = vadd.f32 %v1262, %v1268
        %s1271 = sld [smem:[#allocation2 + $0x63]]
        %v1272 = vstv %s1271
        %v1273 = vmul.f32 %v1190, %v1272
        %v1274 = vmul.f32 %v1191, %v1272
        %v1277 = vrot.slane %v1273, 1
        %v1278 = vrot.slane %v1274, 1
        %v1279 = vsel %vm334, %v1277, %v1278
        %v1281 = vadd.f32 %v1270, %v1279
        %s1282 = sld [smem:[#allocation2 + $0x64]]
        %v1283 = vstv %s1282
        %v1284 = vmul.f32 %v1214, %v1283
        %v1285 = vmul.f32 %v1215, %v1283
        %v1288 = vrot.slane %v1284, 1
        %v1289 = vrot.slane %v1285, 1
        %v1290 = vsel %vm334, %v1288, %v1289
        %v1292 = vadd.f32 %v1281, %v1290
        %s1293 = sld [smem:[#allocation2 + $0x65]]
        %v1294 = vstv %s1293
        %v1295 = vmul.f32 %v1190, %v1294
        %v1296 = vmul.f32 %v1191, %v1294
        %v1299 = vrot.slane %v1295, 1
        %v1300 = vrot.slane %v1296, 1
        %v1301 = vsel %vm334, %v1299, %v1300
        %1302 = vrot.lane.b32.xlu0 %v1301, 127
        %v1303 = vpop.permute.xlu0 %1302
        %v1305 = vadd.f32 %v1292, %v1303
        %v1306 = vstv %s1156
        %v1307 = vadd.f32 %v1305, %v1306
        %vm1308 = vcmp.ge.f32.partialorder %v1307, 0.0
        %v1309 = vstv %s1157
        %v1310 = vmul.f32 %v1309, %v1307
        %v1311 = vsel %vm1308, %v1307, %v1310
        %s1312 = sld [smem:[#allocation2 + $0xb0]]
        %v1313 = vstv %s1312
        %v1314 = vmul.f32 %v1311, %v1313
        %v1315 = vadd.f32 %v1125, %v1314
        %s1316 = sld [smem:[#allocation2 + $0xb1]]
        %v1317 = vstv %s1316
        %v1318 = vmul.f32 %v1311, %v1317
        %v1319 = vadd.f32 %v1129, %v1318
        %s1320 = sld [smem:[#allocation2 + $0xb2]]
        %v1321 = vstv %s1320
        %v1322 = vmul.f32 %v1311, %v1321
        %v1323 = vadd.f32 %v1133, %v1322
        %s1324 = sld [smem:[#allocation2 + $0xb3]]
        %v1325 = vstv %s1324
        %v1326 = vmul.f32 %v1311, %v1325
        %v1327 = vadd.f32 %v1137, %v1326
        %s1328 = sld [smem:[#allocation2 + $0xb4]]
        %v1329 = vstv %s1328
        %v1330 = vmul.f32 %v1311, %v1329
        %v1331 = vadd.f32 %v1141, %v1330
        %s1332 = sld [smem:[#allocation2 + $0xb5]]
        %v1333 = vstv %s1332
        %v1334 = vmul.f32 %v1311, %v1333
        %v1335 = vadd.f32 %v1145, %v1334
        %s1336 = sld [smem:[#allocation2 + $0xb6]]
        %v1337 = vstv %s1336
        %v1338 = vmul.f32 %v1311, %v1337
        %v1339 = vadd.f32 %v1149, %v1338
        %s1340 = sld [smem:[#allocation2 + $0xb7]]
        %v1341 = vstv %s1340
        %v1342 = vmul.f32 %v1311, %v1341
        %v1343 = vadd.f32 %v1153, %v1342
        %s1344 = sld [smem:[#allocation2 + $0x26]]
        %s1345 = sld [smem:[#allocation2 + $0x2e]]
        %s1346 = sld [smem:[#allocation2 + $0x7e]]
        %s1347 = sld [smem:[#allocation2 + $0x86]]
        %s1348 = sld [smem:[#allocation2 + $0x6]]
        %v1349 = vstv %s1348
        %v1350 = vmul.f32 %v176, %v1349
        %v1351 = vmul.f32 %v177, %v1349
        %s1352 = sld [smem:[#allocation2 + $0xe]]
        %v1353 = vstv %s1352
        %v1354 = vmul.f32 %v183, %v1353
        %v1355 = vmul.f32 %v184, %v1353
        %v1356 = vadd.f32 %v1350, %v1354
        %v1357 = vadd.f32 %v1351, %v1355
        %s1358 = sld [smem:[#allocation2 + $0x16]]
        %v1359 = vstv %s1358
        %v1360 = vmul.f32 %v192, %v1359
        %v1361 = vmul.f32 %v193, %v1359
        %v1362 = vadd.f32 %v1356, %v1360
        %v1363 = vadd.f32 %v1357, %v1361
        %s1364 = sld [smem:[#allocation2 + $0x1e]]
        %v1365 = vstv %s1364
        %v1366 = vmul.f32 %v201, %v1365
        %v1367 = vmul.f32 %v202, %v1365
        %v1368 = vadd.f32 %v1362, %v1366
        %v1369 = vadd.f32 %v1363, %v1367
        %v1370 = vstv %s1344
        %v1371 = vadd.f32 %v1368, %v1370
        %v1372 = vadd.f32 %v1369, %v1370
        %vm1373 = vcmp.ge.f32.partialorder %v1371, 0.0
        %vm1374 = vcmp.ge.f32.partialorder %v1372, 0.0
        %v1375 = vstv %s1345
        %v1376 = vmul.f32 %v1375, %v1371
        %v1377 = vmul.f32 %v1375, %v1372
        %v1378 = vsel %vm1373, %v1371, %v1376
        %v1379 = vsel %vm1374, %v1372, %v1377
        %v1380 = vsel %vm164, %v1378, 0.0
        %v1381 = vsel %vm165, %v1379, 0.0
        %v1382 = vmul.f32 %v222, %v1349
        %v1383 = vmul.f32 %v223, %v1349
        %v1384 = vmul.f32 %v227, %v1353
        %v1385 = vmul.f32 %v228, %v1353
        %v1386 = vadd.f32 %v1382, %v1384
        %v1387 = vadd.f32 %v1383, %v1385
        %v1388 = vmul.f32 %v234, %v1359
        %v1389 = vmul.f32 %v235, %v1359
        %v1390 = vadd.f32 %v1386, %v1388
        %v1391 = vadd.f32 %v1387, %v1389
        %v1392 = vmul.f32 %v241, %v1365
        %v1393 = vmul.f32 %v242, %v1365
        %v1394 = vadd.f32 %v1390, %v1392
        %v1395 = vadd.f32 %v1391, %v1393
        %v1396 = vadd.f32 %v1394, %v1370
        %v1397 = vadd.f32 %v1395, %v1370
        %vm1398 = vcmp.ge.f32.partialorder %v1396, 0.0
        %vm1399 = vcmp.ge.f32.partialorder %v1397, 0.0
        %v1400 = vmul.f32 %v1375, %v1396
        %v1401 = vmul.f32 %v1375, %v1397
        %v1402 = vsel %vm1398, %v1396, %v1400
        %v1403 = vsel %vm1399, %v1397, %v1401
        %v1404 = vsel %vm167, %v1402, 0.0
        %v1405 = vsel %vm168, %v1403, 0.0
        %v1406 = vmul.f32 %v258, %v1349
        %v1407 = vmul.f32 %v261, %v1353
        %v1408 = vadd.f32 %v1406, %v1407
        %v1409 = vmul.f32 %v265, %v1359
        %v1410 = vadd.f32 %v1408, %v1409
        %v1411 = vmul.f32 %v269, %v1365
        %v1412 = vadd.f32 %v1410, %v1411
        %v1413 = vadd.f32 %v1412, %v1370
        %vm1414 = vcmp.ge.f32.partialorder %v1413, 0.0
        %v1415 = vmul.f32 %v1375, %v1413
        %v1416 = vsel %vm1414, %v1413, %v1415
        %v1417 = vsel %vm170, %v1416, 0.0
        %v1418 = vmul.f32 %v278, %v1349
        %v1419 = vmul.f32 %v281, %v1353
        %v1420 = vadd.f32 %v1418, %v1419
        %v1421 = vmul.f32 %v285, %v1359
        %v1422 = vadd.f32 %v1420, %v1421
        %v1423 = vmul.f32 %v289, %v1365
        %v1424 = vadd.f32 %v1422, %v1423
        %v1425 = vadd.f32 %v1424, %v1370
        %vm1426 = vcmp.ge.f32.partialorder %v1425, 0.0
        %v1427 = vmul.f32 %v1375, %v1425
        %v1428 = vsel %vm1426, %v1425, %v1427
        %v1429 = vsel %vm171, %v1428, 0.0
        %s1430 = sld [smem:[#allocation2 + $0x66]]
        %v1431 = vstv %s1430
        %v1432 = vmul.f32 %v1380, %v1431
        %s1433 = sld [smem:[#allocation2 + $0x67]]
        %v1434 = vstv %s1433
        %v1435 = vmul.f32 %v1404, %v1434
        %v1436 = vadd.f32 %v1432, %v1435
        %s1437 = sld [smem:[#allocation2 + $0x68]]
        %v1438 = vstv %s1437
        %v1439 = vmul.f32 %v1380, %v1438
        %1441 = vrot.lane.b32.xlu0 %v1439, 127
        %v1442 = vpop.permute.xlu0 %1441
        %v1444 = vadd.f32 %v1436, %v1442
        %s1445 = sld [smem:[#allocation2 + $0x69]]
        %v1446 = vstv %s1445
        %v1447 = vmul.f32 %v1417, %v1446
        %v1448 = vadd.f32 %v1444, %v1447
        %s1449 = sld [smem:[#allocation2 + $0x6a]]
        %v1450 = vstv %s1449
        %v1451 = vmul.f32 %v1429, %v1450
        %v1452 = vadd.f32 %v1448, %v1451
        %s1453 = sld [smem:[#allocation2 + $0x6b]]
        %v1454 = vstv %s1453
        %v1455 = vmul.f32 %v1417, %v1454
        %1457 = vrot.lane.b32.xlu0 %v1455, 127
        %v1458 = vpop.permute.xlu0 %1457
        %v1460 = vadd.f32 %v1452, %v1458
        %s1461 = sld [smem:[#allocation2 + $0x6c]]
        %v1462 = vstv %s1461
        %v1463 = vmul.f32 %v1380, %v1462
        %v1464 = vmul.f32 %v1381, %v1462
        %v1467 = vrot.slane %v1463, 1
        %v1468 = vrot.slane %v1464, 1
        %v1469 = vsel %vm334, %v1467, %v1468
        %v1471 = vadd.f32 %v1460, %v1469
        %s1472 = sld [smem:[#allocation2 + $0x6d]]
        %v1473 = vstv %s1472
        %v1474 = vmul.f32 %v1404, %v1473
        %v1475 = vmul.f32 %v1405, %v1473
        %v1478 = vrot.slane %v1474, 1
        %v1479 = vrot.slane %v1475, 1
        %v1480 = vsel %vm334, %v1478, %v1479
        %v1482 = vadd.f32 %v1471, %v1480
        %s1483 = sld [smem:[#allocation2 + $0x6e]]
        %v1484 = vstv %s1483
        %v1485 = vmul.f32 %v1380, %v1484
        %v1486 = vmul.f32 %v1381, %v1484
        %v1489 = vrot.slane %v1485, 1
        %v1490 = vrot.slane %v1486, 1
        %v1491 = vsel %vm334, %v1489, %v1490
        %1492 = vrot.lane.b32.xlu0 %v1491, 127
        %v1493 = vpop.permute.xlu0 %1492
        %v1495 = vadd.f32 %v1482, %v1493
        %v1496 = vstv %s1346
        %v1497 = vadd.f32 %v1495, %v1496
        %vm1498 = vcmp.ge.f32.partialorder %v1497, 0.0
        %v1499 = vstv %s1347
        %v1500 = vmul.f32 %v1499, %v1497
        %v1501 = vsel %vm1498, %v1497, %v1500
        %s1502 = sld [smem:[#allocation2 + $0xb8]]
        %v1503 = vstv %s1502
        %v1504 = vmul.f32 %v1501, %v1503
        %v1505 = vadd.f32 %v1315, %v1504
        %s1506 = sld [smem:[#allocation2 + $0xb9]]
        %v1507 = vstv %s1506
        %v1508 = vmul.f32 %v1501, %v1507
        %v1509 = vadd.f32 %v1319, %v1508
        %s1510 = sld [smem:[#allocation2 + $0xba]]
        %v1511 = vstv %s1510
        %v1512 = vmul.f32 %v1501, %v1511
        %v1513 = vadd.f32 %v1323, %v1512
        %s1514 = sld [smem:[#allocation2 + $0xbb]]
        %v1515 = vstv %s1514
        %v1516 = vmul.f32 %v1501, %v1515
        %v1517 = vadd.f32 %v1327, %v1516
        %s1518 = sld [smem:[#allocation2 + $0xbc]]
        %v1519 = vstv %s1518
        %v1520 = vmul.f32 %v1501, %v1519
        %v1521 = vadd.f32 %v1331, %v1520
        %s1522 = sld [smem:[#allocation2 + $0xbd]]
        %v1523 = vstv %s1522
        %v1524 = vmul.f32 %v1501, %v1523
        %v1525 = vadd.f32 %v1335, %v1524
        %s1526 = sld [smem:[#allocation2 + $0xbe]]
        %v1527 = vstv %s1526
        %v1528 = vmul.f32 %v1501, %v1527
        %v1529 = vadd.f32 %v1339, %v1528
        %s1530 = sld [smem:[#allocation2 + $0xbf]]
        %v1531 = vstv %s1530
        %v1532 = vmul.f32 %v1501, %v1531
        %v1533 = vadd.f32 %v1343, %v1532
        %s1534 = sld [smem:[#allocation2 + $0x27]]
        %s1535 = sld [smem:[#allocation2 + $0x2f]]
        %s1536 = sld [smem:[#allocation2 + $0x7f]]
        %s1537 = sld [smem:[#allocation2 + $0x87]]
        %s1538 = sld [smem:[#allocation2 + $0x7]]
        %v1539 = vstv %s1538
        %v1540 = vmul.f32 %v176, %v1539
        %v1541 = vmul.f32 %v177, %v1539
        %s1542 = sld [smem:[#allocation2 + $0xf]]
        %v1543 = vstv %s1542
        %v1544 = vmul.f32 %v183, %v1543
        %v1545 = vmul.f32 %v184, %v1543
        %v1546 = vadd.f32 %v1540, %v1544
        %v1547 = vadd.f32 %v1541, %v1545
        %s1548 = sld [smem:[#allocation2 + $0x17]]
        %v1549 = vstv %s1548
        %v1550 = vmul.f32 %v192, %v1549
        %v1551 = vmul.f32 %v193, %v1549
        %v1552 = vadd.f32 %v1546, %v1550
        %v1553 = vadd.f32 %v1547, %v1551
        %s1554 = sld [smem:[#allocation2 + $0x1f]]
        %v1555 = vstv %s1554
        %v1556 = vmul.f32 %v201, %v1555
        %v1557 = vmul.f32 %v202, %v1555
        %v1558 = vadd.f32 %v1552, %v1556
        %v1559 = vadd.f32 %v1553, %v1557
        %v1560 = vstv %s1534
        %v1561 = vadd.f32 %v1558, %v1560
        %v1562 = vadd.f32 %v1559, %v1560
        %vm1563 = vcmp.ge.f32.partialorder %v1561, 0.0
        %vm1564 = vcmp.ge.f32.partialorder %v1562, 0.0
        %v1565 = vstv %s1535
        %v1566 = vmul.f32 %v1565, %v1561
        %v1567 = vmul.f32 %v1565, %v1562
        %v1568 = vsel %vm1563, %v1561, %v1566
        %v1569 = vsel %vm1564, %v1562, %v1567
        %v1570 = vsel %vm164, %v1568, 0.0
        %v1571 = vsel %vm165, %v1569, 0.0
        %v1572 = vmul.f32 %v222, %v1539
        %v1573 = vmul.f32 %v223, %v1539
        %v1574 = vmul.f32 %v227, %v1543
        %v1575 = vmul.f32 %v228, %v1543
        %v1576 = vadd.f32 %v1572, %v1574
        %v1577 = vadd.f32 %v1573, %v1575
        %v1578 = vmul.f32 %v234, %v1549
        %v1579 = vmul.f32 %v235, %v1549
        %v1580 = vadd.f32 %v1576, %v1578
        %v1581 = vadd.f32 %v1577, %v1579
        %v1582 = vmul.f32 %v241, %v1555
        %v1583 = vmul.f32 %v242, %v1555
        %v1584 = vadd.f32 %v1580, %v1582
        %v1585 = vadd.f32 %v1581, %v1583
        %v1586 = vadd.f32 %v1584, %v1560
        %v1587 = vadd.f32 %v1585, %v1560
        %vm1588 = vcmp.ge.f32.partialorder %v1586, 0.0
        %vm1589 = vcmp.ge.f32.partialorder %v1587, 0.0
        %v1590 = vmul.f32 %v1565, %v1586
        %v1591 = vmul.f32 %v1565, %v1587
        %v1592 = vsel %vm1588, %v1586, %v1590
        %v1593 = vsel %vm1589, %v1587, %v1591
        %v1594 = vsel %vm167, %v1592, 0.0
        %v1595 = vsel %vm168, %v1593, 0.0
        %v1596 = vmul.f32 %v258, %v1539
        %v1597 = vmul.f32 %v261, %v1543
        %v1598 = vadd.f32 %v1596, %v1597
        %v1599 = vmul.f32 %v265, %v1549
        %v1600 = vadd.f32 %v1598, %v1599
        %v1601 = vmul.f32 %v269, %v1555
        %v1602 = vadd.f32 %v1600, %v1601
        %v1603 = vadd.f32 %v1602, %v1560
        %vm1604 = vcmp.ge.f32.partialorder %v1603, 0.0
        %v1605 = vmul.f32 %v1565, %v1603
        %v1606 = vsel %vm1604, %v1603, %v1605
        %v1607 = vsel %vm170, %v1606, 0.0
        %v1608 = vmul.f32 %v278, %v1539
        %v1609 = vmul.f32 %v281, %v1543
        %v1610 = vadd.f32 %v1608, %v1609
        %v1611 = vmul.f32 %v285, %v1549
        %v1612 = vadd.f32 %v1610, %v1611
        %v1613 = vmul.f32 %v289, %v1555
        %v1614 = vadd.f32 %v1612, %v1613
        %v1615 = vadd.f32 %v1614, %v1560
        %vm1616 = vcmp.ge.f32.partialorder %v1615, 0.0
        %v1617 = vmul.f32 %v1565, %v1615
        %v1618 = vsel %vm1616, %v1615, %v1617
        %v1619 = vsel %vm171, %v1618, 0.0
        %s1620 = sld [smem:[#allocation2 + $0x6f]]
        %v1621 = vstv %s1620
        %v1622 = vmul.f32 %v1570, %v1621
        %s1623 = sld [smem:[#allocation2 + $0x70]]
        %v1624 = vstv %s1623
        %v1625 = vmul.f32 %v1594, %v1624
        %v1626 = vadd.f32 %v1622, %v1625
        %s1627 = sld [smem:[#allocation2 + $0x71]]
        %v1628 = vstv %s1627
        %v1629 = vmul.f32 %v1570, %v1628
        %1631 = vrot.lane.b32.xlu0 %v1629, 127
        %v1632 = vpop.permute.xlu0 %1631
        %v1634 = vadd.f32 %v1626, %v1632
        %s1635 = sld [smem:[#allocation2 + $0x72]]
        %v1636 = vstv %s1635
        %v1637 = vmul.f32 %v1607, %v1636
        %v1638 = vadd.f32 %v1634, %v1637
        %s1639 = sld [smem:[#allocation2 + $0x73]]
        %v1640 = vstv %s1639
        %v1641 = vmul.f32 %v1619, %v1640
        %v1642 = vadd.f32 %v1638, %v1641
        %s1643 = sld [smem:[#allocation2 + $0x74]]
        %v1644 = vstv %s1643
        %v1645 = vmul.f32 %v1607, %v1644
        %1647 = vrot.lane.b32.xlu0 %v1645, 127
        %v1648 = vpop.permute.xlu0 %1647
        %v1650 = vadd.f32 %v1642, %v1648
        %s1651 = sld [smem:[#allocation2 + $0x75]]
        %v1652 = vstv %s1651
        %v1653 = vmul.f32 %v1570, %v1652
        %v1654 = vmul.f32 %v1571, %v1652
        %v1657 = vrot.slane %v1653, 1
        %v1658 = vrot.slane %v1654, 1
        %v1659 = vsel %vm334, %v1657, %v1658
        %v1661 = vadd.f32 %v1650, %v1659
        %s1662 = sld [smem:[#allocation2 + $0x76]]
        %v1663 = vstv %s1662
        %v1664 = vmul.f32 %v1594, %v1663
        %v1665 = vmul.f32 %v1595, %v1663
        %v1668 = vrot.slane %v1664, 1
        %v1669 = vrot.slane %v1665, 1
        %v1670 = vsel %vm334, %v1668, %v1669
        %v1672 = vadd.f32 %v1661, %v1670
        %s1673 = sld [smem:[#allocation2 + $0x77]]
        %v1674 = vstv %s1673
        %v1675 = vmul.f32 %v1570, %v1674
        %v1676 = vmul.f32 %v1571, %v1674
        %v1679 = vrot.slane %v1675, 1
        %v1680 = vrot.slane %v1676, 1
        %v1681 = vsel %vm334, %v1679, %v1680
        %1682 = vrot.lane.b32.xlu0 %v1681, 127
        %v1683 = vpop.permute.xlu0 %1682
        %v1685 = vadd.f32 %v1672, %v1683
        %v1686 = vstv %s1536
        %v1687 = vadd.f32 %v1685, %v1686
        %vm1688 = vcmp.ge.f32.partialorder %v1687, 0.0
        %v1689 = vstv %s1537
        %v1690 = vmul.f32 %v1689, %v1687
        %v1691 = vsel %vm1688, %v1687, %v1690
        %s1692 = sld [smem:[#allocation2 + $0xc0]]
        %v1693 = vstv %s1692
        %v1694 = vmul.f32 %v1691, %v1693
        %v1695 = vadd.f32 %v1505, %v1694
        %s1696 = sld [smem:[#allocation2 + $0xc1]]
        %v1697 = vstv %s1696
        %v1698 = vmul.f32 %v1691, %v1697
        %v1699 = vadd.f32 %v1509, %v1698
        %s1700 = sld [smem:[#allocation2 + $0xc2]]
        %v1701 = vstv %s1700
        %v1702 = vmul.f32 %v1691, %v1701
        %v1703 = vadd.f32 %v1513, %v1702
        %s1704 = sld [smem:[#allocation2 + $0xc3]]
        %v1705 = vstv %s1704
        %v1706 = vmul.f32 %v1691, %v1705
        %v1707 = vadd.f32 %v1517, %v1706
        %s1708 = sld [smem:[#allocation2 + $0xc4]]
        %v1709 = vstv %s1708
        %v1710 = vmul.f32 %v1691, %v1709
        %v1711 = vadd.f32 %v1521, %v1710
        %s1712 = sld [smem:[#allocation2 + $0xc5]]
        %v1713 = vstv %s1712
        %v1714 = vmul.f32 %v1691, %v1713
        %v1715 = vadd.f32 %v1525, %v1714
        %s1716 = sld [smem:[#allocation2 + $0xc6]]
        %v1717 = vstv %s1716
        %v1718 = vmul.f32 %v1691, %v1717
        %v1719 = vadd.f32 %v1529, %v1718
        %s1720 = sld [smem:[#allocation2 + $0xc7]]
        %v1721 = vstv %s1720
        %v1722 = vmul.f32 %v1691, %v1721
        %v1723 = vadd.f32 %v1533, %v1722
        %s1724 = sld [smem:[#allocation2 + $0xc8]]
        %v1725 = vstv %s1724
        %v1726 = vadd.f32 %v1695, %v1725
        %vm1727 = vcmask 64512
        %1728 = vst.msk [vmem:[%s150] sm:$0xff] %vm1727, %v1726
        %s1729 = sld [smem:[#allocation2 + $0xc9]]
        %v1730 = vstv %s1729
        %v1731 = vadd.f32 %v1699, %v1730
        %s1732 = scalar_lea.vmem %s150, 8 [#allocation5]
        %1733 = vst.msk [vmem:[%s1732] sm:$0xff] %vm1727, %v1731
        %s1734 = sld [smem:[#allocation2 + $0xca]]
        %v1735 = vstv %s1734
        %v1736 = vadd.f32 %v1703, %v1735
        %s1737 = scalar_lea.vmem %s150, 16 [#allocation5]
        %1738 = vst.msk [vmem:[%s1737] sm:$0xff] %vm1727, %v1736
        %s1739 = sld [smem:[#allocation2 + $0xcb]]
        %v1740 = vstv %s1739
        %v1741 = vadd.f32 %v1707, %v1740
        %s1742 = scalar_lea.vmem %s150, 24 [#allocation5]
        %1743 = vst.msk [vmem:[%s1742] sm:$0xff] %vm1727, %v1741
        %s1744 = sld [smem:[#allocation2 + $0xcc]]
        %v1745 = vstv %s1744
        %v1746 = vadd.f32 %v1711, %v1745
        %s1747 = scalar_lea.vmem %s150, 32 [#allocation5]
        %1748 = vst.msk [vmem:[%s1747] sm:$0xff] %vm1727, %v1746
        %s1749 = sld [smem:[#allocation2 + $0xcd]]
        %v1750 = vstv %s1749
        %v1751 = vadd.f32 %v1715, %v1750
        %s1752 = scalar_lea.vmem %s150, 40 [#allocation5]
        %1753 = vst.msk [vmem:[%s1752] sm:$0xff] %vm1727, %v1751
        %s1754 = sld [smem:[#allocation2 + $0xce]]
        %v1755 = vstv %s1754
        %v1756 = vadd.f32 %v1719, %v1755
        %s1757 = scalar_lea.vmem %s150, 48 [#allocation5]
        %1758 = vst.msk [vmem:[%s1757] sm:$0xff] %vm1727, %v1756
        %s1759 = sld [smem:[#allocation2 + $0xcf]]
        %v1760 = vstv %s1759
        %v1761 = vadd.f32 %v1723, %v1760
        %s1762 = scalar_lea.vmem %s150, 56 [#allocation5]
        %1763 = vst.msk [vmem:[%s1762] sm:$0xff] %vm1727, %v1761
        %s1764 = sand.u32 %s72, 1
        %s1765 = scalar_lea.sflag [#allocation3], %s1764
        %s1766 = sand.u32 %s72, 1
        %s1767 = smul.addr %s1766, 64
        %s1768 = scalar_lea.vmem [#allocation5], %s1767
        // Predicated region
        $region33: #{depth_wise_forward.1} parent=27 // pred_check
          %p1769 = pneg %p82
        $region34: #{depth_wise_forward.1} parent=27 // pred_check_branch
          %1771 = sbr.rel (%p1769) target = $region36
        $region35: #{depth_wise_forward.1} parent=27 // pred_region
          %s1773 = ssub.s32 1024, 1024
          %1774 = vsyncadd %s1765, %s1773
          %s1775 = smul.addr %s17, 8
          %s1776 = smul.addr %s1775, 128
          %s1777 = scalar_lea.hbm %s2, %s1776
          %s1778 = sshll.u32 %s1768, 4
          %s1779 = int_to_ptr.vmem [resolvable:$true] %s1778
          %1784 = dma.vmem_to_hbm [thread:$0]  %s1779, 1024, %s1777, %s1765, 128, 128, 8
        $region36: #{depth_wise_forward.1} parent=27 // pred_fallthru
          _
      $region28: #{depth_wise_forward.1} parent=5 // pred_fallthru
        _
      %p1785 = scmp.le.s32.totalorder 2, %s12
      // Predicated region
      $region37: #{depth_wise_forward.1} parent=5 // pred_check
        %p1786 = pneg %p1785
      $region38: #{depth_wise_forward.1} parent=5 // pred_check_branch
        %1788 = sbr.rel (%p1786) target = $region40
      $region39: #{depth_wise_forward.1} parent=5 // pred_region
        %s1789 = ssub.s32 %s12, 2
        // Predicated region
        $region41: #{depth_wise_forward.1} parent=39 // pred_check
          %p1790 = pneg %p88
        $region42: #{depth_wise_forward.1} parent=39 // pred_check_branch
          %1792 = sbr.rel (%p1790) target = $region44
        $region43: #{depth_wise_forward.1} parent=39 // pred_region
          %s1793 = sand.u32 %s73, 1
          %s1794 = scalar_lea.sflag [#allocation3], %s1793
          %s1795 = sand.u32 %s73, 1
          %s1796 = smul.addr %s1795, 64
          %s1797 = scalar_lea.vmem [#allocation5], %s1796
          %1798 = dma.done %s1794, 1024
        $region44: #{depth_wise_forward.1} parent=39 // pred_fallthru
          _
      $region40: #{depth_wise_forward.1} parent=5 // pred_fallthru
        _
    $region6: #{depth_wise_forward.1} parent=1 // loop_footer
      %s16 = sadd.s32 1, %s12
    $region7: #{depth_wise_forward.1} parent=1 // loop_footer_branch
      %11 = sbr.rel target = $region3
    $region8: #{depth_wise_forward.1} parent=1 // loop_exit
      _
    %1799 = vsyncpa [#allocation3], 1
    %s1800 = scalar_lea.sflag [#allocation3], 1
    %1801 = vsyncpa %s1800, 1
    %1802 = vsyncpa [#allocation4], 1
    %s1803 = scalar_lea.sflag [#allocation4], 1
    %1804 = vsyncpa %s1803, 1

</llo_original>
